<compile_context>
chip_gen: v5e
topology: v5e:2x2
jax: 0.10.0
libtpu: 0.0.40
codegen_flags: <defaults>
</compile_context>

<pallas_src>
import jax
import jax.numpy as jnp
import numpy as np
from jax.experimental import pallas as pl
from jax.experimental.pallas import tpu as pltpu


OUT_LANES = 128  # lane-dense output slab width


# ----------------------------- shared math -----------------------------------

def _elu(x):
    # nn.ELU(alpha=1.0); exp only on the clamped-negative branch.
    return jnp.where(x > 0, x, jnp.exp(jnp.minimum(x, 0.0)) - 1.0)


def _dot(x, w):
    # bf16 operands, f32 accumulation on the MXU.
    return jnp.dot(x.astype(jnp.bfloat16), w, preferred_element_type=jnp.float32)


def _forward_math(obs, cobs, p):
    """Fused deterministic forward on plain arrays.

    `p` is the ordered flat parameter list from prepare_kernel_params
    (bf16 weights, f32 biases).  Used both inside the Pallas kernel (on loaded
    ref values) and as the bf16-matched pure-JAX reference.
    """
    (cw0, cb0, cw1, cb1, cw2v, cb2v, cw2h, cb2h,
     aw0o, aw0v, aw0h, ab0, aw1, ab1, aw2, ab2, aw3p,
     vw0, vb0, vw1, vb1, vw2, vb2, vw3p,
     kw0, kb0, kw1, kb1, kw2, kb2, kw3p, bout) = p

    # ---- context model: Linear-ELU-Linear-ELU-Linear, output split vel / hidden
    h = _elu(_dot(obs, cw0) + cb0)
    h = _elu(_dot(h, cw1) + cb1)
    vel = _dot(h, cw2v) + cb2v                      # (B, 3)
    hid = _dot(h, cw2h) + cb2h                      # (B, 32)
    # torch.nn.functional.normalize(hidden, p=2, dim=-1), eps = 1e-12
    inv = jax.lax.rsqrt(jnp.maximum(jnp.sum(hid * hid, axis=-1, keepdims=True), 1e-24))
    hid = hid * inv

    # ---- actor layer 0 as three lane-aligned matmuls (replaces slice + concat)
    a = _elu(_dot(obs, aw0o) + _dot(vel, aw0v) + _dot(hid, aw0h) + ab0)
    a = _elu(_dot(a, aw1) + ab1)
    a = _elu(_dot(a, aw2) + ab2)

    # ---- critic
    v = _elu(_dot(cobs, vw0) + vb0)
    v = _elu(_dot(v, vw1) + vb1)
    v = _elu(_dot(v, vw2) + vb2)

    # ---- cost critic
    c = _elu(_dot(cobs, kw0) + kb0)
    c = _elu(_dot(c, kw1) + kb1)
    c = _elu(_dot(c, kw2) + kb2)

    # ---- single lane-dense output slab: [actions | value | cost | zero-pad]
    return _dot(a, aw3p) + _dot(v, vw3p) + _dot(c, kw3p) + bout


# ------------------------------- kernel ---------------------------------------

def acrac_fused_kernel(*refs):
    obs_ref, cobs_ref, out_ref = refs[0], refs[1], refs[-1]
    p = [r[...] for r in refs[2:-1]]
    out_ref[...] = _forward_math(obs_ref[...], cobs_ref[...], p)


# ------------------------- parameter preparation ------------------------------

def prepare_kernel_params(params, num_actor_obs, one_obs_dims,
                          num_actions, constraint_num, out_lanes=OUT_LANES):
    """Split / pad / cast the PyTorch-style parameters for the fused kernel."""
    f32, bf16 = jnp.float32, jnp.bfloat16

    (cw0, cb0), (cw1, cb1), (cw2, cb2) = params['context']
    (aw0, ab0), (aw1, ab1), (aw2, ab2), (aw3, ab3) = params['actor']
    (vw0, vb0), (vw1, vb1), (vw2, vb2), (vw3, vb3) = params['critic']
    (kw0, kb0), (kw1, kb1), (kw2, kb2), (kw3, kb3) = params['cost_critic']

    # Context output layer -> vel(3) / hidden(32) heads (each lane-0 aligned).
    cw2v, cw2h = cw2[:, :3], cw2[:, 3:]
    cb2v, cb2h = cb2[:, :3], cb2[:, 3:]

    # Actor layer-0 split row-wise: obs rows (zero-padded to full obs width so the
    # kernel never slices obs lanes), vel rows, hidden rows.
    width = aw0.shape[1]
    aw0_obs = aw0[:one_obs_dims]
    aw0_vel = aw0[one_obs_dims:one_obs_dims + 3]
    aw0_hid = aw0[one_obs_dims + 3:]
    aw0o = jnp.zeros((num_actor_obs, width), f32).at[:one_obs_dims].set(aw0_obs)

    # Final-layer weights padded into disjoint lanes of one 128-lane output slab.
    def pad_cols(w, col0):
        out = jnp.zeros((w.shape[0], out_lanes), f32)
        return out.at[:, col0:col0 + w.shape[1]].set(w)

    aw3p = pad_cols(aw3, 0)                                   # actions  -> lanes [0,12)
    vw3p = pad_cols(vw3, num_actions)                         # value    -> lane  12
    kw3p = pad_cols(kw3, num_actions + 1)                     # cost     -> lanes [13,13+C)
    bias_out = (pad_cols(ab3, 0) + pad_cols(vb3, num_actions)
                + pad_cols(kb3, num_actions + 1))

    W = lambda x: x.astype(bf16)    # matmul operands
    Bc = lambda x: x.astype(f32)    # biases stay f32

    flat = [W(cw0), Bc(cb0), W(cw1), Bc(cb1), W(cw2v), Bc(cb2v), W(cw2h), Bc(cb2h),
            W(aw0o), W(aw0_vel), W(aw0_hid), Bc(ab0), W(aw1), Bc(ab1), W(aw2), Bc(ab2),
            W(aw3p),
            W(vw0), Bc(vb0), W(vw1), Bc(vb1), W(vw2), Bc(vb2), W(vw3p),
            W(kw0), Bc(kb0), W(kw1), Bc(kb1), W(kw2), Bc(kb2), W(kw3p),
            Bc(bias_out)]
    return flat


# ------------------------------- wrapper ---------------------------------------

def acrac_forward(obs, critic_obs, flat_params, num_actions, constraint_num,
                  out_lanes=OUT_LANES):
    """One fused pallas_call: returns (actions_mean, value, cost_value)."""
    B = obs.shape[0]
    args = [obs.astype(jnp.float32), critic_obs.astype(jnp.float32)] + list(flat_params)

    in_specs = [pl.BlockSpec(a.shape, lambda i: (0, 0)) for a in args]
    out_spec = pl.BlockSpec((B, out_lanes), lambda i: (0, 0))

    slab = pl.pallas_call(
        acrac_fused_kernel,
        grid=(1,),                                    # whole batch in one block
        in_specs=in_specs,
        out_specs=out_spec,
        out_shape=jax.ShapeDtypeStruct((B, out_lanes), jnp.float32),
        compiler_params=pltpu.CompilerParams(dimension_semantics=("arbitrary",)),
    )(*args)

    actions_mean = slab[:, :num_actions]
    value = slab[:, num_actions:num_actions + 1]
    cost = slab[:, num_actions + 1:num_actions + 1 + constraint_num]
    return actions_mean, value, cost


# --------------------------- pure-JAX f32 reference ----------------------------

def _elu_ref(x):
    return jnp.where(x > 0, x, jnp.expm1(x))


def _mlp_ref(x, layers):
    n = len(layers)
    for idx, (w, b) in enumerate(layers):
        x = x @ w + b
        if idx < n - 1:
            x = _elu_ref(x)
    return x


def _actor_ref(obs, params, one_obs_dims):
    ctx = _mlp_ref(obs, params['context'])
    vel, hid = ctx[:, :3], ctx[:, 3:]
    hid = hid / jnp.maximum(jnp.linalg.norm(hid, axis=-1, keepdims=True), 1e-12)
    a_in = jnp.concatenate([obs[:, :one_obs_dims], vel, hid], axis=-1)
    return _mlp_ref(a_in, params['actor'])


# ----------------------------------- main ---------------------------------------

if __name__ == "__main__":
    # Module hyper-parameters (consistent with __init__ defaults).
    num_actor_obs, num_critic_obs, num_actions = 48, 64, 12
    horizon, constraint_num = 1, 1
    one_obs_dims = num_actor_obs // horizon
    ctx_hidden = 3 + 32
    B = 16

    key = jax.random.PRNGKey(0)

    def init_linear(k, din, dout):
        kw, kb = jax.random.split(k)
        w = jax.random.normal(kw, (din, dout), jnp.float32) * (1.0 / np.sqrt(din))
        b = jax.random.normal(kb, (1, dout), jnp.float32) * 0.01
        return w, b

    def init_mlp(k, dims):
        ks = jax.random.split(k, len(dims) - 1)
        return [init_linear(ks[i], dims[i], dims[i + 1]) for i in range(len(dims) - 1)]

    k1, k2, k3, k4, k5, k6 = jax.random.split(key, 6)
    params = {
        # context_model: [obs_dim, 256, 256, 35]
        'context': init_mlp(k1, [num_actor_obs, 256, 256, ctx_hidden]),
        # actor: [one_obs_dims + 35, 256, 256, 256, num_actions]
        'actor': init_mlp(k2, [one_obs_dims + ctx_hidden, 256, 256, 256, num_actions]),
        # critic: [critic_obs, 256, 256, 256, 1]
        'critic': init_mlp(k3, [num_critic_obs, 256, 256, 256, 1]),
        # cost_critic: [critic_obs, 512, 256, 128, constraint_num]
        'cost_critic': init_mlp(k4, [num_critic_obs, 512, 256, 128, constraint_num]),
    }
    std = jnp.ones((num_actions,), jnp.float32)  # init_noise_std * ones(num_actions)

    obs = jax.random.normal(k5, (B, num_actor_obs), jnp.float32)
    critic_obs = jax.random.normal(k6, (B, num_critic_obs), jnp.float32)

    flat = prepare_kernel_params(params, num_actor_obs, one_obs_dims,
                                 num_actions, constraint_num)

    actions_mean, value, cost = acrac_forward(obs, critic_obs, flat,
                                              num_actions, constraint_num)
    jax.block_until_ready((actions_mean, value, cost))

    # (1) Tight check against the bf16-matched pure-JAX path (identical math).
    slab_ref = _forward_math(obs, critic_obs, flat)
    np.testing.assert_allclose(np.asarray(actions_mean),
                               np.asarray(slab_ref[:, :num_actions]),
                               rtol=1e-3, atol=1e-3)
    np.testing.assert_allclose(np.asarray(value),
                               np.asarray(slab_ref[:, num_actions:num_actions + 1]),
                               rtol=1e-3, atol=1e-3)
    np.testing.assert_allclose(np.asarray(cost),
                               np.asarray(slab_ref[:, num_actions + 1:
                                                   num_actions + 1 + constraint_num]),
                               rtol=1e-3, atol=1e-3)

    # (2) Semantics check against the full-f32 PyTorch-equivalent forward
    #     (looser tolerance because matmul operands are bf16 on the MXU).
    np.testing.assert_allclose(np.asarray(actions_mean),
                               np.asarray(_actor_ref(obs, params, one_obs_dims)),
                               rtol=5e-2, atol=5e-2)
    np.testing.assert_allclose(np.asarray(value),
                               np.asarray(_mlp_ref(critic_obs, params['critic'])),
                               rtol=5e-2, atol=5e-2)
    np.testing.assert_allclose(np.asarray(cost),
                               np.asarray(_mlp_ref(critic_obs, params['cost_critic'])),
                               rtol=5e-2, atol=5e-2)

    print("KERNEL_OK")
</pallas_src>

<mosaic_0001>
module attributes {stable_mosaic.version = 11 : i64} {
  func.func @acrac_fused_kernel(%arg0: i32, %arg1: memref<16x48xf32, #tpu.memory_space<vmem>>, %arg2: memref<16x64xf32, #tpu.memory_space<vmem>>, %arg3: memref<48x256xbf16, #tpu.memory_space<vmem>>, %arg4: memref<1x256xf32, #tpu.memory_space<vmem>>, %arg5: memref<256x256xbf16, #tpu.memory_space<vmem>>, %arg6: memref<1x256xf32, #tpu.memory_space<vmem>>, %arg7: memref<256x3xbf16, #tpu.memory_space<vmem>>, %arg8: memref<1x3xf32, #tpu.memory_space<vmem>>, %arg9: memref<256x32xbf16, #tpu.memory_space<vmem>>, %arg10: memref<1x32xf32, #tpu.memory_space<vmem>>, %arg11: memref<48x256xbf16, #tpu.memory_space<vmem>>, %arg12: memref<3x256xbf16, #tpu.memory_space<vmem>>, %arg13: memref<32x256xbf16, #tpu.memory_space<vmem>>, %arg14: memref<1x256xf32, #tpu.memory_space<vmem>>, %arg15: memref<256x256xbf16, #tpu.memory_space<vmem>>, %arg16: memref<1x256xf32, #tpu.memory_space<vmem>>, %arg17: memref<256x256xbf16, #tpu.memory_space<vmem>>, %arg18: memref<1x256xf32, #tpu.memory_space<vmem>>, %arg19: memref<256x128xbf16, #tpu.memory_space<vmem>>, %arg20: memref<64x256xbf16, #tpu.memory_space<vmem>>, %arg21: memref<1x256xf32, #tpu.memory_space<vmem>>, %arg22: memref<256x256xbf16, #tpu.memory_space<vmem>>, %arg23: memref<1x256xf32, #tpu.memory_space<vmem>>, %arg24: memref<256x256xbf16, #tpu.memory_space<vmem>>, %arg25: memref<1x256xf32, #tpu.memory_space<vmem>>, %arg26: memref<256x128xbf16, #tpu.memory_space<vmem>>, %arg27: memref<64x512xbf16, #tpu.memory_space<vmem>>, %arg28: memref<1x512xf32, #tpu.memory_space<vmem>>, %arg29: memref<512x256xbf16, #tpu.memory_space<vmem>>, %arg30: memref<1x256xf32, #tpu.memory_space<vmem>>, %arg31: memref<256x128xbf16, #tpu.memory_space<vmem>>, %arg32: memref<1x128xf32, #tpu.memory_space<vmem>>, %arg33: memref<128x128xbf16, #tpu.memory_space<vmem>>, %arg34: memref<1x128xf32, #tpu.memory_space<vmem>>, %arg35: memref<16x128xf32, #tpu.memory_space<vmem>>) attributes {dimension_semantics = [#tpu.dimension_semantics<arbitrary>], iteration_bounds = array<i64: 1>, scalar_prefetch = 0 : i64, scratch_operands = 0 : i64, tpu.core_type = #tpu.core_type<tc>, window_params = [{pipeline_mode = #tpu.pipeline_mode<synchronous>, transform_indices = @transform_0, window_bounds = array<i64: 16, 48>}, {pipeline_mode = #tpu.pipeline_mode<synchronous>, transform_indices = @transform_1, window_bounds = array<i64: 16, 64>}, {pipeline_mode = #tpu.pipeline_mode<synchronous>, transform_indices = @transform_2, window_bounds = array<i64: 48, 256>}, {pipeline_mode = #tpu.pipeline_mode<synchronous>, transform_indices = @transform_3, window_bounds = array<i64: 1, 256>}, {pipeline_mode = #tpu.pipeline_mode<synchronous>, transform_indices = @transform_4, window_bounds = array<i64: 256, 256>}, {pipeline_mode = #tpu.pipeline_mode<synchronous>, transform_indices = @transform_5, window_bounds = array<i64: 1, 256>}, {pipeline_mode = #tpu.pipeline_mode<synchronous>, transform_indices = @transform_6, window_bounds = array<i64: 256, 3>}, {pipeline_mode = #tpu.pipeline_mode<synchronous>, transform_indices = @transform_7, window_bounds = array<i64: 1, 3>}, {pipeline_mode = #tpu.pipeline_mode<synchronous>, transform_indices = @transform_8, window_bounds = array<i64: 256, 32>}, {pipeline_mode = #tpu.pipeline_mode<synchronous>, transform_indices = @transform_9, window_bounds = array<i64: 1, 32>}, {pipeline_mode = #tpu.pipeline_mode<synchronous>, transform_indices = @transform_10, window_bounds = array<i64: 48, 256>}, {pipeline_mode = #tpu.pipeline_mode<synchronous>, transform_indices = @transform_11, window_bounds = array<i64: 3, 256>}, {pipeline_mode = #tpu.pipeline_mode<synchronous>, transform_indices = @transform_12, window_bounds = array<i64: 32, 256>}, {pipeline_mode = #tpu.pipeline_mode<synchronous>, transform_indices = @transform_13, window_bounds = array<i64: 1, 256>}, {pipeline_mode = #tpu.pipeline_mode<synchronous>, transform_indices = @transform_14, window_bounds = array<i64: 256, 256>}, {pipeline_mode = #tpu.pipeline_mode<synchronous>, transform_indices = @transform_15, window_bounds = array<i64: 1, 256>}, {pipeline_mode = #tpu.pipeline_mode<synchronous>, transform_indices = @transform_16, window_bounds = array<i64: 256, 256>}, {pipeline_mode = #tpu.pipeline_mode<synchronous>, transform_indices = @transform_17, window_bounds = array<i64: 1, 256>}, {pipeline_mode = #tpu.pipeline_mode<synchronous>, transform_indices = @transform_18, window_bounds = array<i64: 256, 128>}, {pipeline_mode = #tpu.pipeline_mode<synchronous>, transform_indices = @transform_19, window_bounds = array<i64: 64, 256>}, {pipeline_mode = #tpu.pipeline_mode<synchronous>, transform_indices = @transform_20, window_bounds = array<i64: 1, 256>}, {pipeline_mode = #tpu.pipeline_mode<synchronous>, transform_indices = @transform_21, window_bounds = array<i64: 256, 256>}, {pipeline_mode = #tpu.pipeline_mode<synchronous>, transform_indices = @transform_22, window_bounds = array<i64: 1, 256>}, {pipeline_mode = #tpu.pipeline_mode<synchronous>, transform_indices = @transform_23, window_bounds = array<i64: 256, 256>}, {pipeline_mode = #tpu.pipeline_mode<synchronous>, transform_indices = @transform_24, window_bounds = array<i64: 1, 256>}, {pipeline_mode = #tpu.pipeline_mode<synchronous>, transform_indices = @transform_25, window_bounds = array<i64: 256, 128>}, {pipeline_mode = #tpu.pipeline_mode<synchronous>, transform_indices = @transform_26, window_bounds = array<i64: 64, 512>}, {pipeline_mode = #tpu.pipeline_mode<synchronous>, transform_indices = @transform_27, window_bounds = array<i64: 1, 512>}, {pipeline_mode = #tpu.pipeline_mode<synchronous>, transform_indices = @transform_28, window_bounds = array<i64: 512, 256>}, {pipeline_mode = #tpu.pipeline_mode<synchronous>, transform_indices = @transform_29, window_bounds = array<i64: 1, 256>}, {pipeline_mode = #tpu.pipeline_mode<synchronous>, transform_indices = @transform_30, window_bounds = array<i64: 256, 128>}, {pipeline_mode = #tpu.pipeline_mode<synchronous>, transform_indices = @transform_31, window_bounds = array<i64: 1, 128>}, {pipeline_mode = #tpu.pipeline_mode<synchronous>, transform_indices = @transform_32, window_bounds = array<i64: 128, 128>}, {pipeline_mode = #tpu.pipeline_mode<synchronous>, transform_indices = @transform_33, window_bounds = array<i64: 1, 128>}, {pipeline_mode = #tpu.pipeline_mode<synchronous>, transform_indices = @transform_34, window_bounds = array<i64: 16, 128>}]} {
    %c0 = arith.constant 0 : index
    %c0_0 = arith.constant 0 : index
    %0 = vector.load %arg3[%c0, %c0_0] : memref<48x256xbf16, #tpu.memory_space<vmem>>, vector<48x256xbf16>
    %c0_1 = arith.constant 0 : index
    %c0_2 = arith.constant 0 : index
    %1 = vector.load %arg4[%c0_1, %c0_2] : memref<1x256xf32, #tpu.memory_space<vmem>>, vector<1x256xf32>
    %c0_3 = arith.constant 0 : index
    %c0_4 = arith.constant 0 : index
    %2 = vector.load %arg5[%c0_3, %c0_4] : memref<256x256xbf16, #tpu.memory_space<vmem>>, vector<256x256xbf16>
    %c0_5 = arith.constant 0 : index
    %c0_6 = arith.constant 0 : index
    %3 = vector.load %arg6[%c0_5, %c0_6] : memref<1x256xf32, #tpu.memory_space<vmem>>, vector<1x256xf32>
    %c0_7 = arith.constant 0 : index
    %c0_8 = arith.constant 0 : index
    %4 = vector.load %arg7[%c0_7, %c0_8] : memref<256x3xbf16, #tpu.memory_space<vmem>>, vector<256x3xbf16>
    %c0_9 = arith.constant 0 : index
    %c0_10 = arith.constant 0 : index
    %5 = vector.load %arg8[%c0_9, %c0_10] : memref<1x3xf32, #tpu.memory_space<vmem>>, vector<1x3xf32>
    %c0_11 = arith.constant 0 : index
    %c0_12 = arith.constant 0 : index
    %6 = vector.load %arg9[%c0_11, %c0_12] : memref<256x32xbf16, #tpu.memory_space<vmem>>, vector<256x32xbf16>
    %c0_13 = arith.constant 0 : index
    %c0_14 = arith.constant 0 : index
    %7 = vector.load %arg10[%c0_13, %c0_14] : memref<1x32xf32, #tpu.memory_space<vmem>>, vector<1x32xf32>
    %c0_15 = arith.constant 0 : index
    %c0_16 = arith.constant 0 : index
    %8 = vector.load %arg11[%c0_15, %c0_16] : memref<48x256xbf16, #tpu.memory_space<vmem>>, vector<48x256xbf16>
    %c0_17 = arith.constant 0 : index
    %c0_18 = arith.constant 0 : index
    %9 = vector.load %arg12[%c0_17, %c0_18] : memref<3x256xbf16, #tpu.memory_space<vmem>>, vector<3x256xbf16>
    %c0_19 = arith.constant 0 : index
    %c0_20 = arith.constant 0 : index
    %10 = vector.load %arg13[%c0_19, %c0_20] : memref<32x256xbf16, #tpu.memory_space<vmem>>, vector<32x256xbf16>
    %c0_21 = arith.constant 0 : index
    %c0_22 = arith.constant 0 : index
    %11 = vector.load %arg14[%c0_21, %c0_22] : memref<1x256xf32, #tpu.memory_space<vmem>>, vector<1x256xf32>
    %c0_23 = arith.constant 0 : index
    %c0_24 = arith.constant 0 : index
    %12 = vector.load %arg15[%c0_23, %c0_24] : memref<256x256xbf16, #tpu.memory_space<vmem>>, vector<256x256xbf16>
    %c0_25 = arith.constant 0 : index
    %c0_26 = arith.constant 0 : index
    %13 = vector.load %arg16[%c0_25, %c0_26] : memref<1x256xf32, #tpu.memory_space<vmem>>, vector<1x256xf32>
    %c0_27 = arith.constant 0 : index
    %c0_28 = arith.constant 0 : index
    %14 = vector.load %arg17[%c0_27, %c0_28] : memref<256x256xbf16, #tpu.memory_space<vmem>>, vector<256x256xbf16>
    %c0_29 = arith.constant 0 : index
    %c0_30 = arith.constant 0 : index
    %15 = vector.load %arg18[%c0_29, %c0_30] : memref<1x256xf32, #tpu.memory_space<vmem>>, vector<1x256xf32>
    %c0_31 = arith.constant 0 : index
    %c0_32 = arith.constant 0 : index
    %16 = vector.load %arg19[%c0_31, %c0_32] : memref<256x128xbf16, #tpu.memory_space<vmem>>, vector<256x128xbf16>
    %c0_33 = arith.constant 0 : index
    %c0_34 = arith.constant 0 : index
    %17 = vector.load %arg20[%c0_33, %c0_34] : memref<64x256xbf16, #tpu.memory_space<vmem>>, vector<64x256xbf16>
    %c0_35 = arith.constant 0 : index
    %c0_36 = arith.constant 0 : index
    %18 = vector.load %arg21[%c0_35, %c0_36] : memref<1x256xf32, #tpu.memory_space<vmem>>, vector<1x256xf32>
    %c0_37 = arith.constant 0 : index
    %c0_38 = arith.constant 0 : index
    %19 = vector.load %arg22[%c0_37, %c0_38] : memref<256x256xbf16, #tpu.memory_space<vmem>>, vector<256x256xbf16>
    %c0_39 = arith.constant 0 : index
    %c0_40 = arith.constant 0 : index
    %20 = vector.load %arg23[%c0_39, %c0_40] : memref<1x256xf32, #tpu.memory_space<vmem>>, vector<1x256xf32>
    %c0_41 = arith.constant 0 : index
    %c0_42 = arith.constant 0 : index
    %21 = vector.load %arg24[%c0_41, %c0_42] : memref<256x256xbf16, #tpu.memory_space<vmem>>, vector<256x256xbf16>
    %c0_43 = arith.constant 0 : index
    %c0_44 = arith.constant 0 : index
    %22 = vector.load %arg25[%c0_43, %c0_44] : memref<1x256xf32, #tpu.memory_space<vmem>>, vector<1x256xf32>
    %c0_45 = arith.constant 0 : index
    %c0_46 = arith.constant 0 : index
    %23 = vector.load %arg26[%c0_45, %c0_46] : memref<256x128xbf16, #tpu.memory_space<vmem>>, vector<256x128xbf16>
    %c0_47 = arith.constant 0 : index
    %c0_48 = arith.constant 0 : index
    %24 = vector.load %arg27[%c0_47, %c0_48] : memref<64x512xbf16, #tpu.memory_space<vmem>>, vector<64x512xbf16>
    %c0_49 = arith.constant 0 : index
    %c0_50 = arith.constant 0 : index
    %25 = vector.load %arg28[%c0_49, %c0_50] : memref<1x512xf32, #tpu.memory_space<vmem>>, vector<1x512xf32>
    %c0_51 = arith.constant 0 : index
    %c0_52 = arith.constant 0 : index
    %26 = vector.load %arg29[%c0_51, %c0_52] : memref<512x256xbf16, #tpu.memory_space<vmem>>, vector<512x256xbf16>
    %c0_53 = arith.constant 0 : index
    %c0_54 = arith.constant 0 : index
    %27 = vector.load %arg30[%c0_53, %c0_54] : memref<1x256xf32, #tpu.memory_space<vmem>>, vector<1x256xf32>
    %c0_55 = arith.constant 0 : index
    %c0_56 = arith.constant 0 : index
    %28 = vector.load %arg31[%c0_55, %c0_56] : memref<256x128xbf16, #tpu.memory_space<vmem>>, vector<256x128xbf16>
    %c0_57 = arith.constant 0 : index
    %c0_58 = arith.constant 0 : index
    %29 = vector.load %arg32[%c0_57, %c0_58] : memref<1x128xf32, #tpu.memory_space<vmem>>, vector<1x128xf32>
    %c0_59 = arith.constant 0 : index
    %c0_60 = arith.constant 0 : index
    %30 = vector.load %arg33[%c0_59, %c0_60] : memref<128x128xbf16, #tpu.memory_space<vmem>>, vector<128x128xbf16>
    %c0_61 = arith.constant 0 : index
    %c0_62 = arith.constant 0 : index
    %31 = vector.load %arg34[%c0_61, %c0_62] : memref<1x128xf32, #tpu.memory_space<vmem>>, vector<1x128xf32>
    %c0_63 = arith.constant 0 : index
    %c0_64 = arith.constant 0 : index
    %32 = vector.load %arg1[%c0_63, %c0_64] : memref<16x48xf32, #tpu.memory_space<vmem>>, vector<16x48xf32>
    %c0_65 = arith.constant 0 : index
    %c0_66 = arith.constant 0 : index
    %33 = vector.load %arg2[%c0_65, %c0_66] : memref<16x64xf32, #tpu.memory_space<vmem>>, vector<16x64xf32>
    %34 = arith.truncf %32 : vector<16x48xf32> to vector<16x48xbf16>
    %cst = arith.constant dense<0.000000e+00> : vector<16x256xf32>
    %35 = tpu.matmul %34, %0, %cst {dimension_numbers = #tpu.dot_dimension_numbers<[1], [0], [0], [1], [0, 0, 1, 1], [], []>} : vector<16x48xbf16>, vector<48x256xbf16>, vector<16x256xf32> -> vector<16x256xf32>
    %36 = vector.broadcast %1 : vector<1x256xf32> to vector<16x256xf32>
    %37 = arith.addf %35, %36 : vector<16x256xf32>
    %cst_67 = arith.constant 0.000000e+00 : f32
    %38 = vector.broadcast %cst_67 : f32 to vector<16x256xf32>
    %39 = arith.cmpf ogt, %37, %38 : vector<16x256xf32>
    %cst_68 = arith.constant 0.000000e+00 : f32
    %40 = vector.broadcast %cst_68 : f32 to vector<16x256xf32>
    %41 = arith.minimumf %37, %40 : vector<16x256xf32>
    %42 = math.exp %41 : vector<16x256xf32>
    %cst_69 = arith.constant 1.000000e+00 : f32
    %43 = vector.broadcast %cst_69 : f32 to vector<16x256xf32>
    %44 = arith.subf %42, %43 : vector<16x256xf32>
    %45 = arith.select %39, %37, %44 : vector<16x256xi1>, vector<16x256xf32>
    %46 = arith.truncf %45 : vector<16x256xf32> to vector<16x256xbf16>
    %cst_70 = arith.constant dense<0.000000e+00> : vector<16x256xf32>
    %47 = tpu.matmul %46, %2, %cst_70 {dimension_numbers = #tpu.dot_dimension_numbers<[1], [0], [0], [1], [0, 0, 1, 1], [], []>} : vector<16x256xbf16>, vector<256x256xbf16>, vector<16x256xf32> -> vector<16x256xf32>
    %48 = vector.broadcast %3 : vector<1x256xf32> to vector<16x256xf32>
    %49 = arith.addf %47, %48 : vector<16x256xf32>
    %cst_71 = arith.constant 0.000000e+00 : f32
    %50 = vector.broadcast %cst_71 : f32 to vector<16x256xf32>
    %51 = arith.cmpf ogt, %49, %50 : vector<16x256xf32>
    %cst_72 = arith.constant 0.000000e+00 : f32
    %52 = vector.broadcast %cst_72 : f32 to vector<16x256xf32>
    %53 = arith.minimumf %49, %52 : vector<16x256xf32>
    %54 = math.exp %53 : vector<16x256xf32>
    %cst_73 = arith.constant 1.000000e+00 : f32
    %55 = vector.broadcast %cst_73 : f32 to vector<16x256xf32>
    %56 = arith.subf %54, %55 : vector<16x256xf32>
    %57 = arith.select %51, %49, %56 : vector<16x256xi1>, vector<16x256xf32>
    %58 = arith.truncf %57 : vector<16x256xf32> to vector<16x256xbf16>
    %cst_74 = arith.constant dense<0.000000e+00> : vector<16x3xf32>
    %59 = tpu.matmul %58, %4, %cst_74 {dimension_numbers = #tpu.dot_dimension_numbers<[1], [0], [0], [1], [0, 0, 1, 1], [], []>} : vector<16x256xbf16>, vector<256x3xbf16>, vector<16x3xf32> -> vector<16x3xf32>
    %60 = vector.broadcast %5 : vector<1x3xf32> to vector<16x3xf32>
    %61 = arith.addf %59, %60 : vector<16x3xf32>
    %62 = arith.truncf %57 : vector<16x256xf32> to vector<16x256xbf16>
    %cst_75 = arith.constant dense<0.000000e+00> : vector<16x32xf32>
    %63 = tpu.matmul %62, %6, %cst_75 {dimension_numbers = #tpu.dot_dimension_numbers<[1], [0], [0], [1], [0, 0, 1, 1], [], []>} : vector<16x256xbf16>, vector<256x32xbf16>, vector<16x32xf32> -> vector<16x32xf32>
    %64 = vector.broadcast %7 : vector<1x32xf32> to vector<16x32xf32>
    %65 = arith.addf %63, %64 : vector<16x32xf32>
    %66 = arith.mulf %65, %65 : vector<16x32xf32>
    %cst_76 = arith.constant dense<0.000000e+00> : vector<16xf32>
    %67 = vector.multi_reduction <add>, %66, %cst_76 [1] : vector<16x32xf32> to vector<16xf32>
    %68 = vector.shape_cast %67 : vector<16xf32> to vector<16x1xf32>
    %cst_77 = arith.constant 1.000000e-24 : f32
    %69 = vector.broadcast %cst_77 : f32 to vector<16x1xf32>
    %70 = arith.maximumf %68, %69 : vector<16x1xf32>
    %71 = math.rsqrt %70 : vector<16x1xf32>
    %72 = vector.broadcast %71 : vector<16x1xf32> to vector<16x32xf32>
    %73 = arith.mulf %65, %72 : vector<16x32xf32>
    %74 = arith.truncf %32 : vector<16x48xf32> to vector<16x48xbf16>
    %cst_78 = arith.constant dense<0.000000e+00> : vector<16x256xf32>
    %75 = tpu.matmul %74, %8, %cst_78 {dimension_numbers = #tpu.dot_dimension_numbers<[1], [0], [0], [1], [0, 0, 1, 1], [], []>} : vector<16x48xbf16>, vector<48x256xbf16>, vector<16x256xf32> -> vector<16x256xf32>
    %76 = arith.truncf %61 : vector<16x3xf32> to vector<16x3xbf16>
    %cst_79 = arith.constant dense<0.000000e+00> : vector<16x256xf32>
    %77 = tpu.matmul %76, %9, %cst_79 {dimension_numbers = #tpu.dot_dimension_numbers<[1], [0], [0], [1], [0, 0, 1, 1], [], []>} : vector<16x3xbf16>, vector<3x256xbf16>, vector<16x256xf32> -> vector<16x256xf32>
    %78 = arith.addf %75, %77 : vector<16x256xf32>
    %79 = arith.truncf %73 : vector<16x32xf32> to vector<16x32xbf16>
    %cst_80 = arith.constant dense<0.000000e+00> : vector<16x256xf32>
    %80 = tpu.matmul %79, %10, %cst_80 {dimension_numbers = #tpu.dot_dimension_numbers<[1], [0], [0], [1], [0, 0, 1, 1], [], []>} : vector<16x32xbf16>, vector<32x256xbf16>, vector<16x256xf32> -> vector<16x256xf32>
    %81 = arith.addf %78, %80 : vector<16x256xf32>
    %82 = vector.broadcast %11 : vector<1x256xf32> to vector<16x256xf32>
    %83 = arith.addf %81, %82 : vector<16x256xf32>
    %cst_81 = arith.constant 0.000000e+00 : f32
    %84 = vector.broadcast %cst_81 : f32 to vector<16x256xf32>
    %85 = arith.cmpf ogt, %83, %84 : vector<16x256xf32>
    %cst_82 = arith.constant 0.000000e+00 : f32
    %86 = vector.broadcast %cst_82 : f32 to vector<16x256xf32>
    %87 = arith.minimumf %83, %86 : vector<16x256xf32>
    %88 = math.exp %87 : vector<16x256xf32>
    %cst_83 = arith.constant 1.000000e+00 : f32
    %89 = vector.broadcast %cst_83 : f32 to vector<16x256xf32>
    %90 = arith.subf %88, %89 : vector<16x256xf32>
    %91 = arith.select %85, %83, %90 : vector<16x256xi1>, vector<16x256xf32>
    %92 = arith.truncf %91 : vector<16x256xf32> to vector<16x256xbf16>
    %cst_84 = arith.constant dense<0.000000e+00> : vector<16x256xf32>
    %93 = tpu.matmul %92, %12, %cst_84 {dimension_numbers = #tpu.dot_dimension_numbers<[1], [0], [0], [1], [0, 0, 1, 1], [], []>} : vector<16x256xbf16>, vector<256x256xbf16>, vector<16x256xf32> -> vector<16x256xf32>
    %94 = vector.broadcast %13 : vector<1x256xf32> to vector<16x256xf32>
    %95 = arith.addf %93, %94 : vector<16x256xf32>
    %cst_85 = arith.constant 0.000000e+00 : f32
    %96 = vector.broadcast %cst_85 : f32 to vector<16x256xf32>
    %97 = arith.cmpf ogt, %95, %96 : vector<16x256xf32>
    %cst_86 = arith.constant 0.000000e+00 : f32
    %98 = vector.broadcast %cst_86 : f32 to vector<16x256xf32>
    %99 = arith.minimumf %95, %98 : vector<16x256xf32>
    %100 = math.exp %99 : vector<16x256xf32>
    %cst_87 = arith.constant 1.000000e+00 : f32
    %101 = vector.broadcast %cst_87 : f32 to vector<16x256xf32>
    %102 = arith.subf %100, %101 : vector<16x256xf32>
    %103 = arith.select %97, %95, %102 : vector<16x256xi1>, vector<16x256xf32>
    %104 = arith.truncf %103 : vector<16x256xf32> to vector<16x256xbf16>
    %cst_88 = arith.constant dense<0.000000e+00> : vector<16x256xf32>
    %105 = tpu.matmul %104, %14, %cst_88 {dimension_numbers = #tpu.dot_dimension_numbers<[1], [0], [0], [1], [0, 0, 1, 1], [], []>} : vector<16x256xbf16>, vector<256x256xbf16>, vector<16x256xf32> -> vector<16x256xf32>
    %106 = vector.broadcast %15 : vector<1x256xf32> to vector<16x256xf32>
    %107 = arith.addf %105, %106 : vector<16x256xf32>
    %cst_89 = arith.constant 0.000000e+00 : f32
    %108 = vector.broadcast %cst_89 : f32 to vector<16x256xf32>
    %109 = arith.cmpf ogt, %107, %108 : vector<16x256xf32>
    %cst_90 = arith.constant 0.000000e+00 : f32
    %110 = vector.broadcast %cst_90 : f32 to vector<16x256xf32>
    %111 = arith.minimumf %107, %110 : vector<16x256xf32>
    %112 = math.exp %111 : vector<16x256xf32>
    %cst_91 = arith.constant 1.000000e+00 : f32
    %113 = vector.broadcast %cst_91 : f32 to vector<16x256xf32>
    %114 = arith.subf %112, %113 : vector<16x256xf32>
    %115 = arith.select %109, %107, %114 : vector<16x256xi1>, vector<16x256xf32>
    %116 = arith.truncf %33 : vector<16x64xf32> to vector<16x64xbf16>
    %cst_92 = arith.constant dense<0.000000e+00> : vector<16x256xf32>
    %117 = tpu.matmul %116, %17, %cst_92 {dimension_numbers = #tpu.dot_dimension_numbers<[1], [0], [0], [1], [0, 0, 1, 1], [], []>} : vector<16x64xbf16>, vector<64x256xbf16>, vector<16x256xf32> -> vector<16x256xf32>
    %118 = vector.broadcast %18 : vector<1x256xf32> to vector<16x256xf32>
    %119 = arith.addf %117, %118 : vector<16x256xf32>
    %cst_93 = arith.constant 0.000000e+00 : f32
    %120 = vector.broadcast %cst_93 : f32 to vector<16x256xf32>
    %121 = arith.cmpf ogt, %119, %120 : vector<16x256xf32>
    %cst_94 = arith.constant 0.000000e+00 : f32
    %122 = vector.broadcast %cst_94 : f32 to vector<16x256xf32>
    %123 = arith.minimumf %119, %122 : vector<16x256xf32>
    %124 = math.exp %123 : vector<16x256xf32>
    %cst_95 = arith.constant 1.000000e+00 : f32
    %125 = vector.broadcast %cst_95 : f32 to vector<16x256xf32>
    %126 = arith.subf %124, %125 : vector<16x256xf32>
    %127 = arith.select %121, %119, %126 : vector<16x256xi1>, vector<16x256xf32>
    %128 = arith.truncf %127 : vector<16x256xf32> to vector<16x256xbf16>
    %cst_96 = arith.constant dense<0.000000e+00> : vector<16x256xf32>
    %129 = tpu.matmul %128, %19, %cst_96 {dimension_numbers = #tpu.dot_dimension_numbers<[1], [0], [0], [1], [0, 0, 1, 1], [], []>} : vector<16x256xbf16>, vector<256x256xbf16>, vector<16x256xf32> -> vector<16x256xf32>
    %130 = vector.broadcast %20 : vector<1x256xf32> to vector<16x256xf32>
    %131 = arith.addf %129, %130 : vector<16x256xf32>
    %cst_97 = arith.constant 0.000000e+00 : f32
    %132 = vector.broadcast %cst_97 : f32 to vector<16x256xf32>
    %133 = arith.cmpf ogt, %131, %132 : vector<16x256xf32>
    %cst_98 = arith.constant 0.000000e+00 : f32
    %134 = vector.broadcast %cst_98 : f32 to vector<16x256xf32>
    %135 = arith.minimumf %131, %134 : vector<16x256xf32>
    %136 = math.exp %135 : vector<16x256xf32>
    %cst_99 = arith.constant 1.000000e+00 : f32
    %137 = vector.broadcast %cst_99 : f32 to vector<16x256xf32>
    %138 = arith.subf %136, %137 : vector<16x256xf32>
    %139 = arith.select %133, %131, %138 : vector<16x256xi1>, vector<16x256xf32>
    %140 = arith.truncf %139 : vector<16x256xf32> to vector<16x256xbf16>
    %cst_100 = arith.constant dense<0.000000e+00> : vector<16x256xf32>
    %141 = tpu.matmul %140, %21, %cst_100 {dimension_numbers = #tpu.dot_dimension_numbers<[1], [0], [0], [1], [0, 0, 1, 1], [], []>} : vector<16x256xbf16>, vector<256x256xbf16>, vector<16x256xf32> -> vector<16x256xf32>
    %142 = vector.broadcast %22 : vector<1x256xf32> to vector<16x256xf32>
    %143 = arith.addf %141, %142 : vector<16x256xf32>
    %cst_101 = arith.constant 0.000000e+00 : f32
    %144 = vector.broadcast %cst_101 : f32 to vector<16x256xf32>
    %145 = arith.cmpf ogt, %143, %144 : vector<16x256xf32>
    %cst_102 = arith.constant 0.000000e+00 : f32
    %146 = vector.broadcast %cst_102 : f32 to vector<16x256xf32>
    %147 = arith.minimumf %143, %146 : vector<16x256xf32>
    %148 = math.exp %147 : vector<16x256xf32>
    %cst_103 = arith.constant 1.000000e+00 : f32
    %149 = vector.broadcast %cst_103 : f32 to vector<16x256xf32>
    %150 = arith.subf %148, %149 : vector<16x256xf32>
    %151 = arith.select %145, %143, %150 : vector<16x256xi1>, vector<16x256xf32>
    %152 = arith.truncf %33 : vector<16x64xf32> to vector<16x64xbf16>
    %cst_104 = arith.constant dense<0.000000e+00> : vector<16x512xf32>
    %153 = tpu.matmul %152, %24, %cst_104 {dimension_numbers = #tpu.dot_dimension_numbers<[1], [0], [0], [1], [0, 0, 1, 1], [], []>} : vector<16x64xbf16>, vector<64x512xbf16>, vector<16x512xf32> -> vector<16x512xf32>
    %154 = vector.broadcast %25 : vector<1x512xf32> to vector<16x512xf32>
    %155 = arith.addf %153, %154 : vector<16x512xf32>
    %cst_105 = arith.constant 0.000000e+00 : f32
    %156 = vector.broadcast %cst_105 : f32 to vector<16x512xf32>
    %157 = arith.cmpf ogt, %155, %156 : vector<16x512xf32>
    %cst_106 = arith.constant 0.000000e+00 : f32
    %158 = vector.broadcast %cst_106 : f32 to vector<16x512xf32>
    %159 = arith.minimumf %155, %158 : vector<16x512xf32>
    %160 = math.exp %159 : vector<16x512xf32>
    %cst_107 = arith.constant 1.000000e+00 : f32
    %161 = vector.broadcast %cst_107 : f32 to vector<16x512xf32>
    %162 = arith.subf %160, %161 : vector<16x512xf32>
    %163 = arith.select %157, %155, %162 : vector<16x512xi1>, vector<16x512xf32>
    %164 = arith.truncf %163 : vector<16x512xf32> to vector<16x512xbf16>
    %cst_108 = arith.constant dense<0.000000e+00> : vector<16x256xf32>
    %165 = tpu.matmul %164, %26, %cst_108 {dimension_numbers = #tpu.dot_dimension_numbers<[1], [0], [0], [1], [0, 0, 1, 1], [], []>} : vector<16x512xbf16>, vector<512x256xbf16>, vector<16x256xf32> -> vector<16x256xf32>
    %166 = vector.broadcast %27 : vector<1x256xf32> to vector<16x256xf32>
    %167 = arith.addf %165, %166 : vector<16x256xf32>
    %cst_109 = arith.constant 0.000000e+00 : f32
    %168 = vector.broadcast %cst_109 : f32 to vector<16x256xf32>
    %169 = arith.cmpf ogt, %167, %168 : vector<16x256xf32>
    %cst_110 = arith.constant 0.000000e+00 : f32
    %170 = vector.broadcast %cst_110 : f32 to vector<16x256xf32>
    %171 = arith.minimumf %167, %170 : vector<16x256xf32>
    %172 = math.exp %171 : vector<16x256xf32>
    %cst_111 = arith.constant 1.000000e+00 : f32
    %173 = vector.broadcast %cst_111 : f32 to vector<16x256xf32>
    %174 = arith.subf %172, %173 : vector<16x256xf32>
    %175 = arith.select %169, %167, %174 : vector<16x256xi1>, vector<16x256xf32>
    %176 = arith.truncf %175 : vector<16x256xf32> to vector<16x256xbf16>
    %cst_112 = arith.constant dense<0.000000e+00> : vector<16x128xf32>
    %177 = tpu.matmul %176, %28, %cst_112 {dimension_numbers = #tpu.dot_dimension_numbers<[1], [0], [0], [1], [0, 0, 1, 1], [], []>} : vector<16x256xbf16>, vector<256x128xbf16>, vector<16x128xf32> -> vector<16x128xf32>
    %178 = vector.broadcast %29 : vector<1x128xf32> to vector<16x128xf32>
    %179 = arith.addf %177, %178 : vector<16x128xf32>
    %cst_113 = arith.constant 0.000000e+00 : f32
    %180 = vector.broadcast %cst_113 : f32 to vector<16x128xf32>
    %181 = arith.cmpf ogt, %179, %180 : vector<16x128xf32>
    %cst_114 = arith.constant 0.000000e+00 : f32
    %182 = vector.broadcast %cst_114 : f32 to vector<16x128xf32>
    %183 = arith.minimumf %179, %182 : vector<16x128xf32>
    %184 = math.exp %183 : vector<16x128xf32>
    %cst_115 = arith.constant 1.000000e+00 : f32
    %185 = vector.broadcast %cst_115 : f32 to vector<16x128xf32>
    %186 = arith.subf %184, %185 : vector<16x128xf32>
    %187 = arith.select %181, %179, %186 : vector<16x128xi1>, vector<16x128xf32>
    %188 = arith.truncf %115 : vector<16x256xf32> to vector<16x256xbf16>
    %cst_116 = arith.constant dense<0.000000e+00> : vector<16x128xf32>
    %189 = tpu.matmul %188, %16, %cst_116 {dimension_numbers = #tpu.dot_dimension_numbers<[1], [0], [0], [1], [0, 0, 1, 1], [], []>} : vector<16x256xbf16>, vector<256x128xbf16>, vector<16x128xf32> -> vector<16x128xf32>
    %190 = arith.truncf %151 : vector<16x256xf32> to vector<16x256xbf16>
    %cst_117 = arith.constant dense<0.000000e+00> : vector<16x128xf32>
    %191 = tpu.matmul %190, %23, %cst_117 {dimension_numbers = #tpu.dot_dimension_numbers<[1], [0], [0], [1], [0, 0, 1, 1], [], []>} : vector<16x256xbf16>, vector<256x128xbf16>, vector<16x128xf32> -> vector<16x128xf32>
    %192 = arith.addf %189, %191 : vector<16x128xf32>
    %193 = arith.truncf %187 : vector<16x128xf32> to vector<16x128xbf16>
    %cst_118 = arith.constant dense<0.000000e+00> : vector<16x128xf32>
    %194 = tpu.matmul %193, %30, %cst_118 {dimension_numbers = #tpu.dot_dimension_numbers<[1], [0], [0], [1], [0, 0, 1, 1], [], []>} : vector<16x128xbf16>, vector<128x128xbf16>, vector<16x128xf32> -> vector<16x128xf32>
    %195 = arith.addf %192, %194 : vector<16x128xf32>
    %196 = vector.broadcast %31 : vector<1x128xf32> to vector<16x128xf32>
    %197 = arith.addf %195, %196 : vector<16x128xf32>
    %c0_119 = arith.constant 0 : index
    %c0_120 = arith.constant 0 : index
    %198 = vector.load %arg35[%c0_119, %c0_120] : memref<16x128xf32, #tpu.memory_space<vmem>>, vector<16x128xf32>
    tpu.vector_store %arg35[%c0_119, %c0_120], %197 {strides = array<i32>} : memref<16x128xf32, #tpu.memory_space<vmem>>, vector<16x128xf32>,
    return
  }
  func.func @transform_0(%arg0: i32) -> (i32, i32) {
    %c0_i32 = arith.constant 0 : i32
    %c0_i32_0 = arith.constant 0 : i32
    %c0_i32_1 = arith.constant 0 : i32
    return %c0_i32, %c0_i32_0 : i32, i32
  }
  func.func @transform_1(%arg0: i32) -> (i32, i32) {
    %c0_i32 = arith.constant 0 : i32
    %c0_i32_0 = arith.constant 0 : i32
    %c0_i32_1 = arith.constant 0 : i32
    return %c0_i32, %c0_i32_0 : i32, i32
  }
  func.func @transform_2(%arg0: i32) -> (i32, i32) {
    %c0_i32 = arith.constant 0 : i32
    %c0_i32_0 = arith.constant 0 : i32
    %c0_i32_1 = arith.constant 0 : i32
    return %c0_i32, %c0_i32_0 : i32, i32
  }
  func.func @transform_3(%arg0: i32) -> (i32, i32) {
    %c0_i32 = arith.constant 0 : i32
    %c0_i32_0 = arith.constant 0 : i32
    %c0_i32_1 = arith.constant 0 : i32
    return %c0_i32, %c0_i32_0 : i32, i32
  }
  func.func @transform_4(%arg0: i32) -> (i32, i32) {
    %c0_i32 = arith.constant 0 : i32
    %c0_i32_0 = arith.constant 0 : i32
    %c0_i32_1 = arith.constant 0 : i32
    return %c0_i32, %c0_i32_0 : i32, i32
  }
  func.func @transform_5(%arg0: i32) -> (i32, i32) {
    %c0_i32 = arith.constant 0 : i32
    %c0_i32_0 = arith.constant 0 : i32
    %c0_i32_1 = arith.constant 0 : i32
    return %c0_i32, %c0_i32_0 : i32, i32
  }
  func.func @transform_6(%arg0: i32) -> (i32, i32) {
    %c0_i32 = arith.constant 0 : i32
    %c0_i32_0 = arith.constant 0 : i32
    %c0_i32_1 = arith.constant 0 : i32
    return %c0_i32, %c0_i32_0 : i32, i32
  }
  func.func @transform_7(%arg0: i32) -> (i32, i32) {
    %c0_i32 = arith.constant 0 : i32
    %c0_i32_0 = arith.constant 0 : i32
    %c0_i32_1 = arith.constant 0 : i32
    return %c0_i32, %c0_i32_0 : i32, i32
  }
  func.func @transform_8(%arg0: i32) -> (i32, i32) {
    %c0_i32 = arith.constant 0 : i32
    %c0_i32_0 = arith.constant 0 : i32
    %c0_i32_1 = arith.constant 0 : i32
    return %c0_i32, %c0_i32_0 : i32, i32
  }
  func.func @transform_9(%arg0: i32) -> (i32, i32) {
    %c0_i32 = arith.constant 0 : i32
    %c0_i32_0 = arith.constant 0 : i32
    %c0_i32_1 = arith.constant 0 : i32
    return %c0_i32, %c0_i32_0 : i32, i32
  }
  func.func @transform_10(%arg0: i32) -> (i32, i32) {
    %c0_i32 = arith.constant 0 : i32
    %c0_i32_0 = arith.constant 0 : i32
    %c0_i32_1 = arith.constant 0 : i32
    return %c0_i32, %c0_i32_0 : i32, i32
  }
  func.func @transform_11(%arg0: i32) -> (i32, i32) {
    %c0_i32 = arith.constant 0 : i32
    %c0_i32_0 = arith.constant 0 : i32
    %c0_i32_1 = arith.constant 0 : i32
    return %c0_i32, %c0_i32_0 : i32, i32
  }
  func.func @transform_12(%arg0: i32) -> (i32, i32) {
    %c0_i32 = arith.constant 0 : i32
    %c0_i32_0 = arith.constant 0 : i32
    %c0_i32_1 = arith.constant 0 : i32
    return %c0_i32, %c0_i32_0 : i32, i32
  }
  func.func @transform_13(%arg0: i32) -> (i32, i32) {
    %c0_i32 = arith.constant 0 : i32
    %c0_i32_0 = arith.constant 0 : i32
    %c0_i32_1 = arith.constant 0 : i32
    return %c0_i32, %c0_i32_0 : i32, i32
  }
  func.func @transform_14(%arg0: i32) -> (i32, i32) {
    %c0_i32 = arith.constant 0 : i32
    %c0_i32_0 = arith.constant 0 : i32
    %c0_i32_1 = arith.constant 0 : i32
    return %c0_i32, %c0_i32_0 : i32, i32
  }
  func.func @transform_15(%arg0: i32) -> (i32, i32) {
    %c0_i32 = arith.constant 0 : i32
    %c0_i32_0 = arith.constant 0 : i32
    %c0_i32_1 = arith.constant 0 : i32
    return %c0_i32, %c0_i32_0 : i32, i32
  }
  func.func @transform_16(%arg0: i32) -> (i32, i32) {
    %c0_i32 = arith.constant 0 : i32
    %c0_i32_0 = arith.constant 0 : i32
    %c0_i32_1 = arith.constant 0 : i32
    return %c0_i32, %c0_i32_0 : i32, i32
  }
  func.func @transform_17(%arg0: i32) -> (i32, i32) {
    %c0_i32 = arith.constant 0 : i32
    %c0_i32_0 = arith.constant 0 : i32
    %c0_i32_1 = arith.constant 0 : i32
    return %c0_i32, %c0_i32_0 : i32, i32
  }
  func.func @transform_18(%arg0: i32) -> (i32, i32) {
    %c0_i32 = arith.constant 0 : i32
    %c0_i32_0 = arith.constant 0 : i32
    %c0_i32_1 = arith.constant 0 : i32
    return %c0_i32, %c0_i32_0 : i32, i32
  }
  func.func @transform_19(%arg0: i32) -> (i32, i32) {
    %c0_i32 = arith.constant 0 : i32
    %c0_i32_0 = arith.constant 0 : i32
    %c0_i32_1 = arith.constant 0 : i32
    return %c0_i32, %c0_i32_0 : i32, i32
  }
  func.func @transform_20(%arg0: i32) -> (i32, i32) {
    %c0_i32 = arith.constant 0 : i32
    %c0_i32_0 = arith.constant 0 : i32
    %c0_i32_1 = arith.constant 0 : i32
    return %c0_i32, %c0_i32_0 : i32, i32
  }
  func.func @transform_21(%arg0: i32) -> (i32, i32) {
    %c0_i32 = arith.constant 0 : i32
    %c0_i32_0 = arith.constant 0 : i32
    %c0_i32_1 = arith.constant 0 : i32
    return %c0_i32, %c0_i32_0 : i32, i32
  }
  func.func @transform_22(%arg0: i32) -> (i32, i32) {
    %c0_i32 = arith.constant 0 : i32
    %c0_i32_0 = arith.constant 0 : i32
    %c0_i32_1 = arith.constant 0 : i32
    return %c0_i32, %c0_i32_0 : i32, i32
  }
  func.func @transform_23(%arg0: i32) -> (i32, i32) {
    %c0_i32 = arith.constant 0 : i32
    %c0_i32_0 = arith.constant 0 : i32
    %c0_i32_1 = arith.constant 0 : i32
    return %c0_i32, %c0_i32_0 : i32, i32
  }
  func.func @transform_24(%arg0: i32) -> (i32, i32) {
    %c0_i32 = arith.constant 0 : i32
    %c0_i32_0 = arith.constant 0 : i32
    %c0_i32_1 = arith.constant 0 : i32
    return %c0_i32, %c0_i32_0 : i32, i32
  }
  func.func @transform_25(%arg0: i32) -> (i32, i32) {
    %c0_i32 = arith.constant 0 : i32
    %c0_i32_0 = arith.constant 0 : i32
    %c0_i32_1 = arith.constant 0 : i32
    return %c0_i32, %c0_i32_0 : i32, i32
  }
  func.func @transform_26(%arg0: i32) -> (i32, i32) {
    %c0_i32 = arith.constant 0 : i32
    %c0_i32_0 = arith.constant 0 : i32
    %c0_i32_1 = arith.constant 0 : i32
    return %c0_i32, %c0_i32_0 : i32, i32
  }
  func.func @transform_27(%arg0: i32) -> (i32, i32) {
    %c0_i32 = arith.constant 0 : i32
    %c0_i32_0 = arith.constant 0 : i32
    %c0_i32_1 = arith.constant 0 : i32
    return %c0_i32, %c0_i32_0 : i32, i32
  }
  func.func @transform_28(%arg0: i32) -> (i32, i32) {
    %c0_i32 = arith.constant 0 : i32
    %c0_i32_0 = arith.constant 0 : i32
    %c0_i32_1 = arith.constant 0 : i32
    return %c0_i32, %c0_i32_0 : i32, i32
  }
  func.func @transform_29(%arg0: i32) -> (i32, i32) {
    %c0_i32 = arith.constant 0 : i32
    %c0_i32_0 = arith.constant 0 : i32
    %c0_i32_1 = arith.constant 0 : i32
    return %c0_i32, %c0_i32_0 : i32, i32
  }
  func.func @transform_30(%arg0: i32) -> (i32, i32) {
    %c0_i32 = arith.constant 0 : i32
    %c0_i32_0 = arith.constant 0 : i32
    %c0_i32_1 = arith.constant 0 : i32
    return %c0_i32, %c0_i32_0 : i32, i32
  }
  func.func @transform_31(%arg0: i32) -> (i32, i32) {
    %c0_i32 = arith.constant 0 : i32
    %c0_i32_0 = arith.constant 0 : i32
    %c0_i32_1 = arith.constant 0 : i32
    return %c0_i32, %c0_i32_0 : i32, i32
  }
  func.func @transform_32(%arg0: i32) -> (i32, i32) {
    %c0_i32 = arith.constant 0 : i32
    %c0_i32_0 = arith.constant 0 : i32
    %c0_i32_1 = arith.constant 0 : i32
    return %c0_i32, %c0_i32_0 : i32, i32
  }
  func.func @transform_33(%arg0: i32) -> (i32, i32) {
    %c0_i32 = arith.constant 0 : i32
    %c0_i32_0 = arith.constant 0 : i32
    %c0_i32_1 = arith.constant 0 : i32
    return %c0_i32, %c0_i32_0 : i32, i32
  }
  func.func @transform_34(%arg0: i32) -> (i32, i32) {
    %c0_i32 = arith.constant 0 : i32
    %c0_i32_0 = arith.constant 0 : i32
    %c0_i32_1 = arith.constant 0 : i32
    return %c0_i32, %c0_i32_0 : i32, i32
  }
}

</mosaic_0001>

<llo_original>
// kernel: tpu_custom_call.1
$region0: #{tpu_custom_call.1}
  #allocation0 [shape = 'u32[]', space=smem, size = 0x4, offset = 0x4, fixed_abs, tag = 'smem constant byte address 0x4 - core index']
  #allocation1 [shape = 'u32[72,128]{1,0:T(1,128)}', space=vmem, size = 0x9000, scoped, tag = 'internal scratch']
  %s0 = inlined_call_operand.smem [shape: u32[35], index: -1, kind: input, shape index: {}]
  %s1 = sld [smem:[%s0]]
  %s2 = scalar_lea.smem %s0, 1
  %s3 = sld [smem:[%s2]]
  %s4 = scalar_lea.smem %s0, 2
  %s5 = sld [smem:[%s4]]
  %s6 = scalar_lea.smem %s0, 3
  %s7 = sld [smem:[%s6]]
  %s8 = scalar_lea.smem %s0, 4
  %s9 = sld [smem:[%s8]]
  %s10 = scalar_lea.smem %s0, 5
  %s11 = sld [smem:[%s10]]
  %s12 = scalar_lea.smem %s0, 6
  %s13 = sld [smem:[%s12]]
  %s14 = scalar_lea.smem %s0, 7
  %s15 = sld [smem:[%s14]]
  %s16 = scalar_lea.smem %s0, 8
  %s17 = sld [smem:[%s16]]
  %s18 = scalar_lea.smem %s0, 9
  %s19 = sld [smem:[%s18]]
  %s20 = scalar_lea.smem %s0, 10
  %s21 = sld [smem:[%s20]]
  %s22 = scalar_lea.smem %s0, 11
  %s23 = sld [smem:[%s22]]
  %s24 = scalar_lea.smem %s0, 12
  %s25 = sld [smem:[%s24]]
  %s26 = scalar_lea.smem %s0, 13
  %s27 = sld [smem:[%s26]]
  %s28 = scalar_lea.smem %s0, 14
  %s29 = sld [smem:[%s28]]
  %s30 = scalar_lea.smem %s0, 15
  %s31 = sld [smem:[%s30]]
  %s32 = scalar_lea.smem %s0, 16
  %s33 = sld [smem:[%s32]]
  %s34 = scalar_lea.smem %s0, 17
  %s35 = sld [smem:[%s34]]
  %s36 = scalar_lea.smem %s0, 18
  %s37 = sld [smem:[%s36]]
  %s38 = scalar_lea.smem %s0, 19
  %s39 = sld [smem:[%s38]]
  %s40 = scalar_lea.smem %s0, 20
  %s41 = sld [smem:[%s40]]
  %s42 = scalar_lea.smem %s0, 21
  %s43 = sld [smem:[%s42]]
  %s44 = scalar_lea.smem %s0, 22
  %s45 = sld [smem:[%s44]]
  %s46 = scalar_lea.smem %s0, 23
  %s47 = sld [smem:[%s46]]
  %s48 = scalar_lea.smem %s0, 24
  %s49 = sld [smem:[%s48]]
  %s50 = scalar_lea.smem %s0, 25
  %s51 = sld [smem:[%s50]]
  %s52 = scalar_lea.smem %s0, 26
  %s53 = sld [smem:[%s52]]
  %s54 = scalar_lea.smem %s0, 27
  %s55 = sld [smem:[%s54]]
  %s56 = scalar_lea.smem %s0, 28
  %s57 = sld [smem:[%s56]]
  %s58 = scalar_lea.smem %s0, 29
  %s59 = sld [smem:[%s58]]
  %s60 = scalar_lea.smem %s0, 30
  %s61 = sld [smem:[%s60]]
  %s62 = scalar_lea.smem %s0, 31
  %s63 = sld [smem:[%s62]]
  %s64 = scalar_lea.smem %s0, 32
  %s65 = sld [smem:[%s64]]
  %s66 = scalar_lea.smem %s0, 33
  %s67 = sld [smem:[%s66]]
  %s68 = scalar_lea.smem %s0, 34
  %s69 = sld [smem:[%s68]]
  %s70 = sld [smem:[#allocation0]]
  $region226: #{tpu_custom_call.1} parent=0
    _
  %s72 = ssub.s32 1, %s70
  %s73 = scalar_select 0, %s72, %s70
  $region1: #{tpu_custom_call.1} parent=0
    #allocation2 [shape = 'u8[8192]{0}', space=vmem, size = 0x2000, scoped, tag = 'input window, operand 0, single buffered']
    #allocation3 [shape = 's32[1]{0}', space=sflag, size = 0x4, scoped, tag = 'scoped memory for tpu_custom_call.1']
    #allocation4 [shape = 's32[1]{0}', space=sflag, size = 0x4, scoped, tag = 'scoped memory for tpu_custom_call.1']
    #allocation5 [shape = 'u8[8192]{0}', space=vmem, size = 0x2000, scoped, tag = 'input window, operand 1, single buffered']
    #allocation6 [shape = 's32[1]{0}', space=sflag, size = 0x4, scoped, tag = 'scoped memory for tpu_custom_call.1']
    #allocation7 [shape = 'u8[24576]{0}', space=vmem, size = 0x6000, scoped, tag = 'input window, operand 2, single buffered']
    #allocation8 [shape = 'u8[1024]{0}', space=vmem, size = 0x400, scoped, tag = 'input window, operand 3, single buffered']
    #allocation9 [shape = 's32[1]{0}', space=sflag, size = 0x4, scoped, tag = 'scoped memory for tpu_custom_call.1']
    #allocation10 [shape = 'u8[1024]{0}', space=vmem, size = 0x400, scoped, tag = 'input window, operand 5, single buffered']
    #allocation11 [shape = 'u8[512]{0}', space=vmem, size = 0x400, scoped, tag = 'input window, operand 9, single buffered']
    #allocation12 [shape = 's32[1]{0}', space=sflag, size = 0x4, scoped, tag = 'scoped memory for tpu_custom_call.1']
    #allocation13 [shape = 'u8[24576]{0}', space=vmem, size = 0x6000, scoped, tag = 'input window, operand 10, single buffered']
    #allocation14 [shape = 'u8[16384]{0}', space=vmem, size = 0x4000, scoped, tag = 'input window, operand 12, single buffered']
    #allocation15 [shape = 's32[1]{0}', space=sflag, size = 0x4, scoped, tag = 'scoped memory for tpu_custom_call.1']
    #allocation16 [shape = 'u8[131072]{0}', space=vmem, size = 0x20000, scoped, tag = 'input window, operand 14, single buffered']
    #allocation17 [shape = 'u8[1024]{0}', space=vmem, size = 0x400, scoped, tag = 'input window, operand 15, single buffered']
    #allocation18 [shape = 's32[1]{0}', space=sflag, size = 0x4, scoped, tag = 'scoped memory for tpu_custom_call.1']
    #allocation19 [shape = 'u8[131072]{0}', space=vmem, size = 0x20000, scoped, tag = 'input window, operand 16, single buffered']
    #allocation20 [shape = 'u8[65536]{0}', space=vmem, size = 0x10000, scoped, tag = 'input window, operand 18, single buffered']
    #allocation21 [shape = 's32[1]{0}', space=sflag, size = 0x4, scoped, tag = 'scoped memory for tpu_custom_call.1']
    #allocation22 [shape = 'u8[32768]{0}', space=vmem, size = 0x8000, scoped, tag = 'input window, operand 19, single buffered']
    #allocation23 [shape = 'u8[131072]{0}', space=vmem, size = 0x20000, scoped, tag = 'input window, operand 21, single buffered']
    #allocation24 [shape = 's32[1]{0}', space=sflag, size = 0x4, scoped, tag = 'scoped memory for tpu_custom_call.1']
    #allocation25 [shape = 'u8[131072]{0}', space=vmem, size = 0x20000, scoped, tag = 'input window, operand 23, single buffered']
    #allocation26 [shape = 'u8[65536]{0}', space=vmem, size = 0x10000, scoped, tag = 'input window, operand 25, single buffered']
    #allocation27 [shape = 's32[1]{0}', space=sflag, size = 0x4, scoped, tag = 'scoped memory for tpu_custom_call.1']
    #allocation28 [shape = 'u8[65536]{0}', space=vmem, size = 0x10000, scoped, tag = 'input window, operand 26, single buffered']
    #allocation29 [shape = 'u8[262144]{0}', space=vmem, size = 0x40000, scoped, tag = 'input window, operand 28, single buffered']
    #allocation30 [shape = 's32[1]{0}', space=sflag, size = 0x4, scoped, tag = 'scoped memory for tpu_custom_call.1']
    #allocation31 [shape = 'u8[65536]{0}', space=vmem, size = 0x10000, scoped, tag = 'input window, operand 30, single buffered']
    #allocation32 [shape = 'u8[32768]{0}', space=vmem, size = 0x8000, scoped, tag = 'input window, operand 32, single buffered']
    #allocation33 [shape = 's32[1]{0}', space=sflag, size = 0x4, scoped, tag = 'scoped memory for tpu_custom_call.1']
    #allocation34 [shape = 'u8[8192]{0}', space=vmem, size = 0x2000, scoped, tag = 'output window, operand 0, single buffered']
    %74 = vsyncpa [#allocation3], 0
    %75 = vsyncpa [#allocation6], 0
    %76 = vsyncpa [#allocation9], 0
    %77 = vsyncpa [#allocation12], 0
    %78 = vsyncpa [#allocation15], 0
    %79 = vsyncpa [#allocation18], 0
    %80 = vsyncpa [#allocation21], 0
    %81 = vsyncpa [#allocation24], 0
    %82 = vsyncpa [#allocation27], 0
    %83 = vsyncpa [#allocation30], 0
    %84 = vsyncpa [#allocation33], 0
    %85 = vsyncpa [#allocation4], 0
    // Predicated region
    $region2: #{tpu_custom_call.1} parent=1 // pred_check
      _
    $region3: #{tpu_custom_call.1} parent=1 // pred_check_branch
      %87 = sbr.rel (0) target = $region5
    $region4: #{tpu_custom_call.1} parent=1 // pred_region
      %89 = vsyncadd [#allocation3], 0
      %s90 = sshll.u32 %s1, 4
      %s91 = int_to_ptr.hbm [resolvable:$true] %s90
      %s92 = sshll.u32 [#allocation2], 4
      %s93 = int_to_ptr.vmem [resolvable:$true] %s92
      %98 = dma.hbm_to_vmem [thread:$0]  %s91, 256, %s93, [#allocation3], 128, 128, 8
    $region5: #{tpu_custom_call.1} parent=1 // pred_fallthru
      _
    // Predicated region
    $region6: #{tpu_custom_call.1} parent=1 // pred_check
      _
    $region7: #{tpu_custom_call.1} parent=1 // pred_check_branch
      %100 = sbr.rel (0) target = $region9
    $region8: #{tpu_custom_call.1} parent=1 // pred_region
      %102 = vsyncadd [#allocation6], 0
      %s103 = sshll.u32 %s3, 4
      %s104 = int_to_ptr.hbm [resolvable:$true] %s103
      %s105 = sshll.u32 [#allocation5], 4
      %s106 = int_to_ptr.vmem [resolvable:$true] %s105
      %111 = dma.hbm_to_vmem [thread:$0]  %s104, 256, %s106, [#allocation6], 128, 128, 8
    $region9: #{tpu_custom_call.1} parent=1 // pred_fallthru
      _
    // Predicated region
    $region10: #{tpu_custom_call.1} parent=1 // pred_check
      _
    $region11: #{tpu_custom_call.1} parent=1 // pred_check_branch
      %113 = sbr.rel (0) target = $region13
    $region12: #{tpu_custom_call.1} parent=1 // pred_region
      %115 = vsyncadd [#allocation6], 0
      %s116 = sshll.u32 %s5, 4
      %s117 = int_to_ptr.hbm [resolvable:$true] %s116
      %s118 = sshll.u32 [#allocation7], 4
      %s119 = int_to_ptr.vmem [resolvable:$true] %s118
      %124 = dma.hbm_to_vmem [thread:$0]  %s117, 768, %s119, [#allocation6], 128, 128, 8
    $region13: #{tpu_custom_call.1} parent=1 // pred_fallthru
      _
    // Predicated region
    $region14: #{tpu_custom_call.1} parent=1 // pred_check
      _
    $region15: #{tpu_custom_call.1} parent=1 // pred_check_branch
      %126 = sbr.rel (0) target = $region17
    $region16: #{tpu_custom_call.1} parent=1 // pred_region
      %128 = vsyncadd [#allocation9], 0
      %s130 = sshll.u32 %s7, 4
      %s131 = int_to_ptr.hbm [resolvable:$true] %s130
      %s132 = sshll.u32 [#allocation8], 4
      %s133 = int_to_ptr.vmem [resolvable:$true] %s132
      %135 = dma.hbm_to_vmem [thread:$0]  %s131, 32, %s133, [#allocation9]
    $region17: #{tpu_custom_call.1} parent=1 // pred_fallthru
      _
    // Predicated region
    $region18: #{tpu_custom_call.1} parent=1 // pred_check
      _
    $region19: #{tpu_custom_call.1} parent=1 // pred_check_branch
      %137 = sbr.rel (0) target = $region21
    $region20: #{tpu_custom_call.1} parent=1 // pred_region
      _
    $region21: #{tpu_custom_call.1} parent=1 // pred_fallthru
      _
    // Predicated region
    $region22: #{tpu_custom_call.1} parent=1 // pred_check
      _
    $region23: #{tpu_custom_call.1} parent=1 // pred_check_branch
      %139 = sbr.rel (0) target = $region25
    $region24: #{tpu_custom_call.1} parent=1 // pred_region
      %141 = vsyncadd [#allocation9], 0
      %s143 = sshll.u32 %s11, 4
      %s144 = int_to_ptr.hbm [resolvable:$true] %s143
      %s145 = sshll.u32 [#allocation10], 4
      %s146 = int_to_ptr.vmem [resolvable:$true] %s145
      %148 = dma.hbm_to_vmem [thread:$0]  %s144, 32, %s146, [#allocation9]
    $region25: #{tpu_custom_call.1} parent=1 // pred_fallthru
      _
    // Predicated region
    $region26: #{tpu_custom_call.1} parent=1 // pred_check
      _
    $region27: #{tpu_custom_call.1} parent=1 // pred_check_branch
      %150 = sbr.rel (0) target = $region29
    $region28: #{tpu_custom_call.1} parent=1 // pred_region
      _
    $region29: #{tpu_custom_call.1} parent=1 // pred_fallthru
      _
    // Predicated region
    $region30: #{tpu_custom_call.1} parent=1 // pred_check
      _
    $region31: #{tpu_custom_call.1} parent=1 // pred_check_branch
      %152 = sbr.rel (0) target = $region33
    $region32: #{tpu_custom_call.1} parent=1 // pred_region
      _
    $region33: #{tpu_custom_call.1} parent=1 // pred_fallthru
      _
    // Predicated region
    $region34: #{tpu_custom_call.1} parent=1 // pred_check
      _
    $region35: #{tpu_custom_call.1} parent=1 // pred_check_branch
      %154 = sbr.rel (0) target = $region37
    $region36: #{tpu_custom_call.1} parent=1 // pred_region
      _
    $region37: #{tpu_custom_call.1} parent=1 // pred_fallthru
      _
    // Predicated region
    $region38: #{tpu_custom_call.1} parent=1 // pred_check
      _
    $region39: #{tpu_custom_call.1} parent=1 // pred_check_branch
      %156 = sbr.rel (0) target = $region41
    $region40: #{tpu_custom_call.1} parent=1 // pred_region
      %158 = vsyncadd [#allocation12], 0
      %s160 = sshll.u32 %s19, 4
      %s161 = int_to_ptr.hbm [resolvable:$true] %s160
      %s162 = sshll.u32 [#allocation11], 4
      %s163 = int_to_ptr.vmem [resolvable:$true] %s162
      %165 = dma.hbm_to_vmem [thread:$0]  %s161, 16, %s163, [#allocation12]
    $region41: #{tpu_custom_call.1} parent=1 // pred_fallthru
      _
    // Predicated region
    $region42: #{tpu_custom_call.1} parent=1 // pred_check
      _
    $region43: #{tpu_custom_call.1} parent=1 // pred_check_branch
      %167 = sbr.rel (0) target = $region45
    $region44: #{tpu_custom_call.1} parent=1 // pred_region
      %169 = vsyncadd [#allocation12], 0
      %s170 = sshll.u32 %s21, 4
      %s171 = int_to_ptr.hbm [resolvable:$true] %s170
      %s172 = sshll.u32 [#allocation13], 4
      %s173 = int_to_ptr.vmem [resolvable:$true] %s172
      %178 = dma.hbm_to_vmem [thread:$0]  %s171, 768, %s173, [#allocation12], 128, 128, 8
    $region45: #{tpu_custom_call.1} parent=1 // pred_fallthru
      _
    // Predicated region
    $region46: #{tpu_custom_call.1} parent=1 // pred_check
      _
    $region47: #{tpu_custom_call.1} parent=1 // pred_check_branch
      %180 = sbr.rel (0) target = $region49
    $region48: #{tpu_custom_call.1} parent=1 // pred_region
      _
    $region49: #{tpu_custom_call.1} parent=1 // pred_fallthru
      _
    // Predicated region
    $region50: #{tpu_custom_call.1} parent=1 // pred_check
      _
    $region51: #{tpu_custom_call.1} parent=1 // pred_check_branch
      %182 = sbr.rel (0) target = $region53
    $region52: #{tpu_custom_call.1} parent=1 // pred_region
      %184 = vsyncadd [#allocation15], 0
      %s185 = sshll.u32 %s25, 4
      %s186 = int_to_ptr.hbm [resolvable:$true] %s185
      %s187 = sshll.u32 [#allocation14], 4
      %s188 = int_to_ptr.vmem [resolvable:$true] %s187
      %193 = dma.hbm_to_vmem [thread:$0]  %s186, 512, %s188, [#allocation15], 128, 128, 8
    $region53: #{tpu_custom_call.1} parent=1 // pred_fallthru
      _
    // Predicated region
    $region54: #{tpu_custom_call.1} parent=1 // pred_check
      _
    $region55: #{tpu_custom_call.1} parent=1 // pred_check_branch
      %195 = sbr.rel (0) target = $region57
    $region56: #{tpu_custom_call.1} parent=1 // pred_region
      _
    $region57: #{tpu_custom_call.1} parent=1 // pred_fallthru
      _
    // Predicated region
    $region58: #{tpu_custom_call.1} parent=1 // pred_check
      _
    $region59: #{tpu_custom_call.1} parent=1 // pred_check_branch
      %197 = sbr.rel (0) target = $region61
    $region60: #{tpu_custom_call.1} parent=1 // pred_region
      %199 = vsyncadd [#allocation15], 0
      %s200 = sshll.u32 %s29, 4
      %s201 = int_to_ptr.hbm [resolvable:$true] %s200
      %s202 = sshll.u32 [#allocation16], 4
      %s203 = int_to_ptr.vmem [resolvable:$true] %s202
      %208 = dma.hbm_to_vmem [thread:$0]  %s201, 4096, %s203, [#allocation15], 128, 128, 8
    $region61: #{tpu_custom_call.1} parent=1 // pred_fallthru
      _
    // Predicated region
    $region62: #{tpu_custom_call.1} parent=1 // pred_check
      _
    $region63: #{tpu_custom_call.1} parent=1 // pred_check_branch
      %210 = sbr.rel (0) target = $region65
    $region64: #{tpu_custom_call.1} parent=1 // pred_region
      %212 = vsyncadd [#allocation18], 0
      %s214 = sshll.u32 %s31, 4
      %s215 = int_to_ptr.hbm [resolvable:$true] %s214
      %s216 = sshll.u32 [#allocation17], 4
      %s217 = int_to_ptr.vmem [resolvable:$true] %s216
      %219 = dma.hbm_to_vmem [thread:$0]  %s215, 32, %s217, [#allocation18]
    $region65: #{tpu_custom_call.1} parent=1 // pred_fallthru
      _
    // Predicated region
    $region66: #{tpu_custom_call.1} parent=1 // pred_check
      _
    $region67: #{tpu_custom_call.1} parent=1 // pred_check_branch
      %221 = sbr.rel (0) target = $region69
    $region68: #{tpu_custom_call.1} parent=1 // pred_region
      %223 = vsyncadd [#allocation18], 0
      %s224 = sshll.u32 %s33, 4
      %s225 = int_to_ptr.hbm [resolvable:$true] %s224
      %s226 = sshll.u32 [#allocation19], 4
      %s227 = int_to_ptr.vmem [resolvable:$true] %s226
      %232 = dma.hbm_to_vmem [thread:$0]  %s225, 4096, %s227, [#allocation18], 128, 128, 8
    $region69: #{tpu_custom_call.1} parent=1 // pred_fallthru
      _
    // Predicated region
    $region70: #{tpu_custom_call.1} parent=1 // pred_check
      _
    $region71: #{tpu_custom_call.1} parent=1 // pred_check_branch
      %234 = sbr.rel (0) target = $region73
    $region72: #{tpu_custom_call.1} parent=1 // pred_region
      _
    $region73: #{tpu_custom_call.1} parent=1 // pred_fallthru
      _
    // Predicated region
    $region74: #{tpu_custom_call.1} parent=1 // pred_check
      _
    $region75: #{tpu_custom_call.1} parent=1 // pred_check_branch
      %236 = sbr.rel (0) target = $region77
    $region76: #{tpu_custom_call.1} parent=1 // pred_region
      %238 = vsyncadd [#allocation21], 0
      %s239 = sshll.u32 %s37, 4
      %s240 = int_to_ptr.hbm [resolvable:$true] %s239
      %s241 = sshll.u32 [#allocation20], 4
      %s242 = int_to_ptr.vmem [resolvable:$true] %s241
      %247 = dma.hbm_to_vmem [thread:$0]  %s240, 2048, %s242, [#allocation21], 64, 64, 4
    $region77: #{tpu_custom_call.1} parent=1 // pred_fallthru
      _
    // Predicated region
    $region78: #{tpu_custom_call.1} parent=1 // pred_check
      _
    $region79: #{tpu_custom_call.1} parent=1 // pred_check_branch
      %249 = sbr.rel (0) target = $region81
    $region80: #{tpu_custom_call.1} parent=1 // pred_region
      %251 = vsyncadd [#allocation21], 0
      %s252 = sshll.u32 %s39, 4
      %s253 = int_to_ptr.hbm [resolvable:$true] %s252
      %s254 = sshll.u32 [#allocation22], 4
      %s255 = int_to_ptr.vmem [resolvable:$true] %s254
      %260 = dma.hbm_to_vmem [thread:$0]  %s253, 1024, %s255, [#allocation21], 128, 128, 8
    $region81: #{tpu_custom_call.1} parent=1 // pred_fallthru
      _
    // Predicated region
    $region82: #{tpu_custom_call.1} parent=1 // pred_check
      _
    $region83: #{tpu_custom_call.1} parent=1 // pred_check_branch
      %262 = sbr.rel (0) target = $region85
    $region84: #{tpu_custom_call.1} parent=1 // pred_region
      _
    $region85: #{tpu_custom_call.1} parent=1 // pred_fallthru
      _
    // Predicated region
    $region86: #{tpu_custom_call.1} parent=1 // pred_check
      _
    $region87: #{tpu_custom_call.1} parent=1 // pred_check_branch
      %264 = sbr.rel (0) target = $region89
    $region88: #{tpu_custom_call.1} parent=1 // pred_region
      %266 = vsyncadd [#allocation24], 0
      %s267 = sshll.u32 %s43, 4
      %s268 = int_to_ptr.hbm [resolvable:$true] %s267
      %s269 = sshll.u32 [#allocation23], 4
      %s270 = int_to_ptr.vmem [resolvable:$true] %s269
      %275 = dma.hbm_to_vmem [thread:$0]  %s268, 4096, %s270, [#allocation24], 128, 128, 8
    $region89: #{tpu_custom_call.1} parent=1 // pred_fallthru
      _
    // Predicated region
    $region90: #{tpu_custom_call.1} parent=1 // pred_check
      _
    $region91: #{tpu_custom_call.1} parent=1 // pred_check_branch
      %277 = sbr.rel (0) target = $region93
    $region92: #{tpu_custom_call.1} parent=1 // pred_region
      _
    $region93: #{tpu_custom_call.1} parent=1 // pred_fallthru
      _
    // Predicated region
    $region94: #{tpu_custom_call.1} parent=1 // pred_check
      _
    $region95: #{tpu_custom_call.1} parent=1 // pred_check_branch
      %279 = sbr.rel (0) target = $region97
    $region96: #{tpu_custom_call.1} parent=1 // pred_region
      %281 = vsyncadd [#allocation24], 0
      %s282 = sshll.u32 %s47, 4
      %s283 = int_to_ptr.hbm [resolvable:$true] %s282
      %s284 = sshll.u32 [#allocation25], 4
      %s285 = int_to_ptr.vmem [resolvable:$true] %s284
      %290 = dma.hbm_to_vmem [thread:$0]  %s283, 4096, %s285, [#allocation24], 128, 128, 8
    $region97: #{tpu_custom_call.1} parent=1 // pred_fallthru
      _
    // Predicated region
    $region98: #{tpu_custom_call.1} parent=1 // pred_check
      _
    $region99: #{tpu_custom_call.1} parent=1 // pred_check_branch
      %292 = sbr.rel (0) target = $region101
    $region100: #{tpu_custom_call.1} parent=1 // pred_region
      _
    $region101: #{tpu_custom_call.1} parent=1 // pred_fallthru
      _
    // Predicated region
    $region102: #{tpu_custom_call.1} parent=1 // pred_check
      _
    $region103: #{tpu_custom_call.1} parent=1 // pred_check_branch
      %294 = sbr.rel (0) target = $region105
    $region104: #{tpu_custom_call.1} parent=1 // pred_region
      %296 = vsyncadd [#allocation27], 0
      %s297 = sshll.u32 %s51, 4
      %s298 = int_to_ptr.hbm [resolvable:$true] %s297
      %s299 = sshll.u32 [#allocation26], 4
      %s300 = int_to_ptr.vmem [resolvable:$true] %s299
      %305 = dma.hbm_to_vmem [thread:$0]  %s298, 2048, %s300, [#allocation27], 64, 64, 4
    $region105: #{tpu_custom_call.1} parent=1 // pred_fallthru
      _
    // Predicated region
    $region106: #{tpu_custom_call.1} parent=1 // pred_check
      _
    $region107: #{tpu_custom_call.1} parent=1 // pred_check_branch
      %307 = sbr.rel (0) target = $region109
    $region108: #{tpu_custom_call.1} parent=1 // pred_region
      %309 = vsyncadd [#allocation27], 0
      %s310 = sshll.u32 %s53, 4
      %s311 = int_to_ptr.hbm [resolvable:$true] %s310
      %s312 = sshll.u32 [#allocation28], 4
      %s313 = int_to_ptr.vmem [resolvable:$true] %s312
      %318 = dma.hbm_to_vmem [thread:$0]  %s311, 2048, %s313, [#allocation27], 256, 256, 16
    $region109: #{tpu_custom_call.1} parent=1 // pred_fallthru
      _
    // Predicated region
    $region110: #{tpu_custom_call.1} parent=1 // pred_check
      _
    $region111: #{tpu_custom_call.1} parent=1 // pred_check_branch
      %320 = sbr.rel (0) target = $region113
    $region112: #{tpu_custom_call.1} parent=1 // pred_region
      _
    $region113: #{tpu_custom_call.1} parent=1 // pred_fallthru
      _
    // Predicated region
    $region114: #{tpu_custom_call.1} parent=1 // pred_check
      _
    $region115: #{tpu_custom_call.1} parent=1 // pred_check_branch
      %322 = sbr.rel (0) target = $region117
    $region116: #{tpu_custom_call.1} parent=1 // pred_region
      %324 = vsyncadd [#allocation30], 0
      %s325 = sshll.u32 %s57, 4
      %s326 = int_to_ptr.hbm [resolvable:$true] %s325
      %s327 = sshll.u32 [#allocation29], 4
      %s328 = int_to_ptr.vmem [resolvable:$true] %s327
      %333 = dma.hbm_to_vmem [thread:$0]  %s326, 8192, %s328, [#allocation30], 128, 128, 8
    $region117: #{tpu_custom_call.1} parent=1 // pred_fallthru
      _
    // Predicated region
    $region118: #{tpu_custom_call.1} parent=1 // pred_check
      _
    $region119: #{tpu_custom_call.1} parent=1 // pred_check_branch
      %335 = sbr.rel (0) target = $region121
    $region120: #{tpu_custom_call.1} parent=1 // pred_region
      _
    $region121: #{tpu_custom_call.1} parent=1 // pred_fallthru
      _
    // Predicated region
    $region122: #{tpu_custom_call.1} parent=1 // pred_check
      _
    $region123: #{tpu_custom_call.1} parent=1 // pred_check_branch
      %337 = sbr.rel (0) target = $region125
    $region124: #{tpu_custom_call.1} parent=1 // pred_region
      %339 = vsyncadd [#allocation30], 0
      %s340 = sshll.u32 %s61, 4
      %s341 = int_to_ptr.hbm [resolvable:$true] %s340
      %s342 = sshll.u32 [#allocation31], 4
      %s343 = int_to_ptr.vmem [resolvable:$true] %s342
      %348 = dma.hbm_to_vmem [thread:$0]  %s341, 2048, %s343, [#allocation30], 64, 64, 4
    $region125: #{tpu_custom_call.1} parent=1 // pred_fallthru
      _
    // Predicated region
    $region126: #{tpu_custom_call.1} parent=1 // pred_check
      _
    $region127: #{tpu_custom_call.1} parent=1 // pred_check_branch
      %350 = sbr.rel (0) target = $region129
    $region128: #{tpu_custom_call.1} parent=1 // pred_region
      _
    $region129: #{tpu_custom_call.1} parent=1 // pred_fallthru
      _
    // Predicated region
    $region130: #{tpu_custom_call.1} parent=1 // pred_check
      _
    $region131: #{tpu_custom_call.1} parent=1 // pred_check_branch
      %352 = sbr.rel (0) target = $region133
    $region132: #{tpu_custom_call.1} parent=1 // pred_region
      %354 = vsyncadd [#allocation33], 0
      %s355 = sshll.u32 %s65, 4
      %s356 = int_to_ptr.hbm [resolvable:$true] %s355
      %s357 = sshll.u32 [#allocation32], 4
      %s358 = int_to_ptr.vmem [resolvable:$true] %s357
      %363 = dma.hbm_to_vmem [thread:$0]  %s356, 1024, %s358, [#allocation33], 64, 64, 4
    $region133: #{tpu_custom_call.1} parent=1 // pred_fallthru
      _
    // Predicated region
    $region134: #{tpu_custom_call.1} parent=1 // pred_check
      _
    $region135: #{tpu_custom_call.1} parent=1 // pred_check_branch
      %365 = sbr.rel (0) target = $region137
    $region136: #{tpu_custom_call.1} parent=1 // pred_region
      _
    $region137: #{tpu_custom_call.1} parent=1 // pred_fallthru
      _
    // Predicated region
    $region138: #{tpu_custom_call.1} parent=1 // pred_check
      _
    $region139: #{tpu_custom_call.1} parent=1 // pred_check_branch
      %367 = sbr.rel (0) target = $region141
    $region140: #{tpu_custom_call.1} parent=1 // pred_region
      %369 = dma.done [#allocation3], 256
    $region141: #{tpu_custom_call.1} parent=1 // pred_fallthru
      _
    // Predicated region
    $region142: #{tpu_custom_call.1} parent=1 // pred_check
      _
    $region143: #{tpu_custom_call.1} parent=1 // pred_check_branch
      %371 = sbr.rel (0) target = $region145
    $region144: #{tpu_custom_call.1} parent=1 // pred_region
      %373 = dma.done [#allocation6], 256
    $region145: #{tpu_custom_call.1} parent=1 // pred_fallthru
      _
    // Predicated region
    $region146: #{tpu_custom_call.1} parent=1 // pred_check
      _
    $region147: #{tpu_custom_call.1} parent=1 // pred_check_branch
      %375 = sbr.rel (0) target = $region149
    $region148: #{tpu_custom_call.1} parent=1 // pred_region
      %377 = dma.done [#allocation6], 768
    $region149: #{tpu_custom_call.1} parent=1 // pred_fallthru
      _
    // Predicated region
    $region150: #{tpu_custom_call.1} parent=1 // pred_check
      _
    $region151: #{tpu_custom_call.1} parent=1 // pred_check_branch
      %379 = sbr.rel (0) target = $region153
    $region152: #{tpu_custom_call.1} parent=1 // pred_region
      %381 = dma.done [#allocation9], 32
    $region153: #{tpu_custom_call.1} parent=1 // pred_fallthru
      _
    // Predicated region
    $region154: #{tpu_custom_call.1} parent=1 // pred_check
      _
    $region155: #{tpu_custom_call.1} parent=1 // pred_check_branch
      %383 = sbr.rel (0) target = $region157
    $region156: #{tpu_custom_call.1} parent=1 // pred_region
      %385 = dma.done [#allocation9], 32
    $region157: #{tpu_custom_call.1} parent=1 // pred_fallthru
      _
    // Predicated region
    $region158: #{tpu_custom_call.1} parent=1 // pred_check
      _
    $region159: #{tpu_custom_call.1} parent=1 // pred_check_branch
      %387 = sbr.rel (0) target = $region161
    $region160: #{tpu_custom_call.1} parent=1 // pred_region
      %389 = dma.done [#allocation12], 16
    $region161: #{tpu_custom_call.1} parent=1 // pred_fallthru
      _
    // Predicated region
    $region162: #{tpu_custom_call.1} parent=1 // pred_check
      _
    $region163: #{tpu_custom_call.1} parent=1 // pred_check_branch
      %391 = sbr.rel (0) target = $region165
    $region164: #{tpu_custom_call.1} parent=1 // pred_region
      %393 = dma.done [#allocation12], 768
    $region165: #{tpu_custom_call.1} parent=1 // pred_fallthru
      _
    // Predicated region
    $region166: #{tpu_custom_call.1} parent=1 // pred_check
      _
    $region167: #{tpu_custom_call.1} parent=1 // pred_check_branch
      %395 = sbr.rel (0) target = $region169
    $region168: #{tpu_custom_call.1} parent=1 // pred_region
      %397 = dma.done [#allocation15], 512
    $region169: #{tpu_custom_call.1} parent=1 // pred_fallthru
      _
    // Predicated region
    $region170: #{tpu_custom_call.1} parent=1 // pred_check
      _
    $region171: #{tpu_custom_call.1} parent=1 // pred_check_branch
      %399 = sbr.rel (0) target = $region173
    $region172: #{tpu_custom_call.1} parent=1 // pred_region
      %401 = dma.done [#allocation15], 4096
    $region173: #{tpu_custom_call.1} parent=1 // pred_fallthru
      _
    // Predicated region
    $region174: #{tpu_custom_call.1} parent=1 // pred_check
      _
    $region175: #{tpu_custom_call.1} parent=1 // pred_check_branch
      %403 = sbr.rel (0) target = $region177
    $region176: #{tpu_custom_call.1} parent=1 // pred_region
      %405 = dma.done [#allocation18], 32
    $region177: #{tpu_custom_call.1} parent=1 // pred_fallthru
      _
    // Predicated region
    $region178: #{tpu_custom_call.1} parent=1 // pred_check
      _
    $region179: #{tpu_custom_call.1} parent=1 // pred_check_branch
      %407 = sbr.rel (0) target = $region181
    $region180: #{tpu_custom_call.1} parent=1 // pred_region
      %409 = dma.done [#allocation18], 4096
    $region181: #{tpu_custom_call.1} parent=1 // pred_fallthru
      _
    // Predicated region
    $region182: #{tpu_custom_call.1} parent=1 // pred_check
      _
    $region183: #{tpu_custom_call.1} parent=1 // pred_check_branch
      %411 = sbr.rel (0) target = $region185
    $region184: #{tpu_custom_call.1} parent=1 // pred_region
      %413 = dma.done [#allocation21], 2048
    $region185: #{tpu_custom_call.1} parent=1 // pred_fallthru
      _
    // Predicated region
    $region186: #{tpu_custom_call.1} parent=1 // pred_check
      _
    $region187: #{tpu_custom_call.1} parent=1 // pred_check_branch
      %415 = sbr.rel (0) target = $region189
    $region188: #{tpu_custom_call.1} parent=1 // pred_region
      %417 = dma.done [#allocation21], 1024
    $region189: #{tpu_custom_call.1} parent=1 // pred_fallthru
      _
    // Predicated region
    $region190: #{tpu_custom_call.1} parent=1 // pred_check
      _
    $region191: #{tpu_custom_call.1} parent=1 // pred_check_branch
      %419 = sbr.rel (0) target = $region193
    $region192: #{tpu_custom_call.1} parent=1 // pred_region
      %421 = dma.done [#allocation24], 4096
    $region193: #{tpu_custom_call.1} parent=1 // pred_fallthru
      _
    // Predicated region
    $region194: #{tpu_custom_call.1} parent=1 // pred_check
      _
    $region195: #{tpu_custom_call.1} parent=1 // pred_check_branch
      %423 = sbr.rel (0) target = $region197
    $region196: #{tpu_custom_call.1} parent=1 // pred_region
      %425 = dma.done [#allocation24], 4096
    $region197: #{tpu_custom_call.1} parent=1 // pred_fallthru
      _
    // Predicated region
    $region198: #{tpu_custom_call.1} parent=1 // pred_check
      _
    $region199: #{tpu_custom_call.1} parent=1 // pred_check_branch
      %427 = sbr.rel (0) target = $region201
    $region200: #{tpu_custom_call.1} parent=1 // pred_region
      %429 = dma.done [#allocation27], 2048
    $region201: #{tpu_custom_call.1} parent=1 // pred_fallthru
      _
    // Predicated region
    $region202: #{tpu_custom_call.1} parent=1 // pred_check
      _
    $region203: #{tpu_custom_call.1} parent=1 // pred_check_branch
      %431 = sbr.rel (0) target = $region205
    $region204: #{tpu_custom_call.1} parent=1 // pred_region
      %433 = dma.done [#allocation27], 2048
    $region205: #{tpu_custom_call.1} parent=1 // pred_fallthru
      _
    // Predicated region
    $region206: #{tpu_custom_call.1} parent=1 // pred_check
      _
    $region207: #{tpu_custom_call.1} parent=1 // pred_check_branch
      %435 = sbr.rel (0) target = $region209
    $region208: #{tpu_custom_call.1} parent=1 // pred_region
      %437 = dma.done [#allocation30], 8192
    $region209: #{tpu_custom_call.1} parent=1 // pred_fallthru
      _
    // Predicated region
    $region210: #{tpu_custom_call.1} parent=1 // pred_check
      _
    $region211: #{tpu_custom_call.1} parent=1 // pred_check_branch
      %439 = sbr.rel (0) target = $region213
    $region212: #{tpu_custom_call.1} parent=1 // pred_region
      %441 = dma.done [#allocation30], 2048
    $region213: #{tpu_custom_call.1} parent=1 // pred_fallthru
      _
    // Predicated region
    $region214: #{tpu_custom_call.1} parent=1 // pred_check
      _
    $region215: #{tpu_custom_call.1} parent=1 // pred_check_branch
      %443 = sbr.rel (0) target = $region217
    $region216: #{tpu_custom_call.1} parent=1 // pred_region
      %445 = dma.done [#allocation33], 1024
    $region217: #{tpu_custom_call.1} parent=1 // pred_fallthru
      _
    %v447 = vld [vmem:[#allocation7] sm:$0xff]
    %v448 = vld [vmem:[#allocation7 + $0x8] sm:$0xff]
    %v449 = vld [vmem:[#allocation7 + $0x10] sm:$0xff]
    %v450 = vld [vmem:[#allocation7 + $0x18] sm:$0xff]
    %v451 = vld [vmem:[#allocation7 + $0x20] sm:$0xff]
    %v452 = vld [vmem:[#allocation7 + $0x28] sm:$0xff]
    %v453 = vld [vmem:[#allocation8] sm:$0x3]
    %v454 = vld [vmem:[%s9] sm:$0xff]
    %v455 = vld [vmem:[%s9 + $0x8] sm:$0xff]
    %v456 = vld [vmem:[%s9 + $0x10] sm:$0xff]
    %v457 = vld [vmem:[%s9 + $0x18] sm:$0xff]
    %v458 = vld [vmem:[%s9 + $0x20] sm:$0xff]
    %v459 = vld [vmem:[%s9 + $0x28] sm:$0xff]
    %v460 = vld [vmem:[%s9 + $0x30] sm:$0xff]
    %v461 = vld [vmem:[%s9 + $0x38] sm:$0xff]
    %v462 = vld [vmem:[%s9 + $0x40] sm:$0xff]
    %v463 = vld [vmem:[%s9 + $0x48] sm:$0xff]
    %v464 = vld [vmem:[%s9 + $0x50] sm:$0xff]
    %v465 = vld [vmem:[%s9 + $0x58] sm:$0xff]
    %v466 = vld [vmem:[%s9 + $0x60] sm:$0xff]
    %v467 = vld [vmem:[%s9 + $0x68] sm:$0xff]
    %v468 = vld [vmem:[%s9 + $0x70] sm:$0xff]
    %v469 = vld [vmem:[%s9 + $0x78] sm:$0xff]
    %v470 = vld [vmem:[%s9 + $0x80] sm:$0xff]
    %v471 = vld [vmem:[%s9 + $0x88] sm:$0xff]
    %v472 = vld [vmem:[%s9 + $0x90] sm:$0xff]
    %v473 = vld [vmem:[%s9 + $0x98] sm:$0xff]
    %v474 = vld [vmem:[%s9 + $0xa0] sm:$0xff]
    %v475 = vld [vmem:[%s9 + $0xa8] sm:$0xff]
    %v476 = vld [vmem:[%s9 + $0xb0] sm:$0xff]
    %v477 = vld [vmem:[%s9 + $0xb8] sm:$0xff]
    %v478 = vld [vmem:[%s9 + $0xc0] sm:$0xff]
    %v479 = vld [vmem:[%s9 + $0xc8] sm:$0xff]
    %v480 = vld [vmem:[%s9 + $0xd0] sm:$0xff]
    %v481 = vld [vmem:[%s9 + $0xd8] sm:$0xff]
    %v482 = vld [vmem:[%s9 + $0xe0] sm:$0xff]
    %v483 = vld [vmem:[%s9 + $0xe8] sm:$0xff]
    %v484 = vld [vmem:[%s9 + $0xf0] sm:$0xff]
    %v485 = vld [vmem:[%s9 + $0xf8] sm:$0xff]
    %v486 = vld [vmem:[#allocation10] sm:$0x3]
    %v487 = vld [vmem:[%s13] sm:$0xf]
    %v488 = vld [vmem:[%s13 + $0x4] sm:$0xf]
    %v489 = vld [vmem:[%s13 + $0x8] sm:$0xf]
    %v490 = vld [vmem:[%s13 + $0xc] sm:$0xf]
    %v491 = vld [vmem:[%s13 + $0x10] sm:$0xf]
    %v492 = vld [vmem:[%s13 + $0x14] sm:$0xf]
    %v493 = vld [vmem:[%s13 + $0x18] sm:$0xf]
    %v494 = vld [vmem:[%s13 + $0x1c] sm:$0xf]
    %v495 = vld [vmem:[%s13 + $0x20] sm:$0xf]
    %v496 = vld [vmem:[%s13 + $0x24] sm:$0xf]
    %v497 = vld [vmem:[%s13 + $0x28] sm:$0xf]
    %v498 = vld [vmem:[%s13 + $0x2c] sm:$0xf]
    %v499 = vld [vmem:[%s13 + $0x30] sm:$0xf]
    %v500 = vld [vmem:[%s13 + $0x34] sm:$0xf]
    %v501 = vld [vmem:[%s13 + $0x38] sm:$0xf]
    %v502 = vld [vmem:[%s13 + $0x3c] sm:$0xf]
    %v503 = vld [vmem:[%s13 + $0x40] sm:$0xf]
    %v504 = vld [vmem:[%s13 + $0x44] sm:$0xf]
    %v505 = vld [vmem:[%s13 + $0x48] sm:$0xf]
    %v506 = vld [vmem:[%s13 + $0x4c] sm:$0xf]
    %v507 = vld [vmem:[%s13 + $0x50] sm:$0xf]
    %v508 = vld [vmem:[%s13 + $0x54] sm:$0xf]
    %v509 = vld [vmem:[%s13 + $0x58] sm:$0xf]
    %v510 = vld [vmem:[%s13 + $0x5c] sm:$0xf]
    %v511 = vld [vmem:[%s13 + $0x60] sm:$0xf]
    %v512 = vld [vmem:[%s13 + $0x64] sm:$0xf]
    %v513 = vld [vmem:[%s13 + $0x68] sm:$0xf]
    %v514 = vld [vmem:[%s13 + $0x6c] sm:$0xf]
    %v515 = vld [vmem:[%s13 + $0x70] sm:$0xf]
    %v516 = vld [vmem:[%s13 + $0x74] sm:$0xf]
    %v517 = vld [vmem:[%s13 + $0x78] sm:$0xf]
    %v518 = vld [vmem:[%s13 + $0x7c] sm:$0xf]
    %v519 = vld [vmem:[%s15] sm:$0x1]
    %v520 = vld [vmem:[%s17] sm:$0xf]
    %v521 = vld [vmem:[%s17 + $0x4] sm:$0xf]
    %v522 = vld [vmem:[%s17 + $0x8] sm:$0xf]
    %v523 = vld [vmem:[%s17 + $0xc] sm:$0xf]
    %v524 = vld [vmem:[%s17 + $0x10] sm:$0xf]
    %v525 = vld [vmem:[%s17 + $0x14] sm:$0xf]
    %v526 = vld [vmem:[%s17 + $0x18] sm:$0xf]
    %v527 = vld [vmem:[%s17 + $0x1c] sm:$0xf]
    %v528 = vld [vmem:[%s17 + $0x20] sm:$0xf]
    %v529 = vld [vmem:[%s17 + $0x24] sm:$0xf]
    %v530 = vld [vmem:[%s17 + $0x28] sm:$0xf]
    %v531 = vld [vmem:[%s17 + $0x2c] sm:$0xf]
    %v532 = vld [vmem:[%s17 + $0x30] sm:$0xf]
    %v533 = vld [vmem:[%s17 + $0x34] sm:$0xf]
    %v534 = vld [vmem:[%s17 + $0x38] sm:$0xf]
    %v535 = vld [vmem:[%s17 + $0x3c] sm:$0xf]
    %v536 = vld [vmem:[%s17 + $0x40] sm:$0xf]
    %v537 = vld [vmem:[%s17 + $0x44] sm:$0xf]
    %v538 = vld [vmem:[%s17 + $0x48] sm:$0xf]
    %v539 = vld [vmem:[%s17 + $0x4c] sm:$0xf]
    %v540 = vld [vmem:[%s17 + $0x50] sm:$0xf]
    %v541 = vld [vmem:[%s17 + $0x54] sm:$0xf]
    %v542 = vld [vmem:[%s17 + $0x58] sm:$0xf]
    %v543 = vld [vmem:[%s17 + $0x5c] sm:$0xf]
    %v544 = vld [vmem:[%s17 + $0x60] sm:$0xf]
    %v545 = vld [vmem:[%s17 + $0x64] sm:$0xf]
    %v546 = vld [vmem:[%s17 + $0x68] sm:$0xf]
    %v547 = vld [vmem:[%s17 + $0x6c] sm:$0xf]
    %v548 = vld [vmem:[%s17 + $0x70] sm:$0xf]
    %v549 = vld [vmem:[%s17 + $0x74] sm:$0xf]
    %v550 = vld [vmem:[%s17 + $0x78] sm:$0xf]
    %v551 = vld [vmem:[%s17 + $0x7c] sm:$0xf]
    %v552 = vld [vmem:[#allocation11] sm:$0x1]
    %v553 = vld [vmem:[#allocation13] sm:$0xff]
    %v554 = vld [vmem:[#allocation13 + $0x8] sm:$0xff]
    %v555 = vld [vmem:[#allocation13 + $0x10] sm:$0xff]
    %v556 = vld [vmem:[#allocation13 + $0x18] sm:$0xff]
    %v557 = vld [vmem:[#allocation13 + $0x20] sm:$0xff]
    %v558 = vld [vmem:[#allocation13 + $0x28] sm:$0xff]
    %v559 = vld [vmem:[%s23] sm:$0xf]
    %v560 = vld [vmem:[#allocation14] sm:$0xff]
    %v561 = vld [vmem:[#allocation14 + $0x8] sm:$0xff]
    %v562 = vld [vmem:[#allocation14 + $0x10] sm:$0xff]
    %v563 = vld [vmem:[#allocation14 + $0x18] sm:$0xff]
    %v564 = vld [vmem:[%s27] sm:$0x3]
    %v565 = vld [vmem:[#allocation16] sm:$0xff]
    %v566 = vld [vmem:[#allocation16 + $0x8] sm:$0xff]
    %v567 = vld [vmem:[#allocation16 + $0x10] sm:$0xff]
    %v568 = vld [vmem:[#allocation16 + $0x18] sm:$0xff]
    %v569 = vld [vmem:[#allocation16 + $0x20] sm:$0xff]
    %v570 = vld [vmem:[#allocation16 + $0x28] sm:$0xff]
    %v571 = vld [vmem:[#allocation16 + $0x30] sm:$0xff]
    %v572 = vld [vmem:[#allocation16 + $0x38] sm:$0xff]
    %v573 = vld [vmem:[#allocation16 + $0x40] sm:$0xff]
    %v574 = vld [vmem:[#allocation16 + $0x48] sm:$0xff]
    %v575 = vld [vmem:[#allocation16 + $0x50] sm:$0xff]
    %v576 = vld [vmem:[#allocation16 + $0x58] sm:$0xff]
    %v577 = vld [vmem:[#allocation16 + $0x60] sm:$0xff]
    %v578 = vld [vmem:[#allocation16 + $0x68] sm:$0xff]
    %v579 = vld [vmem:[#allocation16 + $0x70] sm:$0xff]
    %v580 = vld [vmem:[#allocation16 + $0x78] sm:$0xff]
    %v581 = vld [vmem:[#allocation16 + $0x80] sm:$0xff]
    %v582 = vld [vmem:[#allocation16 + $0x88] sm:$0xff]
    %v583 = vld [vmem:[#allocation16 + $0x90] sm:$0xff]
    %v584 = vld [vmem:[#allocation16 + $0x98] sm:$0xff]
    %v585 = vld [vmem:[#allocation16 + $0xa0] sm:$0xff]
    %v586 = vld [vmem:[#allocation16 + $0xa8] sm:$0xff]
    %v587 = vld [vmem:[#allocation16 + $0xb0] sm:$0xff]
    %v588 = vld [vmem:[#allocation16 + $0xb8] sm:$0xff]
    %v589 = vld [vmem:[#allocation16 + $0xc0] sm:$0xff]
    %v590 = vld [vmem:[#allocation16 + $0xc8] sm:$0xff]
    %v591 = vld [vmem:[#allocation16 + $0xd0] sm:$0xff]
    %v592 = vld [vmem:[#allocation16 + $0xd8] sm:$0xff]
    %v593 = vld [vmem:[#allocation16 + $0xe0] sm:$0xff]
    %v594 = vld [vmem:[#allocation16 + $0xe8] sm:$0xff]
    %v595 = vld [vmem:[#allocation16 + $0xf0] sm:$0xff]
    %v596 = vld [vmem:[#allocation16 + $0xf8] sm:$0xff]
    %v597 = vld [vmem:[#allocation17] sm:$0x3]
    %v598 = vld [vmem:[#allocation19] sm:$0xff]
    %v599 = vld [vmem:[#allocation19 + $0x8] sm:$0xff]
    %v600 = vld [vmem:[#allocation19 + $0x10] sm:$0xff]
    %v601 = vld [vmem:[#allocation19 + $0x18] sm:$0xff]
    %v602 = vld [vmem:[#allocation19 + $0x20] sm:$0xff]
    %v603 = vld [vmem:[#allocation19 + $0x28] sm:$0xff]
    %v604 = vld [vmem:[#allocation19 + $0x30] sm:$0xff]
    %v605 = vld [vmem:[#allocation19 + $0x38] sm:$0xff]
    %v606 = vld [vmem:[#allocation19 + $0x40] sm:$0xff]
    %v607 = vld [vmem:[#allocation19 + $0x48] sm:$0xff]
    %v608 = vld [vmem:[#allocation19 + $0x50] sm:$0xff]
    %v609 = vld [vmem:[#allocation19 + $0x58] sm:$0xff]
    %v610 = vld [vmem:[#allocation19 + $0x60] sm:$0xff]
    %v611 = vld [vmem:[#allocation19 + $0x68] sm:$0xff]
    %v612 = vld [vmem:[#allocation19 + $0x70] sm:$0xff]
    %v613 = vld [vmem:[#allocation19 + $0x78] sm:$0xff]
    %v614 = vld [vmem:[#allocation19 + $0x80] sm:$0xff]
    %v615 = vld [vmem:[#allocation19 + $0x88] sm:$0xff]
    %v616 = vld [vmem:[#allocation19 + $0x90] sm:$0xff]
    %v617 = vld [vmem:[#allocation19 + $0x98] sm:$0xff]
    %v618 = vld [vmem:[#allocation19 + $0xa0] sm:$0xff]
    %v619 = vld [vmem:[#allocation19 + $0xa8] sm:$0xff]
    %v620 = vld [vmem:[#allocation19 + $0xb0] sm:$0xff]
    %v621 = vld [vmem:[#allocation19 + $0xb8] sm:$0xff]
    %v622 = vld [vmem:[#allocation19 + $0xc0] sm:$0xff]
    %v623 = vld [vmem:[#allocation19 + $0xc8] sm:$0xff]
    %v624 = vld [vmem:[#allocation19 + $0xd0] sm:$0xff]
    %v625 = vld [vmem:[#allocation19 + $0xd8] sm:$0xff]
    %v626 = vld [vmem:[#allocation19 + $0xe0] sm:$0xff]
    %v627 = vld [vmem:[#allocation19 + $0xe8] sm:$0xff]
    %v628 = vld [vmem:[#allocation19 + $0xf0] sm:$0xff]
    %v629 = vld [vmem:[#allocation19 + $0xf8] sm:$0xff]
    %v630 = vld [vmem:[%s35] sm:$0x3]
    %v631 = vld [vmem:[#allocation20] sm:$0xf]
    %v632 = vld [vmem:[#allocation20 + $0x4] sm:$0xf]
    %v633 = vld [vmem:[#allocation20 + $0x8] sm:$0xf]
    %v634 = vld [vmem:[#allocation20 + $0xc] sm:$0xf]
    %v635 = vld [vmem:[#allocation20 + $0x10] sm:$0xf]
    %v636 = vld [vmem:[#allocation20 + $0x14] sm:$0xf]
    %v637 = vld [vmem:[#allocation20 + $0x18] sm:$0xf]
    %v638 = vld [vmem:[#allocation20 + $0x1c] sm:$0xf]
    %v639 = vld [vmem:[#allocation20 + $0x20] sm:$0xf]
    %v640 = vld [vmem:[#allocation20 + $0x24] sm:$0xf]
    %v641 = vld [vmem:[#allocation20 + $0x28] sm:$0xf]
    %v642 = vld [vmem:[#allocation20 + $0x2c] sm:$0xf]
    %v643 = vld [vmem:[#allocation20 + $0x30] sm:$0xf]
    %v644 = vld [vmem:[#allocation20 + $0x34] sm:$0xf]
    %v645 = vld [vmem:[#allocation20 + $0x38] sm:$0xf]
    %v646 = vld [vmem:[#allocation20 + $0x3c] sm:$0xf]
    %v647 = vld [vmem:[#allocation20 + $0x40] sm:$0xf]
    %v648 = vld [vmem:[#allocation20 + $0x44] sm:$0xf]
    %v649 = vld [vmem:[#allocation20 + $0x48] sm:$0xf]
    %v650 = vld [vmem:[#allocation20 + $0x4c] sm:$0xf]
    %v651 = vld [vmem:[#allocation20 + $0x50] sm:$0xf]
    %v652 = vld [vmem:[#allocation20 + $0x54] sm:$0xf]
    %v653 = vld [vmem:[#allocation20 + $0x58] sm:$0xf]
    %v654 = vld [vmem:[#allocation20 + $0x5c] sm:$0xf]
    %v655 = vld [vmem:[#allocation20 + $0x60] sm:$0xf]
    %v656 = vld [vmem:[#allocation20 + $0x64] sm:$0xf]
    %v657 = vld [vmem:[#allocation20 + $0x68] sm:$0xf]
    %v658 = vld [vmem:[#allocation20 + $0x6c] sm:$0xf]
    %v659 = vld [vmem:[#allocation20 + $0x70] sm:$0xf]
    %v660 = vld [vmem:[#allocation20 + $0x74] sm:$0xf]
    %v661 = vld [vmem:[#allocation20 + $0x78] sm:$0xf]
    %v662 = vld [vmem:[#allocation20 + $0x7c] sm:$0xf]
    %v663 = vld [vmem:[#allocation22] sm:$0xff]
    %v664 = vld [vmem:[#allocation22 + $0x8] sm:$0xff]
    %v665 = vld [vmem:[#allocation22 + $0x10] sm:$0xff]
    %v666 = vld [vmem:[#allocation22 + $0x18] sm:$0xff]
    %v667 = vld [vmem:[#allocation22 + $0x20] sm:$0xff]
    %v668 = vld [vmem:[#allocation22 + $0x28] sm:$0xff]
    %v669 = vld [vmem:[#allocation22 + $0x30] sm:$0xff]
    %v670 = vld [vmem:[#allocation22 + $0x38] sm:$0xff]
    %v671 = vld [vmem:[%s41] sm:$0x3]
    %v672 = vld [vmem:[#allocation23] sm:$0xff]
    %v673 = vld [vmem:[#allocation23 + $0x8] sm:$0xff]
    %v674 = vld [vmem:[#allocation23 + $0x10] sm:$0xff]
    %v675 = vld [vmem:[#allocation23 + $0x18] sm:$0xff]
    %v676 = vld [vmem:[#allocation23 + $0x20] sm:$0xff]
    %v677 = vld [vmem:[#allocation23 + $0x28] sm:$0xff]
    %v678 = vld [vmem:[#allocation23 + $0x30] sm:$0xff]
    %v679 = vld [vmem:[#allocation23 + $0x38] sm:$0xff]
    %v680 = vld [vmem:[#allocation23 + $0x40] sm:$0xff]
    %v681 = vld [vmem:[#allocation23 + $0x48] sm:$0xff]
    %v682 = vld [vmem:[#allocation23 + $0x50] sm:$0xff]
    %v683 = vld [vmem:[#allocation23 + $0x58] sm:$0xff]
    %v684 = vld [vmem:[#allocation23 + $0x60] sm:$0xff]
    %v685 = vld [vmem:[#allocation23 + $0x68] sm:$0xff]
    %v686 = vld [vmem:[#allocation23 + $0x70] sm:$0xff]
    %v687 = vld [vmem:[#allocation23 + $0x78] sm:$0xff]
    %v688 = vld [vmem:[#allocation23 + $0x80] sm:$0xff]
    %v689 = vld [vmem:[#allocation23 + $0x88] sm:$0xff]
    %v690 = vld [vmem:[#allocation23 + $0x90] sm:$0xff]
    %v691 = vld [vmem:[#allocation23 + $0x98] sm:$0xff]
    %v692 = vld [vmem:[#allocation23 + $0xa0] sm:$0xff]
    %v693 = vld [vmem:[#allocation23 + $0xa8] sm:$0xff]
    %v694 = vld [vmem:[#allocation23 + $0xb0] sm:$0xff]
    %v695 = vld [vmem:[#allocation23 + $0xb8] sm:$0xff]
    %v696 = vld [vmem:[#allocation23 + $0xc0] sm:$0xff]
    %v697 = vld [vmem:[#allocation23 + $0xc8] sm:$0xff]
    %v698 = vld [vmem:[#allocation23 + $0xd0] sm:$0xff]
    %v699 = vld [vmem:[#allocation23 + $0xd8] sm:$0xff]
    %v700 = vld [vmem:[#allocation23 + $0xe0] sm:$0xff]
    %v701 = vld [vmem:[#allocation23 + $0xe8] sm:$0xff]
    %v702 = vld [vmem:[#allocation23 + $0xf0] sm:$0xff]
    %v703 = vld [vmem:[#allocation23 + $0xf8] sm:$0xff]
    %v704 = vld [vmem:[%s45] sm:$0x3]
    %v705 = vld [vmem:[#allocation25] sm:$0xff]
    %v706 = vld [vmem:[#allocation25 + $0x8] sm:$0xff]
    %v707 = vld [vmem:[#allocation25 + $0x10] sm:$0xff]
    %v708 = vld [vmem:[#allocation25 + $0x18] sm:$0xff]
    %v709 = vld [vmem:[#allocation25 + $0x20] sm:$0xff]
    %v710 = vld [vmem:[#allocation25 + $0x28] sm:$0xff]
    %v711 = vld [vmem:[#allocation25 + $0x30] sm:$0xff]
    %v712 = vld [vmem:[#allocation25 + $0x38] sm:$0xff]
    %v713 = vld [vmem:[#allocation25 + $0x40] sm:$0xff]
    %v714 = vld [vmem:[#allocation25 + $0x48] sm:$0xff]
    %v715 = vld [vmem:[#allocation25 + $0x50] sm:$0xff]
    %v716 = vld [vmem:[#allocation25 + $0x58] sm:$0xff]
    %v717 = vld [vmem:[#allocation25 + $0x60] sm:$0xff]
    %v718 = vld [vmem:[#allocation25 + $0x68] sm:$0xff]
    %v719 = vld [vmem:[#allocation25 + $0x70] sm:$0xff]
    %v720 = vld [vmem:[#allocation25 + $0x78] sm:$0xff]
    %v721 = vld [vmem:[#allocation25 + $0x80] sm:$0xff]
    %v722 = vld [vmem:[#allocation25 + $0x88] sm:$0xff]
    %v723 = vld [vmem:[#allocation25 + $0x90] sm:$0xff]
    %v724 = vld [vmem:[#allocation25 + $0x98] sm:$0xff]
    %v725 = vld [vmem:[#allocation25 + $0xa0] sm:$0xff]
    %v726 = vld [vmem:[#allocation25 + $0xa8] sm:$0xff]
    %v727 = vld [vmem:[#allocation25 + $0xb0] sm:$0xff]
    %v728 = vld [vmem:[#allocation25 + $0xb8] sm:$0xff]
    %v729 = vld [vmem:[#allocation25 + $0xc0] sm:$0xff]
    %v730 = vld [vmem:[#allocation25 + $0xc8] sm:$0xff]
    %v731 = vld [vmem:[#allocation25 + $0xd0] sm:$0xff]
    %v732 = vld [vmem:[#allocation25 + $0xd8] sm:$0xff]
    %v733 = vld [vmem:[#allocation25 + $0xe0] sm:$0xff]
    %v734 = vld [vmem:[#allocation25 + $0xe8] sm:$0xff]
    %v735 = vld [vmem:[#allocation25 + $0xf0] sm:$0xff]
    %v736 = vld [vmem:[#allocation25 + $0xf8] sm:$0xff]
    %v737 = vld [vmem:[%s49] sm:$0x3]
    %v738 = vld [vmem:[#allocation26] sm:$0xf]
    %v739 = vld [vmem:[#allocation26 + $0x4] sm:$0xf]
    %v740 = vld [vmem:[#allocation26 + $0x8] sm:$0xf]
    %v741 = vld [vmem:[#allocation26 + $0xc] sm:$0xf]
    %v742 = vld [vmem:[#allocation26 + $0x10] sm:$0xf]
    %v743 = vld [vmem:[#allocation26 + $0x14] sm:$0xf]
    %v744 = vld [vmem:[#allocation26 + $0x18] sm:$0xf]
    %v745 = vld [vmem:[#allocation26 + $0x1c] sm:$0xf]
    %v746 = vld [vmem:[#allocation26 + $0x20] sm:$0xf]
    %v747 = vld [vmem:[#allocation26 + $0x24] sm:$0xf]
    %v748 = vld [vmem:[#allocation26 + $0x28] sm:$0xf]
    %v749 = vld [vmem:[#allocation26 + $0x2c] sm:$0xf]
    %v750 = vld [vmem:[#allocation26 + $0x30] sm:$0xf]
    %v751 = vld [vmem:[#allocation26 + $0x34] sm:$0xf]
    %v752 = vld [vmem:[#allocation26 + $0x38] sm:$0xf]
    %v753 = vld [vmem:[#allocation26 + $0x3c] sm:$0xf]
    %v754 = vld [vmem:[#allocation26 + $0x40] sm:$0xf]
    %v755 = vld [vmem:[#allocation26 + $0x44] sm:$0xf]
    %v756 = vld [vmem:[#allocation26 + $0x48] sm:$0xf]
    %v757 = vld [vmem:[#allocation26 + $0x4c] sm:$0xf]
    %v758 = vld [vmem:[#allocation26 + $0x50] sm:$0xf]
    %v759 = vld [vmem:[#allocation26 + $0x54] sm:$0xf]
    %v760 = vld [vmem:[#allocation26 + $0x58] sm:$0xf]
    %v761 = vld [vmem:[#allocation26 + $0x5c] sm:$0xf]
    %v762 = vld [vmem:[#allocation26 + $0x60] sm:$0xf]
    %v763 = vld [vmem:[#allocation26 + $0x64] sm:$0xf]
    %v764 = vld [vmem:[#allocation26 + $0x68] sm:$0xf]
    %v765 = vld [vmem:[#allocation26 + $0x6c] sm:$0xf]
    %v766 = vld [vmem:[#allocation26 + $0x70] sm:$0xf]
    %v767 = vld [vmem:[#allocation26 + $0x74] sm:$0xf]
    %v768 = vld [vmem:[#allocation26 + $0x78] sm:$0xf]
    %v769 = vld [vmem:[#allocation26 + $0x7c] sm:$0xf]
    %v770 = vld [vmem:[#allocation28] sm:$0xff]
    %v771 = vld [vmem:[#allocation28 + $0x8] sm:$0xff]
    %v772 = vld [vmem:[#allocation28 + $0x10] sm:$0xff]
    %v773 = vld [vmem:[#allocation28 + $0x18] sm:$0xff]
    %v774 = vld [vmem:[#allocation28 + $0x20] sm:$0xff]
    %v775 = vld [vmem:[#allocation28 + $0x28] sm:$0xff]
    %v776 = vld [vmem:[#allocation28 + $0x30] sm:$0xff]
    %v777 = vld [vmem:[#allocation28 + $0x38] sm:$0xff]
    %v778 = vld [vmem:[#allocation28 + $0x40] sm:$0xff]
    %v779 = vld [vmem:[#allocation28 + $0x48] sm:$0xff]
    %v780 = vld [vmem:[#allocation28 + $0x50] sm:$0xff]
    %v781 = vld [vmem:[#allocation28 + $0x58] sm:$0xff]
    %v782 = vld [vmem:[#allocation28 + $0x60] sm:$0xff]
    %v783 = vld [vmem:[#allocation28 + $0x68] sm:$0xff]
    %v784 = vld [vmem:[#allocation28 + $0x70] sm:$0xff]
    %v785 = vld [vmem:[#allocation28 + $0x78] sm:$0xff]
    %v786 = vld [vmem:[%s55] sm:$0xf]
    %v787 = vld [vmem:[#allocation29] sm:$0xff]
    %v788 = vld [vmem:[#allocation29 + $0x8] sm:$0xff]
    %v789 = vld [vmem:[#allocation29 + $0x10] sm:$0xff]
    %v790 = vld [vmem:[#allocation29 + $0x18] sm:$0xff]
    %v791 = vld [vmem:[#allocation29 + $0x20] sm:$0xff]
    %v792 = vld [vmem:[#allocation29 + $0x28] sm:$0xff]
    %v793 = vld [vmem:[#allocation29 + $0x30] sm:$0xff]
    %v794 = vld [vmem:[#allocation29 + $0x38] sm:$0xff]
    %v795 = vld [vmem:[#allocation29 + $0x40] sm:$0xff]
    %v796 = vld [vmem:[#allocation29 + $0x48] sm:$0xff]
    %v797 = vld [vmem:[#allocation29 + $0x50] sm:$0xff]
    %v798 = vld [vmem:[#allocation29 + $0x58] sm:$0xff]
    %v799 = vld [vmem:[#allocation29 + $0x60] sm:$0xff]
    %v800 = vld [vmem:[#allocation29 + $0x68] sm:$0xff]
    %v801 = vld [vmem:[#allocation29 + $0x70] sm:$0xff]
    %v802 = vld [vmem:[#allocation29 + $0x78] sm:$0xff]
    %v803 = vld [vmem:[#allocation29 + $0x80] sm:$0xff]
    %v804 = vld [vmem:[#allocation29 + $0x88] sm:$0xff]
    %v805 = vld [vmem:[#allocation29 + $0x90] sm:$0xff]
    %v806 = vld [vmem:[#allocation29 + $0x98] sm:$0xff]
    %v807 = vld [vmem:[#allocation29 + $0xa0] sm:$0xff]
    %v808 = vld [vmem:[#allocation29 + $0xa8] sm:$0xff]
    %v809 = vld [vmem:[#allocation29 + $0xb0] sm:$0xff]
    %v810 = vld [vmem:[#allocation29 + $0xb8] sm:$0xff]
    %v811 = vld [vmem:[#allocation29 + $0xc0] sm:$0xff]
    %v812 = vld [vmem:[#allocation29 + $0xc8] sm:$0xff]
    %v813 = vld [vmem:[#allocation29 + $0xd0] sm:$0xff]
    %v814 = vld [vmem:[#allocation29 + $0xd8] sm:$0xff]
    %v815 = vld [vmem:[#allocation29 + $0xe0] sm:$0xff]
    %v816 = vld [vmem:[#allocation29 + $0xe8] sm:$0xff]
    %v817 = vld [vmem:[#allocation29 + $0xf0] sm:$0xff]
    %v818 = vld [vmem:[#allocation29 + $0xf8] sm:$0xff]
    %v819 = vld [vmem:[#allocation29 + $0x100] sm:$0xff]
    %v820 = vld [vmem:[#allocation29 + $0x108] sm:$0xff]
    %v821 = vld [vmem:[#allocation29 + $0x110] sm:$0xff]
    %v822 = vld [vmem:[#allocation29 + $0x118] sm:$0xff]
    %v823 = vld [vmem:[#allocation29 + $0x120] sm:$0xff]
    %v824 = vld [vmem:[#allocation29 + $0x128] sm:$0xff]
    %v825 = vld [vmem:[#allocation29 + $0x130] sm:$0xff]
    %v826 = vld [vmem:[#allocation29 + $0x138] sm:$0xff]
    %v827 = vld [vmem:[#allocation29 + $0x140] sm:$0xff]
    %v828 = vld [vmem:[#allocation29 + $0x148] sm:$0xff]
    %v829 = vld [vmem:[#allocation29 + $0x150] sm:$0xff]
    %v830 = vld [vmem:[#allocation29 + $0x158] sm:$0xff]
    %v831 = vld [vmem:[#allocation29 + $0x160] sm:$0xff]
    %v832 = vld [vmem:[#allocation29 + $0x168] sm:$0xff]
    %v833 = vld [vmem:[#allocation29 + $0x170] sm:$0xff]
    %v834 = vld [vmem:[#allocation29 + $0x178] sm:$0xff]
    %v835 = vld [vmem:[#allocation29 + $0x180] sm:$0xff]
    %v836 = vld [vmem:[#allocation29 + $0x188] sm:$0xff]
    %v837 = vld [vmem:[#allocation29 + $0x190] sm:$0xff]
    %v838 = vld [vmem:[#allocation29 + $0x198] sm:$0xff]
    %v839 = vld [vmem:[#allocation29 + $0x1a0] sm:$0xff]
    %v840 = vld [vmem:[#allocation29 + $0x1a8] sm:$0xff]
    %v841 = vld [vmem:[#allocation29 + $0x1b0] sm:$0xff]
    %v842 = vld [vmem:[#allocation29 + $0x1b8] sm:$0xff]
    %v843 = vld [vmem:[#allocation29 + $0x1c0] sm:$0xff]
    %v844 = vld [vmem:[#allocation29 + $0x1c8] sm:$0xff]
    %v845 = vld [vmem:[#allocation29 + $0x1d0] sm:$0xff]
    %v846 = vld [vmem:[#allocation29 + $0x1d8] sm:$0xff]
    %v847 = vld [vmem:[#allocation29 + $0x1e0] sm:$0xff]
    %v848 = vld [vmem:[#allocation29 + $0x1e8] sm:$0xff]
    %v849 = vld [vmem:[#allocation29 + $0x1f0] sm:$0xff]
    %v850 = vld [vmem:[#allocation29 + $0x1f8] sm:$0xff]
    %v851 = vld [vmem:[%s59] sm:$0x3]
    %v852 = vld [vmem:[#allocation31] sm:$0xf]
    %v853 = vld [vmem:[#allocation31 + $0x4] sm:$0xf]
    %v854 = vld [vmem:[#allocation31 + $0x8] sm:$0xf]
    %v855 = vld [vmem:[#allocation31 + $0xc] sm:$0xf]
    %v856 = vld [vmem:[#allocation31 + $0x10] sm:$0xf]
    %v857 = vld [vmem:[#allocation31 + $0x14] sm:$0xf]
    %v858 = vld [vmem:[#allocation31 + $0x18] sm:$0xf]
    %v859 = vld [vmem:[#allocation31 + $0x1c] sm:$0xf]
    %v860 = vld [vmem:[#allocation31 + $0x20] sm:$0xf]
    %v861 = vld [vmem:[#allocation31 + $0x24] sm:$0xf]
    %v862 = vld [vmem:[#allocation31 + $0x28] sm:$0xf]
    %v863 = vld [vmem:[#allocation31 + $0x2c] sm:$0xf]
    %v864 = vld [vmem:[#allocation31 + $0x30] sm:$0xf]
    %v865 = vld [vmem:[#allocation31 + $0x34] sm:$0xf]
    %v866 = vld [vmem:[#allocation31 + $0x38] sm:$0xf]
    %v867 = vld [vmem:[#allocation31 + $0x3c] sm:$0xf]
    %v868 = vld [vmem:[#allocation31 + $0x40] sm:$0xf]
    %v869 = vld [vmem:[#allocation31 + $0x44] sm:$0xf]
    %v870 = vld [vmem:[#allocation31 + $0x48] sm:$0xf]
    %v871 = vld [vmem:[#allocation31 + $0x4c] sm:$0xf]
    %v872 = vld [vmem:[#allocation31 + $0x50] sm:$0xf]
    %v873 = vld [vmem:[#allocation31 + $0x54] sm:$0xf]
    %v874 = vld [vmem:[#allocation31 + $0x58] sm:$0xf]
    %v875 = vld [vmem:[#allocation31 + $0x5c] sm:$0xf]
    %v876 = vld [vmem:[#allocation31 + $0x60] sm:$0xf]
    %v877 = vld [vmem:[#allocation31 + $0x64] sm:$0xf]
    %v878 = vld [vmem:[#allocation31 + $0x68] sm:$0xf]
    %v879 = vld [vmem:[#allocation31 + $0x6c] sm:$0xf]
    %v880 = vld [vmem:[#allocation31 + $0x70] sm:$0xf]
    %v881 = vld [vmem:[#allocation31 + $0x74] sm:$0xf]
    %v882 = vld [vmem:[#allocation31 + $0x78] sm:$0xf]
    %v883 = vld [vmem:[#allocation31 + $0x7c] sm:$0xf]
    %v884 = vld [vmem:[%s63] sm:$0x1]
    %v885 = vld [vmem:[#allocation32] sm:$0xf]
    %v886 = vld [vmem:[#allocation32 + $0x4] sm:$0xf]
    %v887 = vld [vmem:[#allocation32 + $0x8] sm:$0xf]
    %v888 = vld [vmem:[#allocation32 + $0xc] sm:$0xf]
    %v889 = vld [vmem:[#allocation32 + $0x10] sm:$0xf]
    %v890 = vld [vmem:[#allocation32 + $0x14] sm:$0xf]
    %v891 = vld [vmem:[#allocation32 + $0x18] sm:$0xf]
    %v892 = vld [vmem:[#allocation32 + $0x1c] sm:$0xf]
    %v893 = vld [vmem:[#allocation32 + $0x20] sm:$0xf]
    %v894 = vld [vmem:[#allocation32 + $0x24] sm:$0xf]
    %v895 = vld [vmem:[#allocation32 + $0x28] sm:$0xf]
    %v896 = vld [vmem:[#allocation32 + $0x2c] sm:$0xf]
    %v897 = vld [vmem:[#allocation32 + $0x30] sm:$0xf]
    %v898 = vld [vmem:[#allocation32 + $0x34] sm:$0xf]
    %v899 = vld [vmem:[#allocation32 + $0x38] sm:$0xf]
    %v900 = vld [vmem:[#allocation32 + $0x3c] sm:$0xf]
    %v901 = vld [vmem:[%s67] sm:$0x1]
    %v902 = vld [vmem:[#allocation2] sm:$0xff]
    %v903 = vld [vmem:[#allocation2 + $0x8] sm:$0xff]
    %v904 = vld [vmem:[#allocation5] sm:$0xff]
    %v905 = vld [vmem:[#allocation5 + $0x8] sm:$0xff]
    %v906 = vpack.c.bf16 %v903, %v902
    %v908 = vperm.slane %v453, 0
    %v909 = vperm.slane %v453, 1
    %v918 = vunpack.c.l.b16 %v447
    %v919 = vunpack.c.h.b16 %v447
    %v920 = vunpack.c.l.b16 %v448
    %v921 = vunpack.c.h.b16 %v448
    %v922 = vunpack.c.l.b16 %v449
    %v923 = vunpack.c.h.b16 %v449
    %v924 = vunpack.c.l.b16 %v450
    %v925 = vunpack.c.h.b16 %v450
    %v926 = vunpack.c.l.b16 %v451
    %v927 = vunpack.c.h.b16 %v451
    %v928 = vunpack.c.l.b16 %v452
    %v929 = vunpack.c.h.b16 %v452
    %v930 = vpack.c.b16 %v920, %v918
    %v931 = vpack.c.b16 %v921, %v919
    %v932 = vpack.c.b16 %v924, %v922
    %v933 = vpack.c.b16 %v925, %v923
    %v934 = vpack.c.b16 %v928, %v926
    %v935 = vpack.c.b16 %v929, %v927
    %vm942 = vcmask 392192
    %v944 = vsel %vm942, %v906, 0
    %946 = vmatpush.bf16.msra.mxu0 0
    %947 = vmatpush.bf16.msra.mxu0 0
    %948 = vmatpush.bf16.msra.mxu0 0
    %949 = vmatpush.bf16.msra.mxu0 0
    %950 = vmatpush.bf16.msra.mxu0 0
    %951 = vmatpush.bf16.msra.mxu0 %v934
    %952 = vmatpush.bf16.msra.mxu0 %v932
    %953 = vmatpush.bf16.msra.mxu0 %v930
    %954 = vmatmul.bf16.gmra.mxu0 %v944
    %v955 = vpop.f32.mrf.mxu0
    %v956 = vadd.f32 %v908, %v955
    %v957 = vpop.f32.mrf.mxu0
    %v958 = vadd.f32 %v908, %v957
    %959 = vdwg.mxu0
    %960 = vmatpush.bf16.msra.mxu0 0
    %961 = vmatpush.bf16.msra.mxu0 0
    %962 = vmatpush.bf16.msra.mxu0 0
    %963 = vmatpush.bf16.msra.mxu0 0
    %964 = vmatpush.bf16.msra.mxu0 0
    %965 = vmatpush.bf16.msra.mxu0 %v935
    %966 = vmatpush.bf16.msra.mxu0 %v933
    %967 = vmatpush.bf16.msra.mxu0 %v931
    %968 = vmatmul.bf16.gmra.mxu0 %v944
    %v969 = vpop.f32.mrf.mxu0
    %v970 = vadd.f32 %v909, %v969
    %v971 = vpop.f32.mrf.mxu0
    %v972 = vadd.f32 %v909, %v971
    %973 = vdwg.mxu0
    %vm974 = vcmp.gt.f32.partialorder %v956, 0.0
    %vm975 = vcmp.gt.f32.partialorder %v970, 0.0
    %vm976 = vcmp.gt.f32.partialorder %v958, 0.0
    %vm977 = vcmp.gt.f32.partialorder %v972, 0.0
    %v978 = vmin.f32 %v956, 0.0
    %v979 = vmin.f32 %v970, 0.0
    %v980 = vmin.f32 %v958, 0.0
    %v981 = vmin.f32 %v972, 0.0
    %v982 = vmul.f32 %v978, 1.442695
    %v983 = vpow.pop %v982
    %v984 = vmul.f32 %v979, 1.442695
    %v985 = vpow.pop %v984
    %v986 = vmul.f32 %v980, 1.442695
    %v987 = vpow.pop %v986
    %v988 = vmul.f32 %v981, 1.442695
    %v989 = vpow.pop %v988
    %v990 = vsub.f32 %v983, 1.0
    %v991 = vsub.f32 %v985, 1.0
    %v992 = vsub.f32 %v987, 1.0
    %v993 = vsub.f32 %v989, 1.0
    %v994 = vsel %vm974, %v956, %v990
    %v995 = vsel %vm975, %v970, %v991
    %v996 = vsel %vm976, %v958, %v992
    %v997 = vsel %vm977, %v972, %v993
    %v998 = vpack.c.bf16 %v996, %v994
    %v999 = vpack.c.bf16 %v997, %v995
    %v1001 = vperm.slane %v486, 0
    %v1002 = vperm.slane %v486, 1
    %v1037 = vunpack.c.l.b16 %v454
    %v1038 = vunpack.c.h.b16 %v454
    %v1039 = vunpack.c.l.b16 %v455
    %v1040 = vunpack.c.h.b16 %v455
    %v1041 = vunpack.c.l.b16 %v456
    %v1042 = vunpack.c.h.b16 %v456
    %v1043 = vunpack.c.l.b16 %v457
    %v1044 = vunpack.c.h.b16 %v457
    %v1045 = vunpack.c.l.b16 %v458
    %v1046 = vunpack.c.h.b16 %v458
    %v1047 = vunpack.c.l.b16 %v459
    %v1048 = vunpack.c.h.b16 %v459
    %v1049 = vunpack.c.l.b16 %v460
    %v1050 = vunpack.c.h.b16 %v460
    %v1051 = vunpack.c.l.b16 %v461
    %v1052 = vunpack.c.h.b16 %v461
    %v1053 = vunpack.c.l.b16 %v462
    %v1054 = vunpack.c.h.b16 %v462
    %v1055 = vunpack.c.l.b16 %v463
    %v1056 = vunpack.c.h.b16 %v463
    %v1057 = vunpack.c.l.b16 %v464
    %v1058 = vunpack.c.h.b16 %v464
    %v1059 = vunpack.c.l.b16 %v465
    %v1060 = vunpack.c.h.b16 %v465
    %v1061 = vunpack.c.l.b16 %v466
    %v1062 = vunpack.c.h.b16 %v466
    %v1063 = vunpack.c.l.b16 %v467
    %v1064 = vunpack.c.h.b16 %v467
    %v1065 = vunpack.c.l.b16 %v468
    %v1066 = vunpack.c.h.b16 %v468
    %v1067 = vunpack.c.l.b16 %v469
    %v1068 = vunpack.c.h.b16 %v469
    %v1069 = vunpack.c.l.b16 %v470
    %v1070 = vunpack.c.h.b16 %v470
    %v1071 = vunpack.c.l.b16 %v471
    %v1072 = vunpack.c.h.b16 %v471
    %v1073 = vunpack.c.l.b16 %v472
    %v1074 = vunpack.c.h.b16 %v472
    %v1075 = vunpack.c.l.b16 %v473
    %v1076 = vunpack.c.h.b16 %v473
    %v1077 = vunpack.c.l.b16 %v474
    %v1078 = vunpack.c.h.b16 %v474
    %v1079 = vunpack.c.l.b16 %v475
    %v1080 = vunpack.c.h.b16 %v475
    %v1081 = vunpack.c.l.b16 %v476
    %v1082 = vunpack.c.h.b16 %v476
    %v1083 = vunpack.c.l.b16 %v477
    %v1084 = vunpack.c.h.b16 %v477
    %v1085 = vunpack.c.l.b16 %v478
    %v1086 = vunpack.c.h.b16 %v478
    %v1087 = vunpack.c.l.b16 %v479
    %v1088 = vunpack.c.h.b16 %v479
    %v1089 = vunpack.c.l.b16 %v480
    %v1090 = vunpack.c.h.b16 %v480
    %v1091 = vunpack.c.l.b16 %v481
    %v1092 = vunpack.c.h.b16 %v481
    %v1093 = vunpack.c.l.b16 %v482
    %v1094 = vunpack.c.h.b16 %v482
    %v1095 = vunpack.c.l.b16 %v483
    %v1096 = vunpack.c.h.b16 %v483
    %v1097 = vunpack.c.l.b16 %v484
    %v1098 = vunpack.c.h.b16 %v484
    %v1099 = vunpack.c.l.b16 %v485
    %v1100 = vunpack.c.h.b16 %v485
    %v1101 = vpack.c.b16 %v1039, %v1037
    %v1102 = vpack.c.b16 %v1040, %v1038
    %v1103 = vpack.c.b16 %v1043, %v1041
    %v1104 = vpack.c.b16 %v1044, %v1042
    %v1105 = vpack.c.b16 %v1047, %v1045
    %v1106 = vpack.c.b16 %v1048, %v1046
    %v1107 = vpack.c.b16 %v1051, %v1049
    %v1108 = vpack.c.b16 %v1052, %v1050
    %v1109 = vpack.c.b16 %v1055, %v1053
    %v1110 = vpack.c.b16 %v1056, %v1054
    %v1111 = vpack.c.b16 %v1059, %v1057
    %v1112 = vpack.c.b16 %v1060, %v1058
    %v1113 = vpack.c.b16 %v1063, %v1061
    %v1114 = vpack.c.b16 %v1064, %v1062
    %v1115 = vpack.c.b16 %v1067, %v1065
    %v1116 = vpack.c.b16 %v1068, %v1066
    %v1117 = vpack.c.b16 %v1071, %v1069
    %v1118 = vpack.c.b16 %v1072, %v1070
    %v1119 = vpack.c.b16 %v1075, %v1073
    %v1120 = vpack.c.b16 %v1076, %v1074
    %v1121 = vpack.c.b16 %v1079, %v1077
    %v1122 = vpack.c.b16 %v1080, %v1078
    %v1123 = vpack.c.b16 %v1083, %v1081
    %v1124 = vpack.c.b16 %v1084, %v1082
    %v1125 = vpack.c.b16 %v1087, %v1085
    %v1126 = vpack.c.b16 %v1088, %v1086
    %v1127 = vpack.c.b16 %v1091, %v1089
    %v1128 = vpack.c.b16 %v1092, %v1090
    %v1129 = vpack.c.b16 %v1095, %v1093
    %v1130 = vpack.c.b16 %v1096, %v1094
    %v1131 = vpack.c.b16 %v1099, %v1097
    %v1132 = vpack.c.b16 %v1100, %v1098
    %1165 = vmatpush.bf16.msra.mxu0 %v1115
    %1166 = vmatpush.bf16.msra.mxu0 %v1113
    %1167 = vmatpush.bf16.msra.mxu0 %v1111
    %1168 = vmatpush.bf16.msra.mxu0 %v1109
    %1169 = vmatpush.bf16.msra.mxu0 %v1107
    %1170 = vmatpush.bf16.msra.mxu0 %v1105
    %1171 = vmatpush.bf16.msra.mxu0 %v1103
    %1172 = vmatpush.bf16.msra.mxu0 %v1101
    %1173 = vmatmul.bf16.gmra.mxu0 %v998
    %v1174 = vpop.f32.mrf.mxu0
    %v1175 = vadd.f32 %v1001, %v1174
    %v1176 = vpop.f32.mrf.mxu0
    %v1177 = vadd.f32 %v1001, %v1176
    %1178 = vdwg.mxu0
    %1179 = vmatpush.bf16.msra.mxu0 %v1131
    %1180 = vmatpush.bf16.msra.mxu0 %v1129
    %1181 = vmatpush.bf16.msra.mxu0 %v1127
    %1182 = vmatpush.bf16.msra.mxu0 %v1125
    %1183 = vmatpush.bf16.msra.mxu0 %v1123
    %1184 = vmatpush.bf16.msra.mxu0 %v1121
    %1185 = vmatpush.bf16.msra.mxu0 %v1119
    %1186 = vmatpush.bf16.msra.mxu0 %v1117
    %1187 = vmatmul.bf16.gmra.mxu0 %v999
    %v1188 = vpop.f32.mrf.mxu0
    %v1189 = vadd.f32 %v1175, %v1188
    %v1190 = vpop.f32.mrf.mxu0
    %v1191 = vadd.f32 %v1177, %v1190
    %1192 = vdwg.mxu0
    %1193 = vmatpush.bf16.msra.mxu0 %v1116
    %1194 = vmatpush.bf16.msra.mxu0 %v1114
    %1195 = vmatpush.bf16.msra.mxu0 %v1112
    %1196 = vmatpush.bf16.msra.mxu0 %v1110
    %1197 = vmatpush.bf16.msra.mxu0 %v1108
    %1198 = vmatpush.bf16.msra.mxu0 %v1106
    %1199 = vmatpush.bf16.msra.mxu0 %v1104
    %1200 = vmatpush.bf16.msra.mxu0 %v1102
    %1201 = vmatmul.bf16.gmra.mxu0 %v998
    %v1202 = vpop.f32.mrf.mxu0
    %v1203 = vadd.f32 %v1002, %v1202
    %v1204 = vpop.f32.mrf.mxu0
    %v1205 = vadd.f32 %v1002, %v1204
    %1206 = vdwg.mxu0
    %1207 = vmatpush.bf16.msra.mxu0 %v1132
    %1208 = vmatpush.bf16.msra.mxu0 %v1130
    %1209 = vmatpush.bf16.msra.mxu0 %v1128
    %1210 = vmatpush.bf16.msra.mxu0 %v1126
    %1211 = vmatpush.bf16.msra.mxu0 %v1124
    %1212 = vmatpush.bf16.msra.mxu0 %v1122
    %1213 = vmatpush.bf16.msra.mxu0 %v1120
    %1214 = vmatpush.bf16.msra.mxu0 %v1118
    %1215 = vmatmul.bf16.gmra.mxu0 %v999
    %v1216 = vpop.f32.mrf.mxu0
    %v1217 = vadd.f32 %v1203, %v1216
    %v1218 = vpop.f32.mrf.mxu0
    %v1219 = vadd.f32 %v1205, %v1218
    %1220 = vdwg.mxu0
    %vm1221 = vcmp.gt.f32.partialorder %v1189, 0.0
    %vm1222 = vcmp.gt.f32.partialorder %v1217, 0.0
    %vm1223 = vcmp.gt.f32.partialorder %v1191, 0.0
    %vm1224 = vcmp.gt.f32.partialorder %v1219, 0.0
    %v1225 = vmin.f32 %v1189, 0.0
    %v1226 = vmin.f32 %v1217, 0.0
    %v1227 = vmin.f32 %v1191, 0.0
    %v1228 = vmin.f32 %v1219, 0.0
    %v1229 = vmul.f32 %v1225, 1.442695
    %v1230 = vpow.pop %v1229
    %v1231 = vmul.f32 %v1226, 1.442695
    %v1232 = vpow.pop %v1231
    %v1233 = vmul.f32 %v1227, 1.442695
    %v1234 = vpow.pop %v1233
    %v1235 = vmul.f32 %v1228, 1.442695
    %v1236 = vpow.pop %v1235
    %v1237 = vsub.f32 %v1230, 1.0
    %v1238 = vsub.f32 %v1232, 1.0
    %v1239 = vsub.f32 %v1234, 1.0
    %v1240 = vsub.f32 %v1236, 1.0
    %v1241 = vsel %vm1221, %v1189, %v1237
    %v1242 = vsel %vm1222, %v1217, %v1238
    %v1243 = vsel %vm1223, %v1191, %v1239
    %v1244 = vsel %vm1224, %v1219, %v1240
    %v1245 = vpack.c.bf16 %v1243, %v1241
    %v1246 = vpack.c.bf16 %v1244, %v1242
    %v1248 = vperm.slane %v519, 0
    %v1282 = vunpack.c.l.b16 %v487
    %v1283 = vunpack.c.l.b16 %v488
    %v1284 = vunpack.c.l.b16 %v489
    %v1285 = vunpack.c.l.b16 %v490
    %v1286 = vunpack.c.l.b16 %v491
    %v1287 = vunpack.c.l.b16 %v492
    %v1288 = vunpack.c.l.b16 %v493
    %v1289 = vunpack.c.l.b16 %v494
    %v1290 = vunpack.c.l.b16 %v495
    %v1291 = vunpack.c.l.b16 %v496
    %v1292 = vunpack.c.l.b16 %v497
    %v1293 = vunpack.c.l.b16 %v498
    %v1294 = vunpack.c.l.b16 %v499
    %v1295 = vunpack.c.l.b16 %v500
    %v1296 = vunpack.c.l.b16 %v501
    %v1297 = vunpack.c.l.b16 %v502
    %v1298 = vunpack.c.l.b16 %v503
    %v1299 = vunpack.c.l.b16 %v504
    %v1300 = vunpack.c.l.b16 %v505
    %v1301 = vunpack.c.l.b16 %v506
    %v1302 = vunpack.c.l.b16 %v507
    %v1303 = vunpack.c.l.b16 %v508
    %v1304 = vunpack.c.l.b16 %v509
    %v1305 = vunpack.c.l.b16 %v510
    %v1306 = vunpack.c.l.b16 %v511
    %v1307 = vunpack.c.l.b16 %v512
    %v1308 = vunpack.c.l.b16 %v513
    %v1309 = vunpack.c.l.b16 %v514
    %v1310 = vunpack.c.l.b16 %v515
    %v1311 = vunpack.c.l.b16 %v516
    %v1312 = vunpack.c.l.b16 %v517
    %v1313 = vunpack.c.l.b16 %v518
    %v1314 = vpack.c.b16 %v1283, %v1282
    %v1315 = vpack.c.b16 %v1285, %v1284
    %v1316 = vpack.c.b16 %v1287, %v1286
    %v1317 = vpack.c.b16 %v1289, %v1288
    %v1318 = vpack.c.b16 %v1291, %v1290
    %v1319 = vpack.c.b16 %v1293, %v1292
    %v1320 = vpack.c.b16 %v1295, %v1294
    %v1321 = vpack.c.b16 %v1297, %v1296
    %v1322 = vpack.c.b16 %v1299, %v1298
    %v1323 = vpack.c.b16 %v1301, %v1300
    %v1324 = vpack.c.b16 %v1303, %v1302
    %v1325 = vpack.c.b16 %v1305, %v1304
    %v1326 = vpack.c.b16 %v1307, %v1306
    %v1327 = vpack.c.b16 %v1309, %v1308
    %v1328 = vpack.c.b16 %v1311, %v1310
    %v1329 = vpack.c.b16 %v1313, %v1312
    %1346 = vmatpush.bf16.msra.mxu0 %v1321
    %1347 = vmatpush.bf16.msra.mxu0 %v1320
    %1348 = vmatpush.bf16.msra.mxu0 %v1319
    %1349 = vmatpush.bf16.msra.mxu0 %v1318
    %1350 = vmatpush.bf16.msra.mxu0 %v1317
    %1351 = vmatpush.bf16.msra.mxu0 %v1316
    %1352 = vmatpush.bf16.msra.mxu0 %v1315
    %1353 = vmatpush.bf16.msra.mxu0 %v1314
    %1354 = vmatmul.bf16.gmra.mxu0 %v1245
    %v1355 = vpop.f32.mrf.mxu0
    %v1356 = vadd.f32 %v1248, %v1355
    %v1357 = vpop.f32.mrf.mxu0
    %v1358 = vadd.f32 %v1248, %v1357
    %1359 = vdwg.mxu0
    %1360 = vmatpush.bf16.msra.mxu0 %v1329
    %1361 = vmatpush.bf16.msra.mxu0 %v1328
    %1362 = vmatpush.bf16.msra.mxu0 %v1327
    %1363 = vmatpush.bf16.msra.mxu0 %v1326
    %1364 = vmatpush.bf16.msra.mxu0 %v1325
    %1365 = vmatpush.bf16.msra.mxu0 %v1324
    %1366 = vmatpush.bf16.msra.mxu0 %v1323
    %1367 = vmatpush.bf16.msra.mxu0 %v1322
    %1368 = vmatmul.bf16.gmra.mxu0 %v1246
    %v1369 = vpop.f32.mrf.mxu0
    %v1370 = vadd.f32 %v1356, %v1369
    %v1371 = vpop.f32.mrf.mxu0
    %v1372 = vadd.f32 %v1358, %v1371
    %1373 = vdwg.mxu0
    %v1375 = vperm.slane %v552, 0
    %v1409 = vunpack.c.l.b16 %v520
    %v1410 = vunpack.c.l.b16 %v521
    %v1411 = vunpack.c.l.b16 %v522
    %v1412 = vunpack.c.l.b16 %v523
    %v1413 = vunpack.c.l.b16 %v524
    %v1414 = vunpack.c.l.b16 %v525
    %v1415 = vunpack.c.l.b16 %v526
    %v1416 = vunpack.c.l.b16 %v527
    %v1417 = vunpack.c.l.b16 %v528
    %v1418 = vunpack.c.l.b16 %v529
    %v1419 = vunpack.c.l.b16 %v530
    %v1420 = vunpack.c.l.b16 %v531
    %v1421 = vunpack.c.l.b16 %v532
    %v1422 = vunpack.c.l.b16 %v533
    %v1423 = vunpack.c.l.b16 %v534
    %v1424 = vunpack.c.l.b16 %v535
    %v1425 = vunpack.c.l.b16 %v536
    %v1426 = vunpack.c.l.b16 %v537
    %v1427 = vunpack.c.l.b16 %v538
    %v1428 = vunpack.c.l.b16 %v539
    %v1429 = vunpack.c.l.b16 %v540
    %v1430 = vunpack.c.l.b16 %v541
    %v1431 = vunpack.c.l.b16 %v542
    %v1432 = vunpack.c.l.b16 %v543
    %v1433 = vunpack.c.l.b16 %v544
    %v1434 = vunpack.c.l.b16 %v545
    %v1435 = vunpack.c.l.b16 %v546
    %v1436 = vunpack.c.l.b16 %v547
    %v1437 = vunpack.c.l.b16 %v548
    %v1438 = vunpack.c.l.b16 %v549
    %v1439 = vunpack.c.l.b16 %v550
    %v1440 = vunpack.c.l.b16 %v551
    %v1441 = vpack.c.b16 %v1410, %v1409
    %v1442 = vpack.c.b16 %v1412, %v1411
    %v1443 = vpack.c.b16 %v1414, %v1413
    %v1444 = vpack.c.b16 %v1416, %v1415
    %v1445 = vpack.c.b16 %v1418, %v1417
    %v1446 = vpack.c.b16 %v1420, %v1419
    %v1447 = vpack.c.b16 %v1422, %v1421
    %v1448 = vpack.c.b16 %v1424, %v1423
    %v1449 = vpack.c.b16 %v1426, %v1425
    %v1450 = vpack.c.b16 %v1428, %v1427
    %v1451 = vpack.c.b16 %v1430, %v1429
    %v1452 = vpack.c.b16 %v1432, %v1431
    %v1453 = vpack.c.b16 %v1434, %v1433
    %v1454 = vpack.c.b16 %v1436, %v1435
    %v1455 = vpack.c.b16 %v1438, %v1437
    %v1456 = vpack.c.b16 %v1440, %v1439
    %1473 = vmatpush.bf16.msra.mxu0 %v1448
    %1474 = vmatpush.bf16.msra.mxu0 %v1447
    %1475 = vmatpush.bf16.msra.mxu0 %v1446
    %1476 = vmatpush.bf16.msra.mxu0 %v1445
    %1477 = vmatpush.bf16.msra.mxu0 %v1444
    %1478 = vmatpush.bf16.msra.mxu0 %v1443
    %1479 = vmatpush.bf16.msra.mxu0 %v1442
    %1480 = vmatpush.bf16.msra.mxu0 %v1441
    %1481 = vmatmul.bf16.gmra.mxu0 %v1245
    %v1482 = vpop.f32.mrf.mxu0
    %v1483 = vadd.f32 %v1375, %v1482
    %v1484 = vpop.f32.mrf.mxu0
    %v1485 = vadd.f32 %v1375, %v1484
    %1486 = vdwg.mxu0
    %1487 = vmatpush.bf16.msra.mxu0 %v1456
    %1488 = vmatpush.bf16.msra.mxu0 %v1455
    %1489 = vmatpush.bf16.msra.mxu0 %v1454
    %1490 = vmatpush.bf16.msra.mxu0 %v1453
    %1491 = vmatpush.bf16.msra.mxu0 %v1452
    %1492 = vmatpush.bf16.msra.mxu0 %v1451
    %1493 = vmatpush.bf16.msra.mxu0 %v1450
    %1494 = vmatpush.bf16.msra.mxu0 %v1449
    %1495 = vmatmul.bf16.gmra.mxu0 %v1246
    %v1496 = vpop.f32.mrf.mxu0
    %v1497 = vadd.f32 %v1483, %v1496
    %v1498 = vpop.f32.mrf.mxu0
    %v1499 = vadd.f32 %v1485, %v1498
    %1500 = vdwg.mxu0
    %v1501 = vmul.f32 %v1497, %v1497
    %v1502 = vmul.f32 %v1499, %v1499
    %vm1503 = vcmask 261120
    %v1504 = vsel %vm1503, %v1501, 0.0
    %1505 = vadd.xlane.f32.xlu0 %v1504
    %v1506 = vpop.xlane.xlu0 %1505
    %v1507 = vsel %vm1503, %v1502, 0.0
    %1508 = vadd.xlane.f32.xlu0 %v1507
    %v1509 = vpop.xlane.xlu0 %1508
    %v1510 = vmax.f32 %v1506, 1e-24
    %v1511 = vmax.f32 %v1509, 1e-24
    %v1512 = vrsqrt.pop %v1510
    %v1513 = vmul.f32 %v1512, %v1510
    %v1514 = vmul.f32 %v1513, %v1512
    %v1515 = vmul.f32 0.5, %v1514
    %v1516 = vsub.f32 1.5, %v1515
    %v1517 = vmul.f32 %v1512, %v1516
    %vm1518 = vweird.f32 %v1510
    %vm1519 = vweird.f32 %v1512
    %vm1520 = vmor %vm1518, %vm1519
    %v1521 = vsel %vm1520, %v1512, %v1517
    %v1522 = vrsqrt.pop %v1511
    %v1523 = vmul.f32 %v1522, %v1511
    %v1524 = vmul.f32 %v1523, %v1522
    %v1525 = vmul.f32 0.5, %v1524
    %v1526 = vsub.f32 1.5, %v1525
    %v1527 = vmul.f32 %v1522, %v1526
    %vm1528 = vweird.f32 %v1511
    %vm1529 = vweird.f32 %v1522
    %vm1530 = vmor %vm1528, %vm1529
    %v1531 = vsel %vm1530, %v1522, %v1527
    %v1532 = vmul.f32 %v1497, %v1521
    %v1533 = vmul.f32 %v1499, %v1531
    %v1534 = vpack.c.bf16 %v1372, %v1370
    %1536 = vst [vmem:[#allocation1] ss:$4 sm:$0xff] %v559
    %v1537 = vld.sshfl [vmem:[#allocation1] sm:$0xff pattern:$0x73625140]
    %v1538 = vld.sshfl [vmem:[#allocation1 + $0x8] sm:$0xff pattern:$0x73625140]
    %vm1539 = vcmask 23552
    %v1541 = vsel %vm1539, %v1534, 0
    %vm1543 = vcmask 1040384
    %vm1544 = vcmask 1041408
    %v1545 = vsel %vm1543, 4294967295, 65535
    %v1546 = vsel %vm1544, %v1545, 0
    %v1547 = vand.u32 %v1537, %v1546
    %v1549 = vand.u32 %v1538, %v1546
    %1551 = vmatpush.bf16.msra.mxu0 0
    %1552 = vmatpush.bf16.msra.mxu0 0
    %1553 = vmatpush.bf16.msra.mxu0 0
    %1554 = vmatpush.bf16.msra.mxu0 0
    %1555 = vmatpush.bf16.msra.mxu0 0
    %1556 = vmatpush.bf16.msra.mxu0 0
    %1557 = vmatpush.bf16.msra.mxu0 0
    %1558 = vmatpush.bf16.msra.mxu0 %v1547
    %1559 = vmatmul.bf16.gmra.mxu0 %v1541
    %v1560 = vpop.f32.mrf.mxu0
    %v1561 = vadd.f32 0.0, %v1560
    %v1562 = vpop.f32.mrf.mxu0
    %v1563 = vadd.f32 0.0, %v1562
    %1564 = vdwg.mxu0
    %1565 = vmatpush.bf16.msra.mxu0 0
    %1566 = vmatpush.bf16.msra.mxu0 0
    %1567 = vmatpush.bf16.msra.mxu0 0
    %1568 = vmatpush.bf16.msra.mxu0 0
    %1569 = vmatpush.bf16.msra.mxu0 0
    %1570 = vmatpush.bf16.msra.mxu0 0
    %1571 = vmatpush.bf16.msra.mxu0 0
    %1572 = vmatpush.bf16.msra.mxu0 %v1549
    %1573 = vmatmul.bf16.gmra.mxu0 %v1541
    %v1574 = vpop.f32.mrf.mxu0
    %v1575 = vadd.f32 0.0, %v1574
    %v1576 = vpop.f32.mrf.mxu0
    %v1577 = vadd.f32 0.0, %v1576
    %1578 = vdwg.mxu0
    %v1585 = vunpack.c.l.b16 %v553
    %v1586 = vunpack.c.h.b16 %v553
    %v1587 = vunpack.c.l.b16 %v554
    %v1588 = vunpack.c.h.b16 %v554
    %v1589 = vunpack.c.l.b16 %v555
    %v1590 = vunpack.c.h.b16 %v555
    %v1591 = vunpack.c.l.b16 %v556
    %v1592 = vunpack.c.h.b16 %v556
    %v1593 = vunpack.c.l.b16 %v557
    %v1594 = vunpack.c.h.b16 %v557
    %v1595 = vunpack.c.l.b16 %v558
    %v1596 = vunpack.c.h.b16 %v558
    %v1597 = vpack.c.b16 %v1587, %v1585
    %v1598 = vpack.c.b16 %v1588, %v1586
    %v1599 = vpack.c.b16 %v1591, %v1589
    %v1600 = vpack.c.b16 %v1592, %v1590
    %v1601 = vpack.c.b16 %v1595, %v1593
    %v1602 = vpack.c.b16 %v1596, %v1594
    %1609 = vmatpush.bf16.msra.mxu0 0
    %1610 = vmatpush.bf16.msra.mxu0 0
    %1611 = vmatpush.bf16.msra.mxu0 0
    %1612 = vmatpush.bf16.msra.mxu0 0
    %1613 = vmatpush.bf16.msra.mxu0 0
    %1614 = vmatpush.bf16.msra.mxu0 %v1601
    %1615 = vmatpush.bf16.msra.mxu0 %v1599
    %1616 = vmatpush.bf16.msra.mxu0 %v1597
    %1617 = vmatmul.bf16.gmra.mxu0 %v944
    %v1618 = vpop.f32.mrf.mxu0
    %v1619 = vadd.f32 %v1561, %v1618
    %v1620 = vpop.f32.mrf.mxu0
    %v1621 = vadd.f32 %v1563, %v1620
    %1622 = vdwg.mxu0
    %1623 = vmatpush.bf16.msra.mxu0 0
    %1624 = vmatpush.bf16.msra.mxu0 0
    %1625 = vmatpush.bf16.msra.mxu0 0
    %1626 = vmatpush.bf16.msra.mxu0 0
    %1627 = vmatpush.bf16.msra.mxu0 0
    %1628 = vmatpush.bf16.msra.mxu0 %v1602
    %1629 = vmatpush.bf16.msra.mxu0 %v1600
    %1630 = vmatpush.bf16.msra.mxu0 %v1598
    %1631 = vmatmul.bf16.gmra.mxu0 %v944
    %v1632 = vpop.f32.mrf.mxu0
    %v1633 = vadd.f32 %v1575, %v1632
    %v1634 = vpop.f32.mrf.mxu0
    %v1635 = vadd.f32 %v1577, %v1634
    %1636 = vdwg.mxu0
    %v1637 = vpack.c.bf16 %v1533, %v1532
    %v1642 = vunpack.c.l.b16 %v560
    %v1643 = vunpack.c.h.b16 %v560
    %v1644 = vunpack.c.l.b16 %v561
    %v1645 = vunpack.c.h.b16 %v561
    %v1646 = vunpack.c.l.b16 %v562
    %v1647 = vunpack.c.h.b16 %v562
    %v1648 = vunpack.c.l.b16 %v563
    %v1649 = vunpack.c.h.b16 %v563
    %v1650 = vpack.c.b16 %v1644, %v1642
    %v1651 = vpack.c.b16 %v1645, %v1643
    %v1652 = vpack.c.b16 %v1648, %v1646
    %v1653 = vpack.c.b16 %v1649, %v1647
    %v1659 = vsel %vm1503, %v1637, 0
    %1661 = vmatpush.bf16.msra.mxu0 0
    %1662 = vmatpush.bf16.msra.mxu0 0
    %1663 = vmatpush.bf16.msra.mxu0 0
    %1664 = vmatpush.bf16.msra.mxu0 0
    %1665 = vmatpush.bf16.msra.mxu0 0
    %1666 = vmatpush.bf16.msra.mxu0 0
    %1667 = vmatpush.bf16.msra.mxu0 %v1652
    %1668 = vmatpush.bf16.msra.mxu0 %v1650
    %1669 = vmatmul.bf16.gmra.mxu0 %v1659
    %v1670 = vpop.f32.mrf.mxu0
    %v1671 = vadd.f32 0.0, %v1670
    %v1672 = vpop.f32.mrf.mxu0
    %v1673 = vadd.f32 0.0, %v1672
    %1674 = vdwg.mxu0
    %1675 = vmatpush.bf16.msra.mxu0 0
    %1676 = vmatpush.bf16.msra.mxu0 0
    %1677 = vmatpush.bf16.msra.mxu0 0
    %1678 = vmatpush.bf16.msra.mxu0 0
    %1679 = vmatpush.bf16.msra.mxu0 0
    %1680 = vmatpush.bf16.msra.mxu0 0
    %1681 = vmatpush.bf16.msra.mxu0 %v1653
    %1682 = vmatpush.bf16.msra.mxu0 %v1651
    %1683 = vmatmul.bf16.gmra.mxu0 %v1659
    %v1684 = vpop.f32.mrf.mxu0
    %v1685 = vadd.f32 0.0, %v1684
    %v1686 = vpop.f32.mrf.mxu0
    %v1687 = vadd.f32 0.0, %v1686
    %1688 = vdwg.mxu0
    %v1689 = vadd.f32 %v1619, %v1671
    %v1690 = vadd.f32 %v1633, %v1685
    %v1691 = vadd.f32 %v1621, %v1673
    %v1692 = vadd.f32 %v1635, %v1687
    %v1694 = vperm.slane %v564, 0
    %v1695 = vperm.slane %v564, 1
    %v1698 = vadd.f32 %v1689, %v1694
    %v1699 = vadd.f32 %v1690, %v1695
    %v1700 = vadd.f32 %v1691, %v1694
    %v1701 = vadd.f32 %v1692, %v1695
    %vm1702 = vcmp.gt.f32.partialorder %v1698, 0.0
    %vm1703 = vcmp.gt.f32.partialorder %v1699, 0.0
    %vm1704 = vcmp.gt.f32.partialorder %v1700, 0.0
    %vm1705 = vcmp.gt.f32.partialorder %v1701, 0.0
    %v1706 = vmin.f32 %v1698, 0.0
    %v1707 = vmin.f32 %v1699, 0.0
    %v1708 = vmin.f32 %v1700, 0.0
    %v1709 = vmin.f32 %v1701, 0.0
    %v1710 = vmul.f32 %v1706, 1.442695
    %v1711 = vpow.pop %v1710
    %v1712 = vmul.f32 %v1707, 1.442695
    %v1713 = vpow.pop %v1712
    %v1714 = vmul.f32 %v1708, 1.442695
    %v1715 = vpow.pop %v1714
    %v1716 = vmul.f32 %v1709, 1.442695
    %v1717 = vpow.pop %v1716
    %v1718 = vsub.f32 %v1711, 1.0
    %v1719 = vsub.f32 %v1713, 1.0
    %v1720 = vsub.f32 %v1715, 1.0
    %v1721 = vsub.f32 %v1717, 1.0
    %v1722 = vsel %vm1702, %v1698, %v1718
    %v1723 = vsel %vm1703, %v1699, %v1719
    %v1724 = vsel %vm1704, %v1700, %v1720
    %v1725 = vsel %vm1705, %v1701, %v1721
    %v1726 = vpack.c.bf16 %v1724, %v1722
    %v1727 = vpack.c.bf16 %v1725, %v1723
    %v1729 = vperm.slane %v597, 0
    %v1730 = vperm.slane %v597, 1
    %v1765 = vunpack.c.l.b16 %v565
    %v1766 = vunpack.c.h.b16 %v565
    %v1767 = vunpack.c.l.b16 %v566
    %v1768 = vunpack.c.h.b16 %v566
    %v1769 = vunpack.c.l.b16 %v567
    %v1770 = vunpack.c.h.b16 %v567
    %v1771 = vunpack.c.l.b16 %v568
    %v1772 = vunpack.c.h.b16 %v568
    %v1773 = vunpack.c.l.b16 %v569
    %v1774 = vunpack.c.h.b16 %v569
    %v1775 = vunpack.c.l.b16 %v570
    %v1776 = vunpack.c.h.b16 %v570
    %v1777 = vunpack.c.l.b16 %v571
    %v1778 = vunpack.c.h.b16 %v571
    %v1779 = vunpack.c.l.b16 %v572
    %v1780 = vunpack.c.h.b16 %v572
    %v1781 = vunpack.c.l.b16 %v573
    %v1782 = vunpack.c.h.b16 %v573
    %v1783 = vunpack.c.l.b16 %v574
    %v1784 = vunpack.c.h.b16 %v574
    %v1785 = vunpack.c.l.b16 %v575
    %v1786 = vunpack.c.h.b16 %v575
    %v1787 = vunpack.c.l.b16 %v576
    %v1788 = vunpack.c.h.b16 %v576
    %v1789 = vunpack.c.l.b16 %v577
    %v1790 = vunpack.c.h.b16 %v577
    %v1791 = vunpack.c.l.b16 %v578
    %v1792 = vunpack.c.h.b16 %v578
    %v1793 = vunpack.c.l.b16 %v579
    %v1794 = vunpack.c.h.b16 %v579
    %v1795 = vunpack.c.l.b16 %v580
    %v1796 = vunpack.c.h.b16 %v580
    %v1797 = vunpack.c.l.b16 %v581
    %v1798 = vunpack.c.h.b16 %v581
    %v1799 = vunpack.c.l.b16 %v582
    %v1800 = vunpack.c.h.b16 %v582
    %v1801 = vunpack.c.l.b16 %v583
    %v1802 = vunpack.c.h.b16 %v583
    %v1803 = vunpack.c.l.b16 %v584
    %v1804 = vunpack.c.h.b16 %v584
    %v1805 = vunpack.c.l.b16 %v585
    %v1806 = vunpack.c.h.b16 %v585
    %v1807 = vunpack.c.l.b16 %v586
    %v1808 = vunpack.c.h.b16 %v586
    %v1809 = vunpack.c.l.b16 %v587
    %v1810 = vunpack.c.h.b16 %v587
    %v1811 = vunpack.c.l.b16 %v588
    %v1812 = vunpack.c.h.b16 %v588
    %v1813 = vunpack.c.l.b16 %v589
    %v1814 = vunpack.c.h.b16 %v589
    %v1815 = vunpack.c.l.b16 %v590
    %v1816 = vunpack.c.h.b16 %v590
    %v1817 = vunpack.c.l.b16 %v591
    %v1818 = vunpack.c.h.b16 %v591
    %v1819 = vunpack.c.l.b16 %v592
    %v1820 = vunpack.c.h.b16 %v592
    %v1821 = vunpack.c.l.b16 %v593
    %v1822 = vunpack.c.h.b16 %v593
    %v1823 = vunpack.c.l.b16 %v594
    %v1824 = vunpack.c.h.b16 %v594
    %v1825 = vunpack.c.l.b16 %v595
    %v1826 = vunpack.c.h.b16 %v595
    %v1827 = vunpack.c.l.b16 %v596
    %v1828 = vunpack.c.h.b16 %v596
    %v1829 = vpack.c.b16 %v1767, %v1765
    %v1830 = vpack.c.b16 %v1768, %v1766
    %v1831 = vpack.c.b16 %v1771, %v1769
    %v1832 = vpack.c.b16 %v1772, %v1770
    %v1833 = vpack.c.b16 %v1775, %v1773
    %v1834 = vpack.c.b16 %v1776, %v1774
    %v1835 = vpack.c.b16 %v1779, %v1777
    %v1836 = vpack.c.b16 %v1780, %v1778
    %v1837 = vpack.c.b16 %v1783, %v1781
    %v1838 = vpack.c.b16 %v1784, %v1782
    %v1839 = vpack.c.b16 %v1787, %v1785
    %v1840 = vpack.c.b16 %v1788, %v1786
    %v1841 = vpack.c.b16 %v1791, %v1789
    %v1842 = vpack.c.b16 %v1792, %v1790
    %v1843 = vpack.c.b16 %v1795, %v1793
    %v1844 = vpack.c.b16 %v1796, %v1794
    %v1845 = vpack.c.b16 %v1799, %v1797
    %v1846 = vpack.c.b16 %v1800, %v1798
    %v1847 = vpack.c.b16 %v1803, %v1801
    %v1848 = vpack.c.b16 %v1804, %v1802
    %v1849 = vpack.c.b16 %v1807, %v1805
    %v1850 = vpack.c.b16 %v1808, %v1806
    %v1851 = vpack.c.b16 %v1811, %v1809
    %v1852 = vpack.c.b16 %v1812, %v1810
    %v1853 = vpack.c.b16 %v1815, %v1813
    %v1854 = vpack.c.b16 %v1816, %v1814
    %v1855 = vpack.c.b16 %v1819, %v1817
    %v1856 = vpack.c.b16 %v1820, %v1818
    %v1857 = vpack.c.b16 %v1823, %v1821
    %v1858 = vpack.c.b16 %v1824, %v1822
    %v1859 = vpack.c.b16 %v1827, %v1825
    %v1860 = vpack.c.b16 %v1828, %v1826
    %1893 = vmatpush.bf16.msra.mxu0 %v1843
    %1894 = vmatpush.bf16.msra.mxu0 %v1841
    %1895 = vmatpush.bf16.msra.mxu0 %v1839
    %1896 = vmatpush.bf16.msra.mxu0 %v1837
    %1897 = vmatpush.bf16.msra.mxu0 %v1835
    %1898 = vmatpush.bf16.msra.mxu0 %v1833
    %1899 = vmatpush.bf16.msra.mxu0 %v1831
    %1900 = vmatpush.bf16.msra.mxu0 %v1829
    %1901 = vmatmul.bf16.gmra.mxu0 %v1726
    %v1902 = vpop.f32.mrf.mxu0
    %v1903 = vadd.f32 %v1729, %v1902
    %v1904 = vpop.f32.mrf.mxu0
    %v1905 = vadd.f32 %v1729, %v1904
    %1906 = vdwg.mxu0
    %1907 = vmatpush.bf16.msra.mxu0 %v1859
    %1908 = vmatpush.bf16.msra.mxu0 %v1857
    %1909 = vmatpush.bf16.msra.mxu0 %v1855
    %1910 = vmatpush.bf16.msra.mxu0 %v1853
    %1911 = vmatpush.bf16.msra.mxu0 %v1851
    %1912 = vmatpush.bf16.msra.mxu0 %v1849
    %1913 = vmatpush.bf16.msra.mxu0 %v1847
    %1914 = vmatpush.bf16.msra.mxu0 %v1845
    %1915 = vmatmul.bf16.gmra.mxu0 %v1727
    %v1916 = vpop.f32.mrf.mxu0
    %v1917 = vadd.f32 %v1903, %v1916
    %v1918 = vpop.f32.mrf.mxu0
    %v1919 = vadd.f32 %v1905, %v1918
    %1920 = vdwg.mxu0
    %1921 = vmatpush.bf16.msra.mxu0 %v1844
    %1922 = vmatpush.bf16.msra.mxu0 %v1842
    %1923 = vmatpush.bf16.msra.mxu0 %v1840
    %1924 = vmatpush.bf16.msra.mxu0 %v1838
    %1925 = vmatpush.bf16.msra.mxu0 %v1836
    %1926 = vmatpush.bf16.msra.mxu0 %v1834
    %1927 = vmatpush.bf16.msra.mxu0 %v1832
    %1928 = vmatpush.bf16.msra.mxu0 %v1830
    %1929 = vmatmul.bf16.gmra.mxu0 %v1726
    %v1930 = vpop.f32.mrf.mxu0
    %v1931 = vadd.f32 %v1730, %v1930
    %v1932 = vpop.f32.mrf.mxu0
    %v1933 = vadd.f32 %v1730, %v1932
    %1934 = vdwg.mxu0
    %1935 = vmatpush.bf16.msra.mxu0 %v1860
    %1936 = vmatpush.bf16.msra.mxu0 %v1858
    %1937 = vmatpush.bf16.msra.mxu0 %v1856
    %1938 = vmatpush.bf16.msra.mxu0 %v1854
    %1939 = vmatpush.bf16.msra.mxu0 %v1852
    %1940 = vmatpush.bf16.msra.mxu0 %v1850
    %1941 = vmatpush.bf16.msra.mxu0 %v1848
    %1942 = vmatpush.bf16.msra.mxu0 %v1846
    %1943 = vmatmul.bf16.gmra.mxu0 %v1727
    %v1944 = vpop.f32.mrf.mxu0
    %v1945 = vadd.f32 %v1931, %v1944
    %v1946 = vpop.f32.mrf.mxu0
    %v1947 = vadd.f32 %v1933, %v1946
    %1948 = vdwg.mxu0
    %vm1949 = vcmp.gt.f32.partialorder %v1917, 0.0
    %vm1950 = vcmp.gt.f32.partialorder %v1945, 0.0
    %vm1951 = vcmp.gt.f32.partialorder %v1919, 0.0
    %vm1952 = vcmp.gt.f32.partialorder %v1947, 0.0
    %v1953 = vmin.f32 %v1917, 0.0
    %v1954 = vmin.f32 %v1945, 0.0
    %v1955 = vmin.f32 %v1919, 0.0
    %v1956 = vmin.f32 %v1947, 0.0
    %v1957 = vmul.f32 %v1953, 1.442695
    %v1958 = vpow.pop %v1957
    %v1959 = vmul.f32 %v1954, 1.442695
    %v1960 = vpow.pop %v1959
    %v1961 = vmul.f32 %v1955, 1.442695
    %v1962 = vpow.pop %v1961
    %v1963 = vmul.f32 %v1956, 1.442695
    %v1964 = vpow.pop %v1963
    %v1965 = vsub.f32 %v1958, 1.0
    %v1966 = vsub.f32 %v1960, 1.0
    %v1967 = vsub.f32 %v1962, 1.0
    %v1968 = vsub.f32 %v1964, 1.0
    %v1969 = vsel %vm1949, %v1917, %v1965
    %v1970 = vsel %vm1950, %v1945, %v1966
    %v1971 = vsel %vm1951, %v1919, %v1967
    %v1972 = vsel %vm1952, %v1947, %v1968
    %v1973 = vpack.c.bf16 %v1971, %v1969
    %v1974 = vpack.c.bf16 %v1972, %v1970
    %v1976 = vperm.slane %v630, 0
    %v1977 = vperm.slane %v630, 1
    %v2012 = vunpack.c.l.b16 %v598
    %v2013 = vunpack.c.h.b16 %v598
    %v2014 = vunpack.c.l.b16 %v599
    %v2015 = vunpack.c.h.b16 %v599
    %v2016 = vunpack.c.l.b16 %v600
    %v2017 = vunpack.c.h.b16 %v600
    %v2018 = vunpack.c.l.b16 %v601
    %v2019 = vunpack.c.h.b16 %v601
    %v2020 = vunpack.c.l.b16 %v602
    %v2021 = vunpack.c.h.b16 %v602
    %v2022 = vunpack.c.l.b16 %v603
    %v2023 = vunpack.c.h.b16 %v603
    %v2024 = vunpack.c.l.b16 %v604
    %v2025 = vunpack.c.h.b16 %v604
    %v2026 = vunpack.c.l.b16 %v605
    %v2027 = vunpack.c.h.b16 %v605
    %v2028 = vunpack.c.l.b16 %v606
    %v2029 = vunpack.c.h.b16 %v606
    %v2030 = vunpack.c.l.b16 %v607
    %v2031 = vunpack.c.h.b16 %v607
    %v2032 = vunpack.c.l.b16 %v608
    %v2033 = vunpack.c.h.b16 %v608
    %v2034 = vunpack.c.l.b16 %v609
    %v2035 = vunpack.c.h.b16 %v609
    %v2036 = vunpack.c.l.b16 %v610
    %v2037 = vunpack.c.h.b16 %v610
    %v2038 = vunpack.c.l.b16 %v611
    %v2039 = vunpack.c.h.b16 %v611
    %v2040 = vunpack.c.l.b16 %v612
    %v2041 = vunpack.c.h.b16 %v612
    %v2042 = vunpack.c.l.b16 %v613
    %v2043 = vunpack.c.h.b16 %v613
    %v2044 = vunpack.c.l.b16 %v614
    %v2045 = vunpack.c.h.b16 %v614
    %v2046 = vunpack.c.l.b16 %v615
    %v2047 = vunpack.c.h.b16 %v615
    %v2048 = vunpack.c.l.b16 %v616
    %v2049 = vunpack.c.h.b16 %v616
    %v2050 = vunpack.c.l.b16 %v617
    %v2051 = vunpack.c.h.b16 %v617
    %v2052 = vunpack.c.l.b16 %v618
    %v2053 = vunpack.c.h.b16 %v618
    %v2054 = vunpack.c.l.b16 %v619
    %v2055 = vunpack.c.h.b16 %v619
    %v2056 = vunpack.c.l.b16 %v620
    %v2057 = vunpack.c.h.b16 %v620
    %v2058 = vunpack.c.l.b16 %v621
    %v2059 = vunpack.c.h.b16 %v621
    %v2060 = vunpack.c.l.b16 %v622
    %v2061 = vunpack.c.h.b16 %v622
    %v2062 = vunpack.c.l.b16 %v623
    %v2063 = vunpack.c.h.b16 %v623
    %v2064 = vunpack.c.l.b16 %v624
    %v2065 = vunpack.c.h.b16 %v624
    %v2066 = vunpack.c.l.b16 %v625
    %v2067 = vunpack.c.h.b16 %v625
    %v2068 = vunpack.c.l.b16 %v626
    %v2069 = vunpack.c.h.b16 %v626
    %v2070 = vunpack.c.l.b16 %v627
    %v2071 = vunpack.c.h.b16 %v627
    %v2072 = vunpack.c.l.b16 %v628
    %v2073 = vunpack.c.h.b16 %v628
    %v2074 = vunpack.c.l.b16 %v629
    %v2075 = vunpack.c.h.b16 %v629
    %v2076 = vpack.c.b16 %v2014, %v2012
    %v2077 = vpack.c.b16 %v2015, %v2013
    %v2078 = vpack.c.b16 %v2018, %v2016
    %v2079 = vpack.c.b16 %v2019, %v2017
    %v2080 = vpack.c.b16 %v2022, %v2020
    %v2081 = vpack.c.b16 %v2023, %v2021
    %v2082 = vpack.c.b16 %v2026, %v2024
    %v2083 = vpack.c.b16 %v2027, %v2025
    %v2084 = vpack.c.b16 %v2030, %v2028
    %v2085 = vpack.c.b16 %v2031, %v2029
    %v2086 = vpack.c.b16 %v2034, %v2032
    %v2087 = vpack.c.b16 %v2035, %v2033
    %v2088 = vpack.c.b16 %v2038, %v2036
    %v2089 = vpack.c.b16 %v2039, %v2037
    %v2090 = vpack.c.b16 %v2042, %v2040
    %v2091 = vpack.c.b16 %v2043, %v2041
    %v2092 = vpack.c.b16 %v2046, %v2044
    %v2093 = vpack.c.b16 %v2047, %v2045
    %v2094 = vpack.c.b16 %v2050, %v2048
    %v2095 = vpack.c.b16 %v2051, %v2049
    %v2096 = vpack.c.b16 %v2054, %v2052
    %v2097 = vpack.c.b16 %v2055, %v2053
    %v2098 = vpack.c.b16 %v2058, %v2056
    %v2099 = vpack.c.b16 %v2059, %v2057
    %v2100 = vpack.c.b16 %v2062, %v2060
    %v2101 = vpack.c.b16 %v2063, %v2061
    %v2102 = vpack.c.b16 %v2066, %v2064
    %v2103 = vpack.c.b16 %v2067, %v2065
    %v2104 = vpack.c.b16 %v2070, %v2068
    %v2105 = vpack.c.b16 %v2071, %v2069
    %v2106 = vpack.c.b16 %v2074, %v2072
    %v2107 = vpack.c.b16 %v2075, %v2073
    %2140 = vmatpush.bf16.msra.mxu0 %v2090
    %2141 = vmatpush.bf16.msra.mxu0 %v2088
    %2142 = vmatpush.bf16.msra.mxu0 %v2086
    %2143 = vmatpush.bf16.msra.mxu0 %v2084
    %2144 = vmatpush.bf16.msra.mxu0 %v2082
    %2145 = vmatpush.bf16.msra.mxu0 %v2080
    %2146 = vmatpush.bf16.msra.mxu0 %v2078
    %2147 = vmatpush.bf16.msra.mxu0 %v2076
    %2148 = vmatmul.bf16.gmra.mxu0 %v1973
    %v2149 = vpop.f32.mrf.mxu0
    %v2150 = vadd.f32 %v1976, %v2149
    %v2151 = vpop.f32.mrf.mxu0
    %v2152 = vadd.f32 %v1976, %v2151
    %2153 = vdwg.mxu0
    %2154 = vmatpush.bf16.msra.mxu0 %v2106
    %2155 = vmatpush.bf16.msra.mxu0 %v2104
    %2156 = vmatpush.bf16.msra.mxu0 %v2102
    %2157 = vmatpush.bf16.msra.mxu0 %v2100
    %2158 = vmatpush.bf16.msra.mxu0 %v2098
    %2159 = vmatpush.bf16.msra.mxu0 %v2096
    %2160 = vmatpush.bf16.msra.mxu0 %v2094
    %2161 = vmatpush.bf16.msra.mxu0 %v2092
    %2162 = vmatmul.bf16.gmra.mxu0 %v1974
    %v2163 = vpop.f32.mrf.mxu0
    %v2164 = vadd.f32 %v2150, %v2163
    %v2165 = vpop.f32.mrf.mxu0
    %v2166 = vadd.f32 %v2152, %v2165
    %2167 = vdwg.mxu0
    %2168 = vmatpush.bf16.msra.mxu0 %v2091
    %2169 = vmatpush.bf16.msra.mxu0 %v2089
    %2170 = vmatpush.bf16.msra.mxu0 %v2087
    %2171 = vmatpush.bf16.msra.mxu0 %v2085
    %2172 = vmatpush.bf16.msra.mxu0 %v2083
    %2173 = vmatpush.bf16.msra.mxu0 %v2081
    %2174 = vmatpush.bf16.msra.mxu0 %v2079
    %2175 = vmatpush.bf16.msra.mxu0 %v2077
    %2176 = vmatmul.bf16.gmra.mxu0 %v1973
    %v2177 = vpop.f32.mrf.mxu0
    %v2178 = vadd.f32 %v1977, %v2177
    %v2179 = vpop.f32.mrf.mxu0
    %v2180 = vadd.f32 %v1977, %v2179
    %2181 = vdwg.mxu0
    %2182 = vmatpush.bf16.msra.mxu0 %v2107
    %2183 = vmatpush.bf16.msra.mxu0 %v2105
    %2184 = vmatpush.bf16.msra.mxu0 %v2103
    %2185 = vmatpush.bf16.msra.mxu0 %v2101
    %2186 = vmatpush.bf16.msra.mxu0 %v2099
    %2187 = vmatpush.bf16.msra.mxu0 %v2097
    %2188 = vmatpush.bf16.msra.mxu0 %v2095
    %2189 = vmatpush.bf16.msra.mxu0 %v2093
    %2190 = vmatmul.bf16.gmra.mxu0 %v1974
    %v2191 = vpop.f32.mrf.mxu0
    %v2192 = vadd.f32 %v2178, %v2191
    %v2193 = vpop.f32.mrf.mxu0
    %v2194 = vadd.f32 %v2180, %v2193
    %2195 = vdwg.mxu0
    %vm2196 = vcmp.gt.f32.partialorder %v2164, 0.0
    %vm2197 = vcmp.gt.f32.partialorder %v2192, 0.0
    %vm2198 = vcmp.gt.f32.partialorder %v2166, 0.0
    %vm2199 = vcmp.gt.f32.partialorder %v2194, 0.0
    %v2200 = vmin.f32 %v2164, 0.0
    %v2201 = vmin.f32 %v2192, 0.0
    %v2202 = vmin.f32 %v2166, 0.0
    %v2203 = vmin.f32 %v2194, 0.0
    %v2204 = vmul.f32 %v2200, 1.442695
    %v2205 = vpow.pop %v2204
    %v2206 = vmul.f32 %v2201, 1.442695
    %v2207 = vpow.pop %v2206
    %v2208 = vmul.f32 %v2202, 1.442695
    %v2209 = vpow.pop %v2208
    %v2210 = vmul.f32 %v2203, 1.442695
    %v2211 = vpow.pop %v2210
    %v2212 = vsub.f32 %v2205, 1.0
    %v2213 = vsub.f32 %v2207, 1.0
    %v2214 = vsub.f32 %v2209, 1.0
    %v2215 = vsub.f32 %v2211, 1.0
    %v2216 = vsel %vm2196, %v2164, %v2212
    %v2217 = vsel %vm2197, %v2192, %v2213
    %v2218 = vsel %vm2198, %v2166, %v2214
    %v2219 = vsel %vm2199, %v2194, %v2215
    %v2220 = vpack.c.bf16 %v905, %v904
    %v2222 = vperm.slane %v671, 0
    %v2223 = vperm.slane %v671, 1
    %v2234 = vunpack.c.l.b16 %v663
    %v2235 = vunpack.c.h.b16 %v663
    %v2236 = vunpack.c.l.b16 %v664
    %v2237 = vunpack.c.h.b16 %v664
    %v2238 = vunpack.c.l.b16 %v665
    %v2239 = vunpack.c.h.b16 %v665
    %v2240 = vunpack.c.l.b16 %v666
    %v2241 = vunpack.c.h.b16 %v666
    %v2242 = vunpack.c.l.b16 %v667
    %v2243 = vunpack.c.h.b16 %v667
    %v2244 = vunpack.c.l.b16 %v668
    %v2245 = vunpack.c.h.b16 %v668
    %v2246 = vunpack.c.l.b16 %v669
    %v2247 = vunpack.c.h.b16 %v669
    %v2248 = vunpack.c.l.b16 %v670
    %v2249 = vunpack.c.h.b16 %v670
    %v2250 = vpack.c.b16 %v2236, %v2234
    %v2251 = vpack.c.b16 %v2237, %v2235
    %v2252 = vpack.c.b16 %v2240, %v2238
    %v2253 = vpack.c.b16 %v2241, %v2239
    %v2254 = vpack.c.b16 %v2244, %v2242
    %v2255 = vpack.c.b16 %v2245, %v2243
    %v2256 = vpack.c.b16 %v2248, %v2246
    %v2257 = vpack.c.b16 %v2249, %v2247
    %vm2266 = vcmask 523264
    %v2268 = vsel %vm2266, %v2220, 0
    %2270 = vmatpush.bf16.msra.mxu0 0
    %2271 = vmatpush.bf16.msra.mxu0 0
    %2272 = vmatpush.bf16.msra.mxu0 0
    %2273 = vmatpush.bf16.msra.mxu0 0
    %2274 = vmatpush.bf16.msra.mxu0 %v2256
    %2275 = vmatpush.bf16.msra.mxu0 %v2254
    %2276 = vmatpush.bf16.msra.mxu0 %v2252
    %2277 = vmatpush.bf16.msra.mxu0 %v2250
    %2278 = vmatmul.bf16.gmra.mxu0 %v2268
    %v2279 = vpop.f32.mrf.mxu0
    %v2280 = vadd.f32 %v2222, %v2279
    %v2281 = vpop.f32.mrf.mxu0
    %v2282 = vadd.f32 %v2222, %v2281
    %2283 = vdwg.mxu0
    %2284 = vmatpush.bf16.msra.mxu0 0
    %2285 = vmatpush.bf16.msra.mxu0 0
    %2286 = vmatpush.bf16.msra.mxu0 0
    %2287 = vmatpush.bf16.msra.mxu0 0
    %2288 = vmatpush.bf16.msra.mxu0 %v2257
    %2289 = vmatpush.bf16.msra.mxu0 %v2255
    %2290 = vmatpush.bf16.msra.mxu0 %v2253
    %2291 = vmatpush.bf16.msra.mxu0 %v2251
    %2292 = vmatmul.bf16.gmra.mxu0 %v2268
    %v2293 = vpop.f32.mrf.mxu0
    %v2294 = vadd.f32 %v2223, %v2293
    %v2295 = vpop.f32.mrf.mxu0
    %v2296 = vadd.f32 %v2223, %v2295
    %2297 = vdwg.mxu0
    %vm2298 = vcmp.gt.f32.partialorder %v2280, 0.0
    %vm2299 = vcmp.gt.f32.partialorder %v2294, 0.0
    %vm2300 = vcmp.gt.f32.partialorder %v2282, 0.0
    %vm2301 = vcmp.gt.f32.partialorder %v2296, 0.0
    %v2302 = vmin.f32 %v2280, 0.0
    %v2303 = vmin.f32 %v2294, 0.0
    %v2304 = vmin.f32 %v2282, 0.0
    %v2305 = vmin.f32 %v2296, 0.0
    %v2306 = vmul.f32 %v2302, 1.442695
    %v2307 = vpow.pop %v2306
    %v2308 = vmul.f32 %v2303, 1.442695
    %v2309 = vpow.pop %v2308
    %v2310 = vmul.f32 %v2304, 1.442695
    %v2311 = vpow.pop %v2310
    %v2312 = vmul.f32 %v2305, 1.442695
    %v2313 = vpow.pop %v2312
    %v2314 = vsub.f32 %v2307, 1.0
    %v2315 = vsub.f32 %v2309, 1.0
    %v2316 = vsub.f32 %v2311, 1.0
    %v2317 = vsub.f32 %v2313, 1.0
    %v2318 = vsel %vm2298, %v2280, %v2314
    %v2319 = vsel %vm2299, %v2294, %v2315
    %v2320 = vsel %vm2300, %v2282, %v2316
    %v2321 = vsel %vm2301, %v2296, %v2317
    %v2322 = vpack.c.bf16 %v2320, %v2318
    %v2323 = vpack.c.bf16 %v2321, %v2319
    %v2325 = vperm.slane %v704, 0
    %v2326 = vperm.slane %v704, 1
    %v2361 = vunpack.c.l.b16 %v672
    %v2362 = vunpack.c.h.b16 %v672
    %v2363 = vunpack.c.l.b16 %v673
    %v2364 = vunpack.c.h.b16 %v673
    %v2365 = vunpack.c.l.b16 %v674
    %v2366 = vunpack.c.h.b16 %v674
    %v2367 = vunpack.c.l.b16 %v675
    %v2368 = vunpack.c.h.b16 %v675
    %v2369 = vunpack.c.l.b16 %v676
    %v2370 = vunpack.c.h.b16 %v676
    %v2371 = vunpack.c.l.b16 %v677
    %v2372 = vunpack.c.h.b16 %v677
    %v2373 = vunpack.c.l.b16 %v678
    %v2374 = vunpack.c.h.b16 %v678
    %v2375 = vunpack.c.l.b16 %v679
    %v2376 = vunpack.c.h.b16 %v679
    %v2377 = vunpack.c.l.b16 %v680
    %v2378 = vunpack.c.h.b16 %v680
    %v2379 = vunpack.c.l.b16 %v681
    %v2380 = vunpack.c.h.b16 %v681
    %v2381 = vunpack.c.l.b16 %v682
    %v2382 = vunpack.c.h.b16 %v682
    %v2383 = vunpack.c.l.b16 %v683
    %v2384 = vunpack.c.h.b16 %v683
    %v2385 = vunpack.c.l.b16 %v684
    %v2386 = vunpack.c.h.b16 %v684
    %v2387 = vunpack.c.l.b16 %v685
    %v2388 = vunpack.c.h.b16 %v685
    %v2389 = vunpack.c.l.b16 %v686
    %v2390 = vunpack.c.h.b16 %v686
    %v2391 = vunpack.c.l.b16 %v687
    %v2392 = vunpack.c.h.b16 %v687
    %v2393 = vunpack.c.l.b16 %v688
    %v2394 = vunpack.c.h.b16 %v688
    %v2395 = vunpack.c.l.b16 %v689
    %v2396 = vunpack.c.h.b16 %v689
    %v2397 = vunpack.c.l.b16 %v690
    %v2398 = vunpack.c.h.b16 %v690
    %v2399 = vunpack.c.l.b16 %v691
    %v2400 = vunpack.c.h.b16 %v691
    %v2401 = vunpack.c.l.b16 %v692
    %v2402 = vunpack.c.h.b16 %v692
    %v2403 = vunpack.c.l.b16 %v693
    %v2404 = vunpack.c.h.b16 %v693
    %v2405 = vunpack.c.l.b16 %v694
    %v2406 = vunpack.c.h.b16 %v694
    %v2407 = vunpack.c.l.b16 %v695
    %v2408 = vunpack.c.h.b16 %v695
    %v2409 = vunpack.c.l.b16 %v696
    %v2410 = vunpack.c.h.b16 %v696
    %v2411 = vunpack.c.l.b16 %v697
    %v2412 = vunpack.c.h.b16 %v697
    %v2413 = vunpack.c.l.b16 %v698
    %v2414 = vunpack.c.h.b16 %v698
    %v2415 = vunpack.c.l.b16 %v699
    %v2416 = vunpack.c.h.b16 %v699
    %v2417 = vunpack.c.l.b16 %v700
    %v2418 = vunpack.c.h.b16 %v700
    %v2419 = vunpack.c.l.b16 %v701
    %v2420 = vunpack.c.h.b16 %v701
    %v2421 = vunpack.c.l.b16 %v702
    %v2422 = vunpack.c.h.b16 %v702
    %v2423 = vunpack.c.l.b16 %v703
    %v2424 = vunpack.c.h.b16 %v703
    %v2425 = vpack.c.b16 %v2363, %v2361
    %v2426 = vpack.c.b16 %v2364, %v2362
    %v2427 = vpack.c.b16 %v2367, %v2365
    %v2428 = vpack.c.b16 %v2368, %v2366
    %v2429 = vpack.c.b16 %v2371, %v2369
    %v2430 = vpack.c.b16 %v2372, %v2370
    %v2431 = vpack.c.b16 %v2375, %v2373
    %v2432 = vpack.c.b16 %v2376, %v2374
    %v2433 = vpack.c.b16 %v2379, %v2377
    %v2434 = vpack.c.b16 %v2380, %v2378
    %v2435 = vpack.c.b16 %v2383, %v2381
    %v2436 = vpack.c.b16 %v2384, %v2382
    %v2437 = vpack.c.b16 %v2387, %v2385
    %v2438 = vpack.c.b16 %v2388, %v2386
    %v2439 = vpack.c.b16 %v2391, %v2389
    %v2440 = vpack.c.b16 %v2392, %v2390
    %v2441 = vpack.c.b16 %v2395, %v2393
    %v2442 = vpack.c.b16 %v2396, %v2394
    %v2443 = vpack.c.b16 %v2399, %v2397
    %v2444 = vpack.c.b16 %v2400, %v2398
    %v2445 = vpack.c.b16 %v2403, %v2401
    %v2446 = vpack.c.b16 %v2404, %v2402
    %v2447 = vpack.c.b16 %v2407, %v2405
    %v2448 = vpack.c.b16 %v2408, %v2406
    %v2449 = vpack.c.b16 %v2411, %v2409
    %v2450 = vpack.c.b16 %v2412, %v2410
    %v2451 = vpack.c.b16 %v2415, %v2413
    %v2452 = vpack.c.b16 %v2416, %v2414
    %v2453 = vpack.c.b16 %v2419, %v2417
    %v2454 = vpack.c.b16 %v2420, %v2418
    %v2455 = vpack.c.b16 %v2423, %v2421
    %v2456 = vpack.c.b16 %v2424, %v2422
    %2489 = vmatpush.bf16.msra.mxu0 %v2439
    %2490 = vmatpush.bf16.msra.mxu0 %v2437
    %2491 = vmatpush.bf16.msra.mxu0 %v2435
    %2492 = vmatpush.bf16.msra.mxu0 %v2433
    %2493 = vmatpush.bf16.msra.mxu0 %v2431
    %2494 = vmatpush.bf16.msra.mxu0 %v2429
    %2495 = vmatpush.bf16.msra.mxu0 %v2427
    %2496 = vmatpush.bf16.msra.mxu0 %v2425
    %2497 = vmatmul.bf16.gmra.mxu0 %v2322
    %v2498 = vpop.f32.mrf.mxu0
    %v2499 = vadd.f32 %v2325, %v2498
    %v2500 = vpop.f32.mrf.mxu0
    %v2501 = vadd.f32 %v2325, %v2500
    %2502 = vdwg.mxu0
    %2503 = vmatpush.bf16.msra.mxu0 %v2455
    %2504 = vmatpush.bf16.msra.mxu0 %v2453
    %2505 = vmatpush.bf16.msra.mxu0 %v2451
    %2506 = vmatpush.bf16.msra.mxu0 %v2449
    %2507 = vmatpush.bf16.msra.mxu0 %v2447
    %2508 = vmatpush.bf16.msra.mxu0 %v2445
    %2509 = vmatpush.bf16.msra.mxu0 %v2443
    %2510 = vmatpush.bf16.msra.mxu0 %v2441
    %2511 = vmatmul.bf16.gmra.mxu0 %v2323
    %v2512 = vpop.f32.mrf.mxu0
    %v2513 = vadd.f32 %v2499, %v2512
    %v2514 = vpop.f32.mrf.mxu0
    %v2515 = vadd.f32 %v2501, %v2514
    %2516 = vdwg.mxu0
    %2517 = vmatpush.bf16.msra.mxu0 %v2440
    %2518 = vmatpush.bf16.msra.mxu0 %v2438
    %2519 = vmatpush.bf16.msra.mxu0 %v2436
    %2520 = vmatpush.bf16.msra.mxu0 %v2434
    %2521 = vmatpush.bf16.msra.mxu0 %v2432
    %2522 = vmatpush.bf16.msra.mxu0 %v2430
    %2523 = vmatpush.bf16.msra.mxu0 %v2428
    %2524 = vmatpush.bf16.msra.mxu0 %v2426
    %2525 = vmatmul.bf16.gmra.mxu0 %v2322
    %v2526 = vpop.f32.mrf.mxu0
    %v2527 = vadd.f32 %v2326, %v2526
    %v2528 = vpop.f32.mrf.mxu0
    %v2529 = vadd.f32 %v2326, %v2528
    %2530 = vdwg.mxu0
    %2531 = vmatpush.bf16.msra.mxu0 %v2456
    %2532 = vmatpush.bf16.msra.mxu0 %v2454
    %2533 = vmatpush.bf16.msra.mxu0 %v2452
    %2534 = vmatpush.bf16.msra.mxu0 %v2450
    %2535 = vmatpush.bf16.msra.mxu0 %v2448
    %2536 = vmatpush.bf16.msra.mxu0 %v2446
    %2537 = vmatpush.bf16.msra.mxu0 %v2444
    %2538 = vmatpush.bf16.msra.mxu0 %v2442
    %2539 = vmatmul.bf16.gmra.mxu0 %v2323
    %v2540 = vpop.f32.mrf.mxu0
    %v2541 = vadd.f32 %v2527, %v2540
    %v2542 = vpop.f32.mrf.mxu0
    %v2543 = vadd.f32 %v2529, %v2542
    %2544 = vdwg.mxu0
    %vm2545 = vcmp.gt.f32.partialorder %v2513, 0.0
    %vm2546 = vcmp.gt.f32.partialorder %v2541, 0.0
    %vm2547 = vcmp.gt.f32.partialorder %v2515, 0.0
    %vm2548 = vcmp.gt.f32.partialorder %v2543, 0.0
    %v2549 = vmin.f32 %v2513, 0.0
    %v2550 = vmin.f32 %v2541, 0.0
    %v2551 = vmin.f32 %v2515, 0.0
    %v2552 = vmin.f32 %v2543, 0.0
    %v2553 = vmul.f32 %v2549, 1.442695
    %v2554 = vpow.pop %v2553
    %v2555 = vmul.f32 %v2550, 1.442695
    %v2556 = vpow.pop %v2555
    %v2557 = vmul.f32 %v2551, 1.442695
    %v2558 = vpow.pop %v2557
    %v2559 = vmul.f32 %v2552, 1.442695
    %v2560 = vpow.pop %v2559
    %v2561 = vsub.f32 %v2554, 1.0
    %v2562 = vsub.f32 %v2556, 1.0
    %v2563 = vsub.f32 %v2558, 1.0
    %v2564 = vsub.f32 %v2560, 1.0
    %v2565 = vsel %vm2545, %v2513, %v2561
    %v2566 = vsel %vm2546, %v2541, %v2562
    %v2567 = vsel %vm2547, %v2515, %v2563
    %v2568 = vsel %vm2548, %v2543, %v2564
    %v2569 = vpack.c.bf16 %v2567, %v2565
    %v2570 = vpack.c.bf16 %v2568, %v2566
    %v2572 = vperm.slane %v737, 0
    %v2573 = vperm.slane %v737, 1
    %v2608 = vunpack.c.l.b16 %v705
    %v2609 = vunpack.c.h.b16 %v705
    %v2610 = vunpack.c.l.b16 %v706
    %v2611 = vunpack.c.h.b16 %v706
    %v2612 = vunpack.c.l.b16 %v707
    %v2613 = vunpack.c.h.b16 %v707
    %v2614 = vunpack.c.l.b16 %v708
    %v2615 = vunpack.c.h.b16 %v708
    %v2616 = vunpack.c.l.b16 %v709
    %v2617 = vunpack.c.h.b16 %v709
    %v2618 = vunpack.c.l.b16 %v710
    %v2619 = vunpack.c.h.b16 %v710
    %v2620 = vunpack.c.l.b16 %v711
    %v2621 = vunpack.c.h.b16 %v711
    %v2622 = vunpack.c.l.b16 %v712
    %v2623 = vunpack.c.h.b16 %v712
    %v2624 = vunpack.c.l.b16 %v713
    %v2625 = vunpack.c.h.b16 %v713
    %v2626 = vunpack.c.l.b16 %v714
    %v2627 = vunpack.c.h.b16 %v714
    %v2628 = vunpack.c.l.b16 %v715
    %v2629 = vunpack.c.h.b16 %v715
    %v2630 = vunpack.c.l.b16 %v716
    %v2631 = vunpack.c.h.b16 %v716
    %v2632 = vunpack.c.l.b16 %v717
    %v2633 = vunpack.c.h.b16 %v717
    %v2634 = vunpack.c.l.b16 %v718
    %v2635 = vunpack.c.h.b16 %v718
    %v2636 = vunpack.c.l.b16 %v719
    %v2637 = vunpack.c.h.b16 %v719
    %v2638 = vunpack.c.l.b16 %v720
    %v2639 = vunpack.c.h.b16 %v720
    %v2640 = vunpack.c.l.b16 %v721
    %v2641 = vunpack.c.h.b16 %v721
    %v2642 = vunpack.c.l.b16 %v722
    %v2643 = vunpack.c.h.b16 %v722
    %v2644 = vunpack.c.l.b16 %v723
    %v2645 = vunpack.c.h.b16 %v723
    %v2646 = vunpack.c.l.b16 %v724
    %v2647 = vunpack.c.h.b16 %v724
    %v2648 = vunpack.c.l.b16 %v725
    %v2649 = vunpack.c.h.b16 %v725
    %v2650 = vunpack.c.l.b16 %v726
    %v2651 = vunpack.c.h.b16 %v726
    %v2652 = vunpack.c.l.b16 %v727
    %v2653 = vunpack.c.h.b16 %v727
    %v2654 = vunpack.c.l.b16 %v728
    %v2655 = vunpack.c.h.b16 %v728
    %v2656 = vunpack.c.l.b16 %v729
    %v2657 = vunpack.c.h.b16 %v729
    %v2658 = vunpack.c.l.b16 %v730
    %v2659 = vunpack.c.h.b16 %v730
    %v2660 = vunpack.c.l.b16 %v731
    %v2661 = vunpack.c.h.b16 %v731
    %v2662 = vunpack.c.l.b16 %v732
    %v2663 = vunpack.c.h.b16 %v732
    %v2664 = vunpack.c.l.b16 %v733
    %v2665 = vunpack.c.h.b16 %v733
    %v2666 = vunpack.c.l.b16 %v734
    %v2667 = vunpack.c.h.b16 %v734
    %v2668 = vunpack.c.l.b16 %v735
    %v2669 = vunpack.c.h.b16 %v735
    %v2670 = vunpack.c.l.b16 %v736
    %v2671 = vunpack.c.h.b16 %v736
    %v2672 = vpack.c.b16 %v2610, %v2608
    %v2673 = vpack.c.b16 %v2611, %v2609
    %v2674 = vpack.c.b16 %v2614, %v2612
    %v2675 = vpack.c.b16 %v2615, %v2613
    %v2676 = vpack.c.b16 %v2618, %v2616
    %v2677 = vpack.c.b16 %v2619, %v2617
    %v2678 = vpack.c.b16 %v2622, %v2620
    %v2679 = vpack.c.b16 %v2623, %v2621
    %v2680 = vpack.c.b16 %v2626, %v2624
    %v2681 = vpack.c.b16 %v2627, %v2625
    %v2682 = vpack.c.b16 %v2630, %v2628
    %v2683 = vpack.c.b16 %v2631, %v2629
    %v2684 = vpack.c.b16 %v2634, %v2632
    %v2685 = vpack.c.b16 %v2635, %v2633
    %v2686 = vpack.c.b16 %v2638, %v2636
    %v2687 = vpack.c.b16 %v2639, %v2637
    %v2688 = vpack.c.b16 %v2642, %v2640
    %v2689 = vpack.c.b16 %v2643, %v2641
    %v2690 = vpack.c.b16 %v2646, %v2644
    %v2691 = vpack.c.b16 %v2647, %v2645
    %v2692 = vpack.c.b16 %v2650, %v2648
    %v2693 = vpack.c.b16 %v2651, %v2649
    %v2694 = vpack.c.b16 %v2654, %v2652
    %v2695 = vpack.c.b16 %v2655, %v2653
    %v2696 = vpack.c.b16 %v2658, %v2656
    %v2697 = vpack.c.b16 %v2659, %v2657
    %v2698 = vpack.c.b16 %v2662, %v2660
    %v2699 = vpack.c.b16 %v2663, %v2661
    %v2700 = vpack.c.b16 %v2666, %v2664
    %v2701 = vpack.c.b16 %v2667, %v2665
    %v2702 = vpack.c.b16 %v2670, %v2668
    %v2703 = vpack.c.b16 %v2671, %v2669
    %2736 = vmatpush.bf16.msra.mxu0 %v2686
    %2737 = vmatpush.bf16.msra.mxu0 %v2684
    %2738 = vmatpush.bf16.msra.mxu0 %v2682
    %2739 = vmatpush.bf16.msra.mxu0 %v2680
    %2740 = vmatpush.bf16.msra.mxu0 %v2678
    %2741 = vmatpush.bf16.msra.mxu0 %v2676
    %2742 = vmatpush.bf16.msra.mxu0 %v2674
    %2743 = vmatpush.bf16.msra.mxu0 %v2672
    %2744 = vmatmul.bf16.gmra.mxu0 %v2569
    %v2745 = vpop.f32.mrf.mxu0
    %v2746 = vadd.f32 %v2572, %v2745
    %v2747 = vpop.f32.mrf.mxu0
    %v2748 = vadd.f32 %v2572, %v2747
    %2749 = vdwg.mxu0
    %2750 = vmatpush.bf16.msra.mxu0 %v2702
    %2751 = vmatpush.bf16.msra.mxu0 %v2700
    %2752 = vmatpush.bf16.msra.mxu0 %v2698
    %2753 = vmatpush.bf16.msra.mxu0 %v2696
    %2754 = vmatpush.bf16.msra.mxu0 %v2694
    %2755 = vmatpush.bf16.msra.mxu0 %v2692
    %2756 = vmatpush.bf16.msra.mxu0 %v2690
    %2757 = vmatpush.bf16.msra.mxu0 %v2688
    %2758 = vmatmul.bf16.gmra.mxu0 %v2570
    %v2759 = vpop.f32.mrf.mxu0
    %v2760 = vadd.f32 %v2746, %v2759
    %v2761 = vpop.f32.mrf.mxu0
    %v2762 = vadd.f32 %v2748, %v2761
    %2763 = vdwg.mxu0
    %2764 = vmatpush.bf16.msra.mxu0 %v2687
    %2765 = vmatpush.bf16.msra.mxu0 %v2685
    %2766 = vmatpush.bf16.msra.mxu0 %v2683
    %2767 = vmatpush.bf16.msra.mxu0 %v2681
    %2768 = vmatpush.bf16.msra.mxu0 %v2679
    %2769 = vmatpush.bf16.msra.mxu0 %v2677
    %2770 = vmatpush.bf16.msra.mxu0 %v2675
    %2771 = vmatpush.bf16.msra.mxu0 %v2673
    %2772 = vmatmul.bf16.gmra.mxu0 %v2569
    %v2773 = vpop.f32.mrf.mxu0
    %v2774 = vadd.f32 %v2573, %v2773
    %v2775 = vpop.f32.mrf.mxu0
    %v2776 = vadd.f32 %v2573, %v2775
    %2777 = vdwg.mxu0
    %2778 = vmatpush.bf16.msra.mxu0 %v2703
    %2779 = vmatpush.bf16.msra.mxu0 %v2701
    %2780 = vmatpush.bf16.msra.mxu0 %v2699
    %2781 = vmatpush.bf16.msra.mxu0 %v2697
    %2782 = vmatpush.bf16.msra.mxu0 %v2695
    %2783 = vmatpush.bf16.msra.mxu0 %v2693
    %2784 = vmatpush.bf16.msra.mxu0 %v2691
    %2785 = vmatpush.bf16.msra.mxu0 %v2689
    %2786 = vmatmul.bf16.gmra.mxu0 %v2570
    %v2787 = vpop.f32.mrf.mxu0
    %v2788 = vadd.f32 %v2774, %v2787
    %v2789 = vpop.f32.mrf.mxu0
    %v2790 = vadd.f32 %v2776, %v2789
    %2791 = vdwg.mxu0
    %vm2792 = vcmp.gt.f32.partialorder %v2760, 0.0
    %vm2793 = vcmp.gt.f32.partialorder %v2788, 0.0
    %vm2794 = vcmp.gt.f32.partialorder %v2762, 0.0
    %vm2795 = vcmp.gt.f32.partialorder %v2790, 0.0
    %v2796 = vmin.f32 %v2760, 0.0
    %v2797 = vmin.f32 %v2788, 0.0
    %v2798 = vmin.f32 %v2762, 0.0
    %v2799 = vmin.f32 %v2790, 0.0
    %v2800 = vmul.f32 %v2796, 1.442695
    %v2801 = vpow.pop %v2800
    %v2802 = vmul.f32 %v2797, 1.442695
    %v2803 = vpow.pop %v2802
    %v2804 = vmul.f32 %v2798, 1.442695
    %v2805 = vpow.pop %v2804
    %v2806 = vmul.f32 %v2799, 1.442695
    %v2807 = vpow.pop %v2806
    %v2808 = vsub.f32 %v2801, 1.0
    %v2809 = vsub.f32 %v2803, 1.0
    %v2810 = vsub.f32 %v2805, 1.0
    %v2811 = vsub.f32 %v2807, 1.0
    %v2812 = vsel %vm2792, %v2760, %v2808
    %v2813 = vsel %vm2793, %v2788, %v2809
    %v2814 = vsel %vm2794, %v2762, %v2810
    %v2815 = vsel %vm2795, %v2790, %v2811
    %v2817 = vperm.slane %v786, 0
    %v2818 = vperm.slane %v786, 1
    %v2819 = vperm.slane %v786, 2
    %v2820 = vperm.slane %v786, 3
    %v2841 = vunpack.c.l.b16 %v770
    %v2842 = vunpack.c.h.b16 %v770
    %v2843 = vunpack.c.l.b16 %v771
    %v2844 = vunpack.c.h.b16 %v771
    %v2845 = vunpack.c.l.b16 %v772
    %v2846 = vunpack.c.h.b16 %v772
    %v2847 = vunpack.c.l.b16 %v773
    %v2848 = vunpack.c.h.b16 %v773
    %v2849 = vunpack.c.l.b16 %v774
    %v2850 = vunpack.c.h.b16 %v774
    %v2851 = vunpack.c.l.b16 %v775
    %v2852 = vunpack.c.h.b16 %v775
    %v2853 = vunpack.c.l.b16 %v776
    %v2854 = vunpack.c.h.b16 %v776
    %v2855 = vunpack.c.l.b16 %v777
    %v2856 = vunpack.c.h.b16 %v777
    %v2857 = vunpack.c.l.b16 %v778
    %v2858 = vunpack.c.h.b16 %v778
    %v2859 = vunpack.c.l.b16 %v779
    %v2860 = vunpack.c.h.b16 %v779
    %v2861 = vunpack.c.l.b16 %v780
    %v2862 = vunpack.c.h.b16 %v780
    %v2863 = vunpack.c.l.b16 %v781
    %v2864 = vunpack.c.h.b16 %v781
    %v2865 = vunpack.c.l.b16 %v782
    %v2866 = vunpack.c.h.b16 %v782
    %v2867 = vunpack.c.l.b16 %v783
    %v2868 = vunpack.c.h.b16 %v783
    %v2869 = vunpack.c.l.b16 %v784
    %v2870 = vunpack.c.h.b16 %v784
    %v2871 = vunpack.c.l.b16 %v785
    %v2872 = vunpack.c.h.b16 %v785
    %v2873 = vpack.c.b16 %v2845, %v2841
    %v2874 = vpack.c.b16 %v2846, %v2842
    %v2875 = vpack.c.b16 %v2847, %v2843
    %v2876 = vpack.c.b16 %v2848, %v2844
    %v2877 = vpack.c.b16 %v2853, %v2849
    %v2878 = vpack.c.b16 %v2854, %v2850
    %v2879 = vpack.c.b16 %v2855, %v2851
    %v2880 = vpack.c.b16 %v2856, %v2852
    %v2881 = vpack.c.b16 %v2861, %v2857
    %v2882 = vpack.c.b16 %v2862, %v2858
    %v2883 = vpack.c.b16 %v2863, %v2859
    %v2884 = vpack.c.b16 %v2864, %v2860
    %v2885 = vpack.c.b16 %v2869, %v2865
    %v2886 = vpack.c.b16 %v2870, %v2866
    %v2887 = vpack.c.b16 %v2871, %v2867
    %v2888 = vpack.c.b16 %v2872, %v2868
    %2905 = vmatpush.bf16.msra.mxu0 0
    %2906 = vmatpush.bf16.msra.mxu0 0
    %2907 = vmatpush.bf16.msra.mxu0 0
    %2908 = vmatpush.bf16.msra.mxu0 0
    %2909 = vmatpush.bf16.msra.mxu0 %v2885
    %2910 = vmatpush.bf16.msra.mxu0 %v2881
    %2911 = vmatpush.bf16.msra.mxu0 %v2877
    %2912 = vmatpush.bf16.msra.mxu0 %v2873
    %2913 = vmatmul.bf16.gmra.mxu0 %v2268
    %v2914 = vpop.f32.mrf.mxu0
    %v2915 = vadd.f32 %v2817, %v2914
    %v2916 = vpop.f32.mrf.mxu0
    %v2917 = vadd.f32 %v2817, %v2916
    %2918 = vdwg.mxu0
    %2919 = vmatpush.bf16.msra.mxu0 0
    %2920 = vmatpush.bf16.msra.mxu0 0
    %2921 = vmatpush.bf16.msra.mxu0 0
    %2922 = vmatpush.bf16.msra.mxu0 0
    %2923 = vmatpush.bf16.msra.mxu0 %v2886
    %2924 = vmatpush.bf16.msra.mxu0 %v2882
    %2925 = vmatpush.bf16.msra.mxu0 %v2878
    %2926 = vmatpush.bf16.msra.mxu0 %v2874
    %2927 = vmatmul.bf16.gmra.mxu0 %v2268
    %v2928 = vpop.f32.mrf.mxu0
    %v2929 = vadd.f32 %v2818, %v2928
    %v2930 = vpop.f32.mrf.mxu0
    %v2931 = vadd.f32 %v2818, %v2930
    %2932 = vdwg.mxu0
    %2933 = vmatpush.bf16.msra.mxu0 0
    %2934 = vmatpush.bf16.msra.mxu0 0
    %2935 = vmatpush.bf16.msra.mxu0 0
    %2936 = vmatpush.bf16.msra.mxu0 0
    %2937 = vmatpush.bf16.msra.mxu0 %v2887
    %2938 = vmatpush.bf16.msra.mxu0 %v2883
    %2939 = vmatpush.bf16.msra.mxu0 %v2879
    %2940 = vmatpush.bf16.msra.mxu0 %v2875
    %2941 = vmatmul.bf16.gmra.mxu0 %v2268
    %v2942 = vpop.f32.mrf.mxu0
    %v2943 = vadd.f32 %v2819, %v2942
    %v2944 = vpop.f32.mrf.mxu0
    %v2945 = vadd.f32 %v2819, %v2944
    %2946 = vdwg.mxu0
    %2947 = vmatpush.bf16.msra.mxu0 0
    %2948 = vmatpush.bf16.msra.mxu0 0
    %2949 = vmatpush.bf16.msra.mxu0 0
    %2950 = vmatpush.bf16.msra.mxu0 0
    %2951 = vmatpush.bf16.msra.mxu0 %v2888
    %2952 = vmatpush.bf16.msra.mxu0 %v2884
    %2953 = vmatpush.bf16.msra.mxu0 %v2880
    %2954 = vmatpush.bf16.msra.mxu0 %v2876
    %2955 = vmatmul.bf16.gmra.mxu0 %v2268
    %v2956 = vpop.f32.mrf.mxu0
    %v2957 = vadd.f32 %v2820, %v2956
    %v2958 = vpop.f32.mrf.mxu0
    %v2959 = vadd.f32 %v2820, %v2958
    %2960 = vdwg.mxu0
    %vm2961 = vcmp.gt.f32.partialorder %v2915, 0.0
    %vm2962 = vcmp.gt.f32.partialorder %v2929, 0.0
    %vm2963 = vcmp.gt.f32.partialorder %v2943, 0.0
    %vm2964 = vcmp.gt.f32.partialorder %v2957, 0.0
    %vm2965 = vcmp.gt.f32.partialorder %v2917, 0.0
    %vm2966 = vcmp.gt.f32.partialorder %v2931, 0.0
    %vm2967 = vcmp.gt.f32.partialorder %v2945, 0.0
    %vm2968 = vcmp.gt.f32.partialorder %v2959, 0.0
    %v2969 = vmin.f32 %v2915, 0.0
    %v2970 = vmin.f32 %v2929, 0.0
    %v2971 = vmin.f32 %v2943, 0.0
    %v2972 = vmin.f32 %v2957, 0.0
    %v2973 = vmin.f32 %v2917, 0.0
    %v2974 = vmin.f32 %v2931, 0.0
    %v2975 = vmin.f32 %v2945, 0.0
    %v2976 = vmin.f32 %v2959, 0.0
    %v2977 = vmul.f32 %v2969, 1.442695
    %v2978 = vpow.pop %v2977
    %v2979 = vmul.f32 %v2970, 1.442695
    %v2980 = vpow.pop %v2979
    %v2981 = vmul.f32 %v2971, 1.442695
    %v2982 = vpow.pop %v2981
    %v2983 = vmul.f32 %v2972, 1.442695
    %v2984 = vpow.pop %v2983
    %v2985 = vmul.f32 %v2973, 1.442695
    %v2986 = vpow.pop %v2985
    %v2987 = vmul.f32 %v2974, 1.442695
    %v2988 = vpow.pop %v2987
    %v2989 = vmul.f32 %v2975, 1.442695
    %v2990 = vpow.pop %v2989
    %v2991 = vmul.f32 %v2976, 1.442695
    %v2992 = vpow.pop %v2991
    %v2993 = vsub.f32 %v2978, 1.0
    %v2994 = vsub.f32 %v2980, 1.0
    %v2995 = vsub.f32 %v2982, 1.0
    %v2996 = vsub.f32 %v2984, 1.0
    %v2997 = vsub.f32 %v2986, 1.0
    %v2998 = vsub.f32 %v2988, 1.0
    %v2999 = vsub.f32 %v2990, 1.0
    %v3000 = vsub.f32 %v2992, 1.0
    %v3001 = vsel %vm2961, %v2915, %v2993
    %v3002 = vsel %vm2962, %v2929, %v2994
    %v3003 = vsel %vm2963, %v2943, %v2995
    %v3004 = vsel %vm2964, %v2957, %v2996
    %v3005 = vsel %vm2965, %v2917, %v2997
    %v3006 = vsel %vm2966, %v2931, %v2998
    %v3007 = vsel %vm2967, %v2945, %v2999
    %v3008 = vsel %vm2968, %v2959, %v3000
    %v3009 = vpack.c.bf16 %v3005, %v3001
    %v3010 = vpack.c.bf16 %v3006, %v3002
    %v3011 = vpack.c.bf16 %v3007, %v3003
    %v3012 = vpack.c.bf16 %v3008, %v3004
    %v3014 = vperm.slane %v851, 0
    %v3015 = vperm.slane %v851, 1
    %v3082 = vunpack.c.l.b16 %v787
    %v3083 = vunpack.c.h.b16 %v787
    %v3084 = vunpack.c.l.b16 %v788
    %v3085 = vunpack.c.h.b16 %v788
    %v3086 = vunpack.c.l.b16 %v789
    %v3087 = vunpack.c.h.b16 %v789
    %v3088 = vunpack.c.l.b16 %v790
    %v3089 = vunpack.c.h.b16 %v790
    %v3090 = vunpack.c.l.b16 %v791
    %v3091 = vunpack.c.h.b16 %v791
    %v3092 = vunpack.c.l.b16 %v792
    %v3093 = vunpack.c.h.b16 %v792
    %v3094 = vunpack.c.l.b16 %v793
    %v3095 = vunpack.c.h.b16 %v793
    %v3096 = vunpack.c.l.b16 %v794
    %v3097 = vunpack.c.h.b16 %v794
    %v3098 = vunpack.c.l.b16 %v795
    %v3099 = vunpack.c.h.b16 %v795
    %v3100 = vunpack.c.l.b16 %v796
    %v3101 = vunpack.c.h.b16 %v796
    %v3102 = vunpack.c.l.b16 %v797
    %v3103 = vunpack.c.h.b16 %v797
    %v3104 = vunpack.c.l.b16 %v798
    %v3105 = vunpack.c.h.b16 %v798
    %v3106 = vunpack.c.l.b16 %v799
    %v3107 = vunpack.c.h.b16 %v799
    %v3108 = vunpack.c.l.b16 %v800
    %v3109 = vunpack.c.h.b16 %v800
    %v3110 = vunpack.c.l.b16 %v801
    %v3111 = vunpack.c.h.b16 %v801
    %v3112 = vunpack.c.l.b16 %v802
    %v3113 = vunpack.c.h.b16 %v802
    %v3114 = vunpack.c.l.b16 %v803
    %v3115 = vunpack.c.h.b16 %v803
    %v3116 = vunpack.c.l.b16 %v804
    %v3117 = vunpack.c.h.b16 %v804
    %v3118 = vunpack.c.l.b16 %v805
    %v3119 = vunpack.c.h.b16 %v805
    %v3120 = vunpack.c.l.b16 %v806
    %v3121 = vunpack.c.h.b16 %v806
    %v3122 = vunpack.c.l.b16 %v807
    %v3123 = vunpack.c.h.b16 %v807
    %v3124 = vunpack.c.l.b16 %v808
    %v3125 = vunpack.c.h.b16 %v808
    %v3126 = vunpack.c.l.b16 %v809
    %v3127 = vunpack.c.h.b16 %v809
    %v3128 = vunpack.c.l.b16 %v810
    %v3129 = vunpack.c.h.b16 %v810
    %v3130 = vunpack.c.l.b16 %v811
    %v3131 = vunpack.c.h.b16 %v811
    %v3132 = vunpack.c.l.b16 %v812
    %v3133 = vunpack.c.h.b16 %v812
    %v3134 = vunpack.c.l.b16 %v813
    %v3135 = vunpack.c.h.b16 %v813
    %v3136 = vunpack.c.l.b16 %v814
    %v3137 = vunpack.c.h.b16 %v814
    %v3138 = vunpack.c.l.b16 %v815
    %v3139 = vunpack.c.h.b16 %v815
    %v3140 = vunpack.c.l.b16 %v816
    %v3141 = vunpack.c.h.b16 %v816
    %v3142 = vunpack.c.l.b16 %v817
    %v3143 = vunpack.c.h.b16 %v817
    %v3144 = vunpack.c.l.b16 %v818
    %v3145 = vunpack.c.h.b16 %v818
    %v3146 = vunpack.c.l.b16 %v819
    %v3147 = vunpack.c.h.b16 %v819
    %v3148 = vunpack.c.l.b16 %v820
    %v3149 = vunpack.c.h.b16 %v820
    %v3150 = vunpack.c.l.b16 %v821
    %v3151 = vunpack.c.h.b16 %v821
    %v3152 = vunpack.c.l.b16 %v822
    %v3153 = vunpack.c.h.b16 %v822
    %v3154 = vunpack.c.l.b16 %v823
    %v3155 = vunpack.c.h.b16 %v823
    %v3156 = vunpack.c.l.b16 %v824
    %v3157 = vunpack.c.h.b16 %v824
    %v3158 = vunpack.c.l.b16 %v825
    %v3159 = vunpack.c.h.b16 %v825
    %v3160 = vunpack.c.l.b16 %v826
    %v3161 = vunpack.c.h.b16 %v826
    %v3162 = vunpack.c.l.b16 %v827
    %v3163 = vunpack.c.h.b16 %v827
    %v3164 = vunpack.c.l.b16 %v828
    %v3165 = vunpack.c.h.b16 %v828
    %v3166 = vunpack.c.l.b16 %v829
    %v3167 = vunpack.c.h.b16 %v829
    %v3168 = vunpack.c.l.b16 %v830
    %v3169 = vunpack.c.h.b16 %v830
    %v3170 = vunpack.c.l.b16 %v831
    %v3171 = vunpack.c.h.b16 %v831
    %v3172 = vunpack.c.l.b16 %v832
    %v3173 = vunpack.c.h.b16 %v832
    %v3174 = vunpack.c.l.b16 %v833
    %v3175 = vunpack.c.h.b16 %v833
    %v3176 = vunpack.c.l.b16 %v834
    %v3177 = vunpack.c.h.b16 %v834
    %v3178 = vunpack.c.l.b16 %v835
    %v3179 = vunpack.c.h.b16 %v835
    %v3180 = vunpack.c.l.b16 %v836
    %v3181 = vunpack.c.h.b16 %v836
    %v3182 = vunpack.c.l.b16 %v837
    %v3183 = vunpack.c.h.b16 %v837
    %v3184 = vunpack.c.l.b16 %v838
    %v3185 = vunpack.c.h.b16 %v838
    %v3186 = vunpack.c.l.b16 %v839
    %v3187 = vunpack.c.h.b16 %v839
    %v3188 = vunpack.c.l.b16 %v840
    %v3189 = vunpack.c.h.b16 %v840
    %v3190 = vunpack.c.l.b16 %v841
    %v3191 = vunpack.c.h.b16 %v841
    %v3192 = vunpack.c.l.b16 %v842
    %v3193 = vunpack.c.h.b16 %v842
    %v3194 = vunpack.c.l.b16 %v843
    %v3195 = vunpack.c.h.b16 %v843
    %v3196 = vunpack.c.l.b16 %v844
    %v3197 = vunpack.c.h.b16 %v844
    %v3198 = vunpack.c.l.b16 %v845
    %v3199 = vunpack.c.h.b16 %v845
    %v3200 = vunpack.c.l.b16 %v846
    %v3201 = vunpack.c.h.b16 %v846
    %v3202 = vunpack.c.l.b16 %v847
    %v3203 = vunpack.c.h.b16 %v847
    %v3204 = vunpack.c.l.b16 %v848
    %v3205 = vunpack.c.h.b16 %v848
    %v3206 = vunpack.c.l.b16 %v849
    %v3207 = vunpack.c.h.b16 %v849
    %v3208 = vunpack.c.l.b16 %v850
    %v3209 = vunpack.c.h.b16 %v850
    %v3210 = vpack.c.b16 %v3084, %v3082
    %v3211 = vpack.c.b16 %v3085, %v3083
    %v3212 = vpack.c.b16 %v3088, %v3086
    %v3213 = vpack.c.b16 %v3089, %v3087
    %v3214 = vpack.c.b16 %v3092, %v3090
    %v3215 = vpack.c.b16 %v3093, %v3091
    %v3216 = vpack.c.b16 %v3096, %v3094
    %v3217 = vpack.c.b16 %v3097, %v3095
    %v3218 = vpack.c.b16 %v3100, %v3098
    %v3219 = vpack.c.b16 %v3101, %v3099
    %v3220 = vpack.c.b16 %v3104, %v3102
    %v3221 = vpack.c.b16 %v3105, %v3103
    %v3222 = vpack.c.b16 %v3108, %v3106
    %v3223 = vpack.c.b16 %v3109, %v3107
    %v3224 = vpack.c.b16 %v3112, %v3110
    %v3225 = vpack.c.b16 %v3113, %v3111
    %v3226 = vpack.c.b16 %v3116, %v3114
    %v3227 = vpack.c.b16 %v3117, %v3115
    %v3228 = vpack.c.b16 %v3120, %v3118
    %v3229 = vpack.c.b16 %v3121, %v3119
    %v3230 = vpack.c.b16 %v3124, %v3122
    %v3231 = vpack.c.b16 %v3125, %v3123
    %v3232 = vpack.c.b16 %v3128, %v3126
    %v3233 = vpack.c.b16 %v3129, %v3127
    %v3234 = vpack.c.b16 %v3132, %v3130
    %v3235 = vpack.c.b16 %v3133, %v3131
    %v3236 = vpack.c.b16 %v3136, %v3134
    %v3237 = vpack.c.b16 %v3137, %v3135
    %v3238 = vpack.c.b16 %v3140, %v3138
    %v3239 = vpack.c.b16 %v3141, %v3139
    %v3240 = vpack.c.b16 %v3144, %v3142
    %v3241 = vpack.c.b16 %v3145, %v3143
    %v3242 = vpack.c.b16 %v3148, %v3146
    %v3243 = vpack.c.b16 %v3149, %v3147
    %v3244 = vpack.c.b16 %v3152, %v3150
    %v3245 = vpack.c.b16 %v3153, %v3151
    %v3246 = vpack.c.b16 %v3156, %v3154
    %v3247 = vpack.c.b16 %v3157, %v3155
    %v3248 = vpack.c.b16 %v3160, %v3158
    %v3249 = vpack.c.b16 %v3161, %v3159
    %v3250 = vpack.c.b16 %v3164, %v3162
    %v3251 = vpack.c.b16 %v3165, %v3163
    %v3252 = vpack.c.b16 %v3168, %v3166
    %v3253 = vpack.c.b16 %v3169, %v3167
    %v3254 = vpack.c.b16 %v3172, %v3170
    %v3255 = vpack.c.b16 %v3173, %v3171
    %v3256 = vpack.c.b16 %v3176, %v3174
    %v3257 = vpack.c.b16 %v3177, %v3175
    %v3258 = vpack.c.b16 %v3180, %v3178
    %v3259 = vpack.c.b16 %v3181, %v3179
    %v3260 = vpack.c.b16 %v3184, %v3182
    %v3261 = vpack.c.b16 %v3185, %v3183
    %v3262 = vpack.c.b16 %v3188, %v3186
    %v3263 = vpack.c.b16 %v3189, %v3187
    %v3264 = vpack.c.b16 %v3192, %v3190
    %v3265 = vpack.c.b16 %v3193, %v3191
    %v3266 = vpack.c.b16 %v3196, %v3194
    %v3267 = vpack.c.b16 %v3197, %v3195
    %v3268 = vpack.c.b16 %v3200, %v3198
    %v3269 = vpack.c.b16 %v3201, %v3199
    %v3270 = vpack.c.b16 %v3204, %v3202
    %v3271 = vpack.c.b16 %v3205, %v3203
    %v3272 = vpack.c.b16 %v3208, %v3206
    %v3273 = vpack.c.b16 %v3209, %v3207
    %3338 = vmatpush.bf16.msra.mxu0 %v3224
    %3339 = vmatpush.bf16.msra.mxu0 %v3222
    %3340 = vmatpush.bf16.msra.mxu0 %v3220
    %3341 = vmatpush.bf16.msra.mxu0 %v3218
    %3342 = vmatpush.bf16.msra.mxu0 %v3216
    %3343 = vmatpush.bf16.msra.mxu0 %v3214
    %3344 = vmatpush.bf16.msra.mxu0 %v3212
    %3345 = vmatpush.bf16.msra.mxu0 %v3210
    %3346 = vmatmul.bf16.gmra.mxu0 %v3009
    %v3347 = vpop.f32.mrf.mxu0
    %v3348 = vadd.f32 %v3014, %v3347
    %v3349 = vpop.f32.mrf.mxu0
    %v3350 = vadd.f32 %v3014, %v3349
    %3351 = vdwg.mxu0
    %3352 = vmatpush.bf16.msra.mxu0 %v3240
    %3353 = vmatpush.bf16.msra.mxu0 %v3238
    %3354 = vmatpush.bf16.msra.mxu0 %v3236
    %3355 = vmatpush.bf16.msra.mxu0 %v3234
    %3356 = vmatpush.bf16.msra.mxu0 %v3232
    %3357 = vmatpush.bf16.msra.mxu0 %v3230
    %3358 = vmatpush.bf16.msra.mxu0 %v3228
    %3359 = vmatpush.bf16.msra.mxu0 %v3226
    %3360 = vmatmul.bf16.gmra.mxu0 %v3010
    %v3361 = vpop.f32.mrf.mxu0
    %v3362 = vadd.f32 %v3348, %v3361
    %v3363 = vpop.f32.mrf.mxu0
    %v3364 = vadd.f32 %v3350, %v3363
    %3365 = vdwg.mxu0
    %3366 = vmatpush.bf16.msra.mxu0 %v3256
    %3367 = vmatpush.bf16.msra.mxu0 %v3254
    %3368 = vmatpush.bf16.msra.mxu0 %v3252
    %3369 = vmatpush.bf16.msra.mxu0 %v3250
    %3370 = vmatpush.bf16.msra.mxu0 %v3248
    %3371 = vmatpush.bf16.msra.mxu0 %v3246
    %3372 = vmatpush.bf16.msra.mxu0 %v3244
    %3373 = vmatpush.bf16.msra.mxu0 %v3242
    %3374 = vmatmul.bf16.gmra.mxu0 %v3011
    %v3375 = vpop.f32.mrf.mxu0
    %v3376 = vadd.f32 %v3362, %v3375
    %v3377 = vpop.f32.mrf.mxu0
    %v3378 = vadd.f32 %v3364, %v3377
    %3379 = vdwg.mxu0
    %3380 = vmatpush.bf16.msra.mxu0 %v3272
    %3381 = vmatpush.bf16.msra.mxu0 %v3270
    %3382 = vmatpush.bf16.msra.mxu0 %v3268
    %3383 = vmatpush.bf16.msra.mxu0 %v3266
    %3384 = vmatpush.bf16.msra.mxu0 %v3264
    %3385 = vmatpush.bf16.msra.mxu0 %v3262
    %3386 = vmatpush.bf16.msra.mxu0 %v3260
    %3387 = vmatpush.bf16.msra.mxu0 %v3258
    %3388 = vmatmul.bf16.gmra.mxu0 %v3012
    %v3389 = vpop.f32.mrf.mxu0
    %v3390 = vadd.f32 %v3376, %v3389
    %v3391 = vpop.f32.mrf.mxu0
    %v3392 = vadd.f32 %v3378, %v3391
    %3393 = vdwg.mxu0
    %3394 = vmatpush.bf16.msra.mxu0 %v3225
    %3395 = vmatpush.bf16.msra.mxu0 %v3223
    %3396 = vmatpush.bf16.msra.mxu0 %v3221
    %3397 = vmatpush.bf16.msra.mxu0 %v3219
    %3398 = vmatpush.bf16.msra.mxu0 %v3217
    %3399 = vmatpush.bf16.msra.mxu0 %v3215
    %3400 = vmatpush.bf16.msra.mxu0 %v3213
    %3401 = vmatpush.bf16.msra.mxu0 %v3211
    %3402 = vmatmul.bf16.gmra.mxu0 %v3009
    %v3403 = vpop.f32.mrf.mxu0
    %v3404 = vadd.f32 %v3015, %v3403
    %v3405 = vpop.f32.mrf.mxu0
    %v3406 = vadd.f32 %v3015, %v3405
    %3407 = vdwg.mxu0
    %3408 = vmatpush.bf16.msra.mxu0 %v3241
    %3409 = vmatpush.bf16.msra.mxu0 %v3239
    %3410 = vmatpush.bf16.msra.mxu0 %v3237
    %3411 = vmatpush.bf16.msra.mxu0 %v3235
    %3412 = vmatpush.bf16.msra.mxu0 %v3233
    %3413 = vmatpush.bf16.msra.mxu0 %v3231
    %3414 = vmatpush.bf16.msra.mxu0 %v3229
    %3415 = vmatpush.bf16.msra.mxu0 %v3227
    %3416 = vmatmul.bf16.gmra.mxu0 %v3010
    %v3417 = vpop.f32.mrf.mxu0
    %v3418 = vadd.f32 %v3404, %v3417
    %v3419 = vpop.f32.mrf.mxu0
    %v3420 = vadd.f32 %v3406, %v3419
    %3421 = vdwg.mxu0
    %3422 = vmatpush.bf16.msra.mxu0 %v3257
    %3423 = vmatpush.bf16.msra.mxu0 %v3255
    %3424 = vmatpush.bf16.msra.mxu0 %v3253
    %3425 = vmatpush.bf16.msra.mxu0 %v3251
    %3426 = vmatpush.bf16.msra.mxu0 %v3249
    %3427 = vmatpush.bf16.msra.mxu0 %v3247
    %3428 = vmatpush.bf16.msra.mxu0 %v3245
    %3429 = vmatpush.bf16.msra.mxu0 %v3243
    %3430 = vmatmul.bf16.gmra.mxu0 %v3011
    %v3431 = vpop.f32.mrf.mxu0
    %v3432 = vadd.f32 %v3418, %v3431
    %v3433 = vpop.f32.mrf.mxu0
    %v3434 = vadd.f32 %v3420, %v3433
    %3435 = vdwg.mxu0
    %3436 = vmatpush.bf16.msra.mxu0 %v3273
    %3437 = vmatpush.bf16.msra.mxu0 %v3271
    %3438 = vmatpush.bf16.msra.mxu0 %v3269
    %3439 = vmatpush.bf16.msra.mxu0 %v3267
    %3440 = vmatpush.bf16.msra.mxu0 %v3265
    %3441 = vmatpush.bf16.msra.mxu0 %v3263
    %3442 = vmatpush.bf16.msra.mxu0 %v3261
    %3443 = vmatpush.bf16.msra.mxu0 %v3259
    %3444 = vmatmul.bf16.gmra.mxu0 %v3012
    %v3445 = vpop.f32.mrf.mxu0
    %v3446 = vadd.f32 %v3432, %v3445
    %v3447 = vpop.f32.mrf.mxu0
    %v3448 = vadd.f32 %v3434, %v3447
    %3449 = vdwg.mxu0
    %vm3450 = vcmp.gt.f32.partialorder %v3390, 0.0
    %vm3451 = vcmp.gt.f32.partialorder %v3446, 0.0
    %vm3452 = vcmp.gt.f32.partialorder %v3392, 0.0
    %vm3453 = vcmp.gt.f32.partialorder %v3448, 0.0
    %v3454 = vmin.f32 %v3390, 0.0
    %v3455 = vmin.f32 %v3446, 0.0
    %v3456 = vmin.f32 %v3392, 0.0
    %v3457 = vmin.f32 %v3448, 0.0
    %v3458 = vmul.f32 %v3454, 1.442695
    %v3459 = vpow.pop %v3458
    %v3460 = vmul.f32 %v3455, 1.442695
    %v3461 = vpow.pop %v3460
    %v3462 = vmul.f32 %v3456, 1.442695
    %v3463 = vpow.pop %v3462
    %v3464 = vmul.f32 %v3457, 1.442695
    %v3465 = vpow.pop %v3464
    %v3466 = vsub.f32 %v3459, 1.0
    %v3467 = vsub.f32 %v3461, 1.0
    %v3468 = vsub.f32 %v3463, 1.0
    %v3469 = vsub.f32 %v3465, 1.0
    %v3470 = vsel %vm3450, %v3390, %v3466
    %v3471 = vsel %vm3451, %v3446, %v3467
    %v3472 = vsel %vm3452, %v3392, %v3468
    %v3473 = vsel %vm3453, %v3448, %v3469
    %v3474 = vpack.c.bf16 %v3472, %v3470
    %v3475 = vpack.c.bf16 %v3473, %v3471
    %v3477 = vperm.slane %v884, 0
    %v3511 = vunpack.c.l.b16 %v852
    %v3512 = vunpack.c.l.b16 %v853
    %v3513 = vunpack.c.l.b16 %v854
    %v3514 = vunpack.c.l.b16 %v855
    %v3515 = vunpack.c.l.b16 %v856
    %v3516 = vunpack.c.l.b16 %v857
    %v3517 = vunpack.c.l.b16 %v858
    %v3518 = vunpack.c.l.b16 %v859
    %v3519 = vunpack.c.l.b16 %v860
    %v3520 = vunpack.c.l.b16 %v861
    %v3521 = vunpack.c.l.b16 %v862
    %v3522 = vunpack.c.l.b16 %v863
    %v3523 = vunpack.c.l.b16 %v864
    %v3524 = vunpack.c.l.b16 %v865
    %v3525 = vunpack.c.l.b16 %v866
    %v3526 = vunpack.c.l.b16 %v867
    %v3527 = vunpack.c.l.b16 %v868
    %v3528 = vunpack.c.l.b16 %v869
    %v3529 = vunpack.c.l.b16 %v870
    %v3530 = vunpack.c.l.b16 %v871
    %v3531 = vunpack.c.l.b16 %v872
    %v3532 = vunpack.c.l.b16 %v873
    %v3533 = vunpack.c.l.b16 %v874
    %v3534 = vunpack.c.l.b16 %v875
    %v3535 = vunpack.c.l.b16 %v876
    %v3536 = vunpack.c.l.b16 %v877
    %v3537 = vunpack.c.l.b16 %v878
    %v3538 = vunpack.c.l.b16 %v879
    %v3539 = vunpack.c.l.b16 %v880
    %v3540 = vunpack.c.l.b16 %v881
    %v3541 = vunpack.c.l.b16 %v882
    %v3542 = vunpack.c.l.b16 %v883
    %v3543 = vpack.c.b16 %v3512, %v3511
    %v3544 = vpack.c.b16 %v3514, %v3513
    %v3545 = vpack.c.b16 %v3516, %v3515
    %v3546 = vpack.c.b16 %v3518, %v3517
    %v3547 = vpack.c.b16 %v3520, %v3519
    %v3548 = vpack.c.b16 %v3522, %v3521
    %v3549 = vpack.c.b16 %v3524, %v3523
    %v3550 = vpack.c.b16 %v3526, %v3525
    %v3551 = vpack.c.b16 %v3528, %v3527
    %v3552 = vpack.c.b16 %v3530, %v3529
    %v3553 = vpack.c.b16 %v3532, %v3531
    %v3554 = vpack.c.b16 %v3534, %v3533
    %v3555 = vpack.c.b16 %v3536, %v3535
    %v3556 = vpack.c.b16 %v3538, %v3537
    %v3557 = vpack.c.b16 %v3540, %v3539
    %v3558 = vpack.c.b16 %v3542, %v3541
    %3575 = vmatpush.bf16.msra.mxu0 %v3550
    %3576 = vmatpush.bf16.msra.mxu0 %v3549
    %3577 = vmatpush.bf16.msra.mxu0 %v3548
    %3578 = vmatpush.bf16.msra.mxu0 %v3547
    %3579 = vmatpush.bf16.msra.mxu0 %v3546
    %3580 = vmatpush.bf16.msra.mxu0 %v3545
    %3581 = vmatpush.bf16.msra.mxu0 %v3544
    %3582 = vmatpush.bf16.msra.mxu0 %v3543
    %3583 = vmatmul.bf16.gmra.mxu0 %v3474
    %v3584 = vpop.f32.mrf.mxu0
    %v3585 = vadd.f32 %v3477, %v3584
    %v3586 = vpop.f32.mrf.mxu0
    %v3587 = vadd.f32 %v3477, %v3586
    %3588 = vdwg.mxu0
    %3589 = vmatpush.bf16.msra.mxu0 %v3558
    %3590 = vmatpush.bf16.msra.mxu0 %v3557
    %3591 = vmatpush.bf16.msra.mxu0 %v3556
    %3592 = vmatpush.bf16.msra.mxu0 %v3555
    %3593 = vmatpush.bf16.msra.mxu0 %v3554
    %3594 = vmatpush.bf16.msra.mxu0 %v3553
    %3595 = vmatpush.bf16.msra.mxu0 %v3552
    %3596 = vmatpush.bf16.msra.mxu0 %v3551
    %3597 = vmatmul.bf16.gmra.mxu0 %v3475
    %v3598 = vpop.f32.mrf.mxu0
    %v3599 = vadd.f32 %v3585, %v3598
    %v3600 = vpop.f32.mrf.mxu0
    %v3601 = vadd.f32 %v3587, %v3600
    %3602 = vdwg.mxu0
    %vm3603 = vcmp.gt.f32.partialorder %v3599, 0.0
    %vm3604 = vcmp.gt.f32.partialorder %v3601, 0.0
    %v3605 = vmin.f32 %v3599, 0.0
    %v3606 = vmin.f32 %v3601, 0.0
    %v3607 = vmul.f32 %v3605, 1.442695
    %v3608 = vpow.pop %v3607
    %v3609 = vmul.f32 %v3606, 1.442695
    %v3610 = vpow.pop %v3609
    %v3611 = vsub.f32 %v3608, 1.0
    %v3612 = vsub.f32 %v3610, 1.0
    %v3613 = vsel %vm3603, %v3599, %v3611
    %v3614 = vsel %vm3604, %v3601, %v3612
    %v3615 = vpack.c.bf16 %v2218, %v2216
    %v3616 = vpack.c.bf16 %v2219, %v2217
    %v3617 = vpack.c.bf16 %v2814, %v2812
    %v3618 = vpack.c.bf16 %v2815, %v2813
    %v3651 = vunpack.c.l.b16 %v738
    %v3652 = vunpack.c.l.b16 %v739
    %v3653 = vunpack.c.l.b16 %v740
    %v3654 = vunpack.c.l.b16 %v741
    %v3655 = vunpack.c.l.b16 %v742
    %v3656 = vunpack.c.l.b16 %v743
    %v3657 = vunpack.c.l.b16 %v744
    %v3658 = vunpack.c.l.b16 %v745
    %v3659 = vunpack.c.l.b16 %v746
    %v3660 = vunpack.c.l.b16 %v747
    %v3661 = vunpack.c.l.b16 %v748
    %v3662 = vunpack.c.l.b16 %v749
    %v3663 = vunpack.c.l.b16 %v750
    %v3664 = vunpack.c.l.b16 %v751
    %v3665 = vunpack.c.l.b16 %v752
    %v3666 = vunpack.c.l.b16 %v753
    %v3667 = vunpack.c.l.b16 %v754
    %v3668 = vunpack.c.l.b16 %v755
    %v3669 = vunpack.c.l.b16 %v756
    %v3670 = vunpack.c.l.b16 %v757
    %v3671 = vunpack.c.l.b16 %v758
    %v3672 = vunpack.c.l.b16 %v759
    %v3673 = vunpack.c.l.b16 %v760
    %v3674 = vunpack.c.l.b16 %v761
    %v3675 = vunpack.c.l.b16 %v762
    %v3676 = vunpack.c.l.b16 %v763
    %v3677 = vunpack.c.l.b16 %v764
    %v3678 = vunpack.c.l.b16 %v765
    %v3679 = vunpack.c.l.b16 %v766
    %v3680 = vunpack.c.l.b16 %v767
    %v3681 = vunpack.c.l.b16 %v768
    %v3682 = vunpack.c.l.b16 %v769
    %v3683 = vpack.c.b16 %v3652, %v3651
    %v3684 = vpack.c.b16 %v3654, %v3653
    %v3685 = vpack.c.b16 %v3656, %v3655
    %v3686 = vpack.c.b16 %v3658, %v3657
    %v3687 = vpack.c.b16 %v3660, %v3659
    %v3688 = vpack.c.b16 %v3662, %v3661
    %v3689 = vpack.c.b16 %v3664, %v3663
    %v3690 = vpack.c.b16 %v3666, %v3665
    %v3691 = vpack.c.b16 %v3668, %v3667
    %v3692 = vpack.c.b16 %v3670, %v3669
    %v3693 = vpack.c.b16 %v3672, %v3671
    %v3694 = vpack.c.b16 %v3674, %v3673
    %v3695 = vpack.c.b16 %v3676, %v3675
    %v3696 = vpack.c.b16 %v3678, %v3677
    %v3697 = vpack.c.b16 %v3680, %v3679
    %v3698 = vpack.c.b16 %v3682, %v3681
    %3715 = vmatpush.bf16.msra.mxu0 %v3690
    %3716 = vmatpush.bf16.msra.mxu0 %v3689
    %3717 = vmatpush.bf16.msra.mxu0 %v3688
    %3718 = vmatpush.bf16.msra.mxu0 %v3687
    %3719 = vmatpush.bf16.msra.mxu0 %v3686
    %3720 = vmatpush.bf16.msra.mxu0 %v3685
    %3721 = vmatpush.bf16.msra.mxu0 %v3684
    %3722 = vmatpush.bf16.msra.mxu0 %v3683
    %3723 = vmatmul.bf16.gmra.mxu0 %v3617
    %v3724 = vpop.f32.mrf.mxu0
    %v3725 = vadd.f32 0.0, %v3724
    %v3726 = vpop.f32.mrf.mxu0
    %v3727 = vadd.f32 0.0, %v3726
    %3728 = vdwg.mxu0
    %3729 = vmatpush.bf16.msra.mxu0 %v3698
    %3730 = vmatpush.bf16.msra.mxu0 %v3697
    %3731 = vmatpush.bf16.msra.mxu0 %v3696
    %3732 = vmatpush.bf16.msra.mxu0 %v3695
    %3733 = vmatpush.bf16.msra.mxu0 %v3694
    %3734 = vmatpush.bf16.msra.mxu0 %v3693
    %3735 = vmatpush.bf16.msra.mxu0 %v3692
    %3736 = vmatpush.bf16.msra.mxu0 %v3691
    %3737 = vmatmul.bf16.gmra.mxu0 %v3618
    %v3738 = vpop.f32.mrf.mxu0
    %v3739 = vadd.f32 %v3725, %v3738
    %v3740 = vpop.f32.mrf.mxu0
    %v3741 = vadd.f32 %v3727, %v3740
    %3742 = vdwg.mxu0
    %v3775 = vunpack.c.l.b16 %v631
    %v3776 = vunpack.c.l.b16 %v632
    %v3777 = vunpack.c.l.b16 %v633
    %v3778 = vunpack.c.l.b16 %v634
    %v3779 = vunpack.c.l.b16 %v635
    %v3780 = vunpack.c.l.b16 %v636
    %v3781 = vunpack.c.l.b16 %v637
    %v3782 = vunpack.c.l.b16 %v638
    %v3783 = vunpack.c.l.b16 %v639
    %v3784 = vunpack.c.l.b16 %v640
    %v3785 = vunpack.c.l.b16 %v641
    %v3786 = vunpack.c.l.b16 %v642
    %v3787 = vunpack.c.l.b16 %v643
    %v3788 = vunpack.c.l.b16 %v644
    %v3789 = vunpack.c.l.b16 %v645
    %v3790 = vunpack.c.l.b16 %v646
    %v3791 = vunpack.c.l.b16 %v647
    %v3792 = vunpack.c.l.b16 %v648
    %v3793 = vunpack.c.l.b16 %v649
    %v3794 = vunpack.c.l.b16 %v650
    %v3795 = vunpack.c.l.b16 %v651
    %v3796 = vunpack.c.l.b16 %v652
    %v3797 = vunpack.c.l.b16 %v653
    %v3798 = vunpack.c.l.b16 %v654
    %v3799 = vunpack.c.l.b16 %v655
    %v3800 = vunpack.c.l.b16 %v656
    %v3801 = vunpack.c.l.b16 %v657
    %v3802 = vunpack.c.l.b16 %v658
    %v3803 = vunpack.c.l.b16 %v659
    %v3804 = vunpack.c.l.b16 %v660
    %v3805 = vunpack.c.l.b16 %v661
    %v3806 = vunpack.c.l.b16 %v662
    %v3807 = vpack.c.b16 %v3776, %v3775
    %v3808 = vpack.c.b16 %v3778, %v3777
    %v3809 = vpack.c.b16 %v3780, %v3779
    %v3810 = vpack.c.b16 %v3782, %v3781
    %v3811 = vpack.c.b16 %v3784, %v3783
    %v3812 = vpack.c.b16 %v3786, %v3785
    %v3813 = vpack.c.b16 %v3788, %v3787
    %v3814 = vpack.c.b16 %v3790, %v3789
    %v3815 = vpack.c.b16 %v3792, %v3791
    %v3816 = vpack.c.b16 %v3794, %v3793
    %v3817 = vpack.c.b16 %v3796, %v3795
    %v3818 = vpack.c.b16 %v3798, %v3797
    %v3819 = vpack.c.b16 %v3800, %v3799
    %v3820 = vpack.c.b16 %v3802, %v3801
    %v3821 = vpack.c.b16 %v3804, %v3803
    %v3822 = vpack.c.b16 %v3806, %v3805
    %3839 = vmatpush.bf16.msra.mxu0 %v3814
    %3840 = vmatpush.bf16.msra.mxu0 %v3813
    %3841 = vmatpush.bf16.msra.mxu0 %v3812
    %3842 = vmatpush.bf16.msra.mxu0 %v3811
    %3843 = vmatpush.bf16.msra.mxu0 %v3810
    %3844 = vmatpush.bf16.msra.mxu0 %v3809
    %3845 = vmatpush.bf16.msra.mxu0 %v3808
    %3846 = vmatpush.bf16.msra.mxu0 %v3807
    %3847 = vmatmul.bf16.gmra.mxu0 %v3615
    %v3848 = vpop.f32.mrf.mxu0
    %v3849 = vadd.f32 %v3739, %v3848
    %v3850 = vpop.f32.mrf.mxu0
    %v3851 = vadd.f32 %v3741, %v3850
    %3852 = vdwg.mxu0
    %3853 = vmatpush.bf16.msra.mxu0 %v3822
    %3854 = vmatpush.bf16.msra.mxu0 %v3821
    %3855 = vmatpush.bf16.msra.mxu0 %v3820
    %3856 = vmatpush.bf16.msra.mxu0 %v3819
    %3857 = vmatpush.bf16.msra.mxu0 %v3818
    %3858 = vmatpush.bf16.msra.mxu0 %v3817
    %3859 = vmatpush.bf16.msra.mxu0 %v3816
    %3860 = vmatpush.bf16.msra.mxu0 %v3815
    %3861 = vmatmul.bf16.gmra.mxu0 %v3616
    %v3862 = vpop.f32.mrf.mxu0
    %v3863 = vadd.f32 %v3849, %v3862
    %v3864 = vpop.f32.mrf.mxu0
    %v3865 = vadd.f32 %v3851, %v3864
    %3866 = vdwg.mxu0
    %v3867 = vpack.c.bf16 %v3614, %v3613
    %v3884 = vunpack.c.l.b16 %v885
    %v3885 = vunpack.c.l.b16 %v886
    %v3886 = vunpack.c.l.b16 %v887
    %v3887 = vunpack.c.l.b16 %v888
    %v3888 = vunpack.c.l.b16 %v889
    %v3889 = vunpack.c.l.b16 %v890
    %v3890 = vunpack.c.l.b16 %v891
    %v3891 = vunpack.c.l.b16 %v892
    %v3892 = vunpack.c.l.b16 %v893
    %v3893 = vunpack.c.l.b16 %v894
    %v3894 = vunpack.c.l.b16 %v895
    %v3895 = vunpack.c.l.b16 %v896
    %v3896 = vunpack.c.l.b16 %v897
    %v3897 = vunpack.c.l.b16 %v898
    %v3898 = vunpack.c.l.b16 %v899
    %v3899 = vunpack.c.l.b16 %v900
    %v3900 = vpack.c.b16 %v3885, %v3884
    %v3901 = vpack.c.b16 %v3887, %v3886
    %v3902 = vpack.c.b16 %v3889, %v3888
    %v3903 = vpack.c.b16 %v3891, %v3890
    %v3904 = vpack.c.b16 %v3893, %v3892
    %v3905 = vpack.c.b16 %v3895, %v3894
    %v3906 = vpack.c.b16 %v3897, %v3896
    %v3907 = vpack.c.b16 %v3899, %v3898
    %3916 = vmatpush.bf16.msra.mxu0 %v3907
    %3917 = vmatpush.bf16.msra.mxu0 %v3906
    %3918 = vmatpush.bf16.msra.mxu0 %v3905
    %3919 = vmatpush.bf16.msra.mxu0 %v3904
    %3920 = vmatpush.bf16.msra.mxu0 %v3903
    %3921 = vmatpush.bf16.msra.mxu0 %v3902
    %3922 = vmatpush.bf16.msra.mxu0 %v3901
    %3923 = vmatpush.bf16.msra.mxu0 %v3900
    %3924 = vmatmul.bf16.gmra.mxu0 %v3867
    %v3925 = vpop.f32.mrf.mxu0
    %v3926 = vadd.f32 0.0, %v3925
    %v3927 = vpop.f32.mrf.mxu0
    %v3928 = vadd.f32 0.0, %v3927
    %3929 = vdwg.mxu0
    %v3930 = vadd.f32 %v3863, %v3926
    %v3931 = vadd.f32 %v3865, %v3928
    %v3933 = vperm.slane %v901, 0
    %v3935 = vadd.f32 %v3930, %v3933
    %v3936 = vadd.f32 %v3931, %v3933
    %3937 = vst [vmem:[#allocation34] sm:$0xff] %v3935
    %3938 = vst [vmem:[#allocation34 + $0x8] sm:$0xff] %v3936
    // Predicated region
    $region218: #{tpu_custom_call.1} parent=1 // pred_check
      _
    $region219: #{tpu_custom_call.1} parent=1 // pred_check_branch
      %3940 = sbr.rel (0) target = $region221
    $region220: #{tpu_custom_call.1} parent=1 // pred_region
      %3942 = vsyncadd [#allocation4], 0
      %s3943 = sshll.u32 [#allocation34], 4
      %s3944 = int_to_ptr.vmem [resolvable:$true] %s3943
      %s3945 = sshll.u32 %s69, 4
      %s3946 = int_to_ptr.hbm [resolvable:$true] %s3945
      %3951 = dma.vmem_to_hbm [thread:$0]  %s3944, 256, %s3946, [#allocation4], 128, 128, 8
    $region221: #{tpu_custom_call.1} parent=1 // pred_fallthru
      _
    // Predicated region
    $region222: #{tpu_custom_call.1} parent=1 // pred_check
      _
    $region223: #{tpu_custom_call.1} parent=1 // pred_check_branch
      %3953 = sbr.rel (0) target = $region225
    $region224: #{tpu_custom_call.1} parent=1 // pred_region
      %3955 = dma.done [#allocation4], 256
    $region225: #{tpu_custom_call.1} parent=1 // pred_fallthru
      _
    %3956 = vsyncpa [#allocation3], 1
    %3957 = vsyncpa [#allocation6], 1
    %3958 = vsyncpa [#allocation9], 1
    %3959 = vsyncpa [#allocation12], 1
    %3960 = vsyncpa [#allocation15], 1
    %3961 = vsyncpa [#allocation18], 1
    %3962 = vsyncpa [#allocation21], 1
    %3963 = vsyncpa [#allocation24], 1
    %3964 = vsyncpa [#allocation27], 1
    %3965 = vsyncpa [#allocation30], 1
    %3966 = vsyncpa [#allocation33], 1
    %3967 = vsyncpa [#allocation4], 1

</llo_original>
